<compile_context>
chip_gen: v5e
topology: v5e:2x2
jax: 0.10.0
libtpu: 0.0.40
codegen_flags: <defaults>
</compile_context>

<pallas_src>
import numpy as np
import jax
import jax.numpy as jnp
from jax.experimental import pallas as pl
from jax.experimental.pallas import tpu as pltpu

HEADS = 8
DIM_HEAD = 16
INNER = HEADS * DIM_HEAD          # 128
SCALE = DIM_HEAD ** (-0.5)        # 0.25
BN_EPS = 1e-5
PADW = 128                        # lane-padded feature width used everywhere


# --------------------------------------------------------------------------- #
# Parameter packing (glue, runs once): fold BN, zero-pad to 128 lanes, build a
# single f32 slab + static row-offset metadata.
# --------------------------------------------------------------------------- #

def _pad2(a, rows=PADW, cols=PADW):
    a = jnp.asarray(a, jnp.float32)
    r, c = a.shape
    return jnp.zeros((rows, cols), jnp.float32).at[:r, :c].set(a)


def pack_net_params(layer_params, input_dim, encoding_dim=32):
    """Fold eval-mode BatchNorm into adjacent Linears and pack every parameter of
    every DenseBlock into ONE lane-dense (rows, 128) slab (single DMA per call).

    Returns (slab, layout) where layout is static Python metadata (row offsets).
    All weight segments are 128 rows x 128 cols (zero-padded); per-layer biases
    share one 8-row block (one bias per row)."""
    blocks, layout = [], []
    off = 0

    def add(mat, rows=PADW):
        nonlocal off
        blocks.append(_pad2(mat, rows, PADW))
        start = off
        off += rows
        return start

    for i, p in enumerate(layer_params):
        (w1, b1, ww, bw,
         qkv1, ao1w, ao1b, bn1s, bn1b,
         qkv2, ao2w, ao2b, bn2s, bn2b,
         bn3s, bn3b, w3, b3) = p

        # Fold eval-mode BatchNorm into the neighboring Linears.
        ao1w_f = ao1w * bn1s                    # Block 1: (x@W+b)*s+t == x@(W*s)+(b*s+t)
        ao1b_f = ao1b * bn1s + bn1b
        ao2w_f = ao2w * bn2s                    # Block 2
        ao2b_f = ao2b * bn2s + bn2b
        w3_f = w3 * bn3s[0][:, None]            # deep_block_3: (h*s+t)@W+b == h@(s.W)+ (t@W+b)
        b3_f = b3 + bn3b @ w3

        # seq_1 Linear, split into a chunk for x and one per previous layer output
        # (this replaces torch.cat entirely).
        w1_offs = [add(w1[:input_dim])]
        for j in range(i):
            lo = input_dim + j * encoding_dim
            w1_offs.append(add(w1[lo:lo + encoding_dim]))

        L = dict(
            w1=w1_offs,
            ww=add(ww),
            q1=add(qkv1[:, 0 * INNER:1 * INNER]),
            k1=add(qkv1[:, 1 * INNER:2 * INNER]),
            v1=add(qkv1[:, 2 * INNER:3 * INNER]),
            ao1w=add(ao1w_f),
            q2=add(qkv2[:, 0 * INNER:1 * INNER]),
            k2=add(qkv2[:, 1 * INNER:2 * INNER]),
            v2=add(qkv2[:, 2 * INNER:3 * INNER]),
            ao2w=add(ao2w_f),
            w3=add(w3_f),
        )
        bias_block = jnp.zeros((8, PADW), jnp.float32)
        for r, vec in enumerate((b1, bw, ao1b_f, ao2b_f, b3_f)):
            bias_block = bias_block.at[r, :vec.shape[1]].set(vec[0])
        boff = add(bias_block, rows=8)
        L.update(b1=boff + 0, bw=boff + 1, ao1b=boff + 2, ao2b=boff + 3, b3=boff + 4)
        layout.append(L)

    slab = jnp.concatenate(blocks, axis=0)      # (rows, 128), rows multiple of 8
    return slab, layout


# --------------------------------------------------------------------------- #
# Fused Net kernel (all layers in one pallas_call).
# --------------------------------------------------------------------------- #

def _make_net_kernel(layout):
    num_layers = len(layout)

    def kernel(x_ref, p_ref, out_ref):
        tb = x_ref.shape[0]
        lane = jax.lax.broadcasted_iota(jnp.int32, (tb, INNER), 1)
        lane_mod = lane & (DIM_HEAD - 1)            # position within a 16-lane head

        def w(off):                                  # 128x128 weight tile (static slice)
            return p_ref[off:off + PADW, :]

        def bias(row):                               # (1,128), broadcasts over batch
            return p_ref[row:row + 1, :]

        def mm(act, off):
            return jnp.dot(act, w(off), preferred_element_type=jnp.float32)

        def seg_roll(arr, s):
            # Rotate every 16-lane head segment: out[.., h*16+d] = in[.., h*16+(d+s)%16]
            if s == 0:
                return arr
            a = pltpu.roll(arr, shift=INNER - s, axis=1)      # in[(l+s)    % 128]
            b = pltpu.roll(arr, shift=DIM_HEAD - s, axis=1)   # in[(l+s-16) % 128]
            return jnp.where(lane_mod < DIM_HEAD - s, a, b)

        def attention(act, L, which):
            # q,k,v stay (tb,128) lane-dense; lane = head*16 + index.
            q = mm(act, L['q' + which]) * SCALE
            k = mm(act, L['k' + which])
            v = mm(act, L['v' + which])
            # max_j q_i*k_j  ==  max(q_i*max_j k_j, q_i*min_j k_j): segment-wise
            # max/min of k via 4 log-step rolls instead of an (H,16,16) reduction.
            kmax, kmin = k, k
            for t in (1, 2, 4, 8):
                kmax = jnp.maximum(kmax, seg_roll(kmax, t))
                kmin = jnp.minimum(kmin, seg_roll(kmin, t))
            m = jnp.maximum(q * kmax, q * kmin)
            num = jnp.zeros_like(q)
            den = jnp.zeros_like(q)
            for s in range(DIM_HEAD):                # 16 within-head key shifts
                ks = seg_roll(k, s)
                vs = seg_roll(v, s)
                p = jnp.exp(q * ks - m)
                den = den + p
                num = num + p * vs
            r = pl.reciprocal(den, approx=True)      # EUP
            r = r * (2.0 - den * r)                  # one Newton step -> ~f32-exact
            out = num * r                            # (tb,128) == concat of heads
            # to_out Linear with BatchNorm folded in.
            return mm(out, L['ao' + which + 'w']) + bias(L['ao' + which + 'b'])

        x = x_ref[...]                               # (tb,128), features zero-padded
        outs = []
        for i in range(num_layers):
            L = layout[i]
            # seq_1: Linear over the implicit concat [x, out_0, ..., out_{i-1}]
            acc = mm(x, L['w1'][0]) + bias(L['b1'])
            for j in range(i):
                acc = acc + mm(outs[j], L['w1'][j + 1])
            o = jnp.tanh(acc)
            o1 = mm(o, L['ww']) + bias(L['bw'])              # wide path
            h1 = jnp.tanh(attention(o, L, '1'))              # Block 1 (BN folded)
            h2 = jnp.tanh(attention(h1, L, '2'))             # Block 2 (BN folded)
            o2 = mm(h2, L['w3']) + bias(L['b3'])             # deep_block_3 (BN folded)
            outs.append(o1 + o2)                             # padded lanes stay 0

        out_ref[...] = outs[-1].astype(out_ref.dtype)        # lane-dense store

    return kernel


def net_apply(x, slab, layout, *, encoding_dim=32, block_b=256):
    """Run the whole Net in a single pallas_call.  Returns (B, encoding_dim)."""
    B, in_dim = x.shape
    # Batch tile: multiple of 8 sublanes, capped at 256 rows so the per-step VMEM
    # footprint stays small even on v7x (64 MiB).  The batch grid axis is marked
    # "parallel" so both TensorCores of a v7x chip get work.
    TB = min(block_b, ((B + 7) // 8) * 8)
    Bp = ((B + TB - 1) // TB) * TB
    xp = jnp.zeros((Bp, PADW), jnp.float32).at[:B, :in_dim].set(x)

    out = pl.pallas_call(
        _make_net_kernel(layout),
        out_shape=jax.ShapeDtypeStruct((Bp, PADW), jnp.float32),
        grid_spec=pltpu.PrefetchScalarGridSpec(
            num_scalar_prefetch=0,
            grid=(Bp // TB,),
            in_specs=[
                pl.BlockSpec((TB, PADW), lambda i: (i, 0)),     # batch tile of x
                pl.BlockSpec(slab.shape, lambda i: (0, 0)),     # one packed param slab
            ],
            out_specs=pl.BlockSpec((TB, PADW), lambda i: (i, 0)),
        ),
        compiler_params=pltpu.CompilerParams(
            dimension_semantics=("parallel",)),
    )(xp, slab)
    return out[:B, :encoding_dim]


# ---------------- parameter construction (deterministic, PyTorch-like init) --------- #

def _uniform(key, shape, bound):
    return jax.random.uniform(key, shape, jnp.float32, -bound, bound)


def _init_linear(key, in_dim, out_dim, bias=True):
    kw, kb = jax.random.split(key)
    bound = 1.0 / np.sqrt(in_dim)
    wmat = _uniform(kw, (in_dim, out_dim), bound)          # stored (in, out)
    if bias:
        b = _uniform(kb, (1, out_dim), bound)
        return wmat, b
    return wmat, None


def _bn_fold(dim):
    # eval-mode BatchNorm1d with default init: gamma=1, beta=0, mean=0, var=1
    scale = jnp.full((1, dim), 1.0 / np.sqrt(1.0 + BN_EPS), jnp.float32)
    shift = jnp.zeros((1, dim), jnp.float32)
    return scale, shift


def init_dense_block(key, input_dim, first_dim, second_dim, encoding_dim):
    ks = jax.random.split(key, 8)
    w1, b1 = _init_linear(ks[0], input_dim, first_dim)
    ww, bw = _init_linear(ks[1], first_dim, encoding_dim)

    qkv1, _ = _init_linear(ks[2], first_dim, 3 * INNER, bias=False)
    ao1w, ao1b = _init_linear(ks[3], INNER, second_dim)
    bn1s, bn1b = _bn_fold(second_dim)

    qkv2, _ = _init_linear(ks[4], second_dim, 3 * INNER, bias=False)
    ao2w, ao2b = _init_linear(ks[5], INNER, 32)
    bn2s, bn2b = _bn_fold(32)

    bn3s, bn3b = _bn_fold(32)
    w3, b3 = _init_linear(ks[6], 32, encoding_dim)

    return (w1, b1, ww, bw,
            qkv1, ao1w, ao1b, bn1s, bn1b,
            qkv2, ao2w, ao2b, bn2s, bn2b,
            bn3s, bn3b, w3, b3)


def init_net_params(key, input_dim=20, first_dim=30, second_dim=20,
                    encoding_dim=32, layer_num=2):
    keys = jax.random.split(key, layer_num)
    return [init_dense_block(keys[i], input_dim + encoding_dim * i,
                             first_dim, second_dim, encoding_dim)
            for i in range(layer_num)]


# ---------------- pure-JAX reference (same math, no Pallas, no folding) ------------- #

def _attention_ref(x, w_qkv, w_out, b_out):
    B = x.shape[0]
    qkv = x @ w_qkv
    q, k, v = [t.reshape(B, HEADS, DIM_HEAD) for t in jnp.split(qkv, 3, axis=-1)]
    sim = jnp.einsum('bhi,bhj->bhij', q, k) * SCALE
    attn = jax.nn.softmax(sim, axis=-1)
    out = jnp.einsum('bhij,bhj->bhi', attn, v).reshape(B, INNER)
    return out @ w_out + b_out


def dense_block_ref(x, p):
    (w1, b1, ww, bw, qkv1, ao1w, ao1b, bn1s, bn1b,
     qkv2, ao2w, ao2b, bn2s, bn2b, bn3s, bn3b, w3, b3) = p
    o = jnp.tanh(x @ w1 + b1)
    o1 = o @ ww + bw
    h1 = jnp.tanh(_attention_ref(o, qkv1, ao1w, ao1b) * bn1s + bn1b)
    h2 = jnp.tanh(_attention_ref(h1, qkv2, ao2w, ao2b) * bn2s + bn2b)
    o2 = (h2 * bn3s + bn3b) @ w3 + b3
    return o1 + o2


def net_ref(x, layer_params):
    inp = x
    out = None
    for p in layer_params:
        out = dense_block_ref(inp, p)
        inp = jnp.concatenate([inp, out], axis=1)
    return out


if __name__ == "__main__":
    key = jax.random.PRNGKey(0)
    kx, kp = jax.random.split(key)

    B, INPUT_DIM, FIRST, SECOND, ENC, LAYERS = 8, 20, 30, 20, 32, 2
    x = jax.random.normal(kx, (B, INPUT_DIM), dtype=jnp.float32)
    params = init_net_params(kp, input_dim=INPUT_DIM, first_dim=FIRST,
                             second_dim=SECOND, encoding_dim=ENC, layer_num=LAYERS)
    slab, layout = pack_net_params(params, input_dim=INPUT_DIM, encoding_dim=ENC)

    out = net_apply(x, slab, layout, encoding_dim=ENC)
    out = jax.block_until_ready(out)

    ref = net_ref(x, params)
    assert out.shape == (B, ENC), out.shape
    assert bool(jnp.all(jnp.isfinite(out)))
    err = float(jnp.max(jnp.abs(out - ref)))
    # Residual error sources: BN folding, approx-reciprocal (+1 Newton step), and a
    # possible pass-count difference between the in-kernel MXU f32 matmuls and
    # XLA's default-precision reference dots.  Layout / structural bugs would show
    # up at O(1), well above this bound.
    assert err < 2e-2, err
    print("KERNEL_OK")
</pallas_src>

<mosaic_0001>
module attributes {stable_mosaic.version = 11 : i64} {
  func.func @kernel(%arg0: i32, %arg1: memref<8x128xf32, #tpu.memory_space<vmem>>, %arg2: memref<2960x128xf32, #tpu.memory_space<vmem>>, %arg3: memref<8x128xf32, #tpu.memory_space<vmem>>) attributes {dimension_semantics = [#tpu.dimension_semantics<parallel>], iteration_bounds = array<i64: 1>, scalar_prefetch = 0 : i64, scratch_operands = 0 : i64, tpu.core_type = #tpu.core_type<tc>, window_params = [{transform_indices = @transform_0, window_bounds = array<i64: 8, 128>}, {pipeline_mode = #tpu.pipeline_mode<synchronous>, transform_indices = @transform_1, window_bounds = array<i64: 2960, 128>}, {transform_indices = @transform_2, window_bounds = array<i64: 8, 128>}]} {
    %0 = tpu.iota {dimensions = array<i32: 1>} : vector<8x128xi32>
    %c15_i32 = arith.constant 15 : i32
    %1 = vector.broadcast %c15_i32 : i32 to vector<8x128xi32>
    %2 = arith.andi %0, %1 : vector<8x128xi32>
    %c0 = arith.constant 0 : index
    %c0_0 = arith.constant 0 : index
    %3 = vector.load %arg1[%c0, %c0_0] : memref<8x128xf32, #tpu.memory_space<vmem>>, vector<8x128xf32>
    %c0_1 = arith.constant 0 : index
    %c0_2 = arith.constant 0 : index
    %4 = vector.load %arg2[%c0_1, %c0_2] : memref<2960x128xf32, #tpu.memory_space<vmem>>, vector<128x128xf32>
    %cst = arith.constant dense<0.000000e+00> : vector<8x128xf32>
    %5 = tpu.matmul %3, %4, %cst {dimension_numbers = #tpu.dot_dimension_numbers<[1], [0], [0], [1], [0, 0, 1, 1], [], []>} : vector<8x128xf32>, vector<128x128xf32>, vector<8x128xf32> -> vector<8x128xf32>
    %c1408 = arith.constant 1408 : index
    %c0_3 = arith.constant 0 : index
    %6 = vector.load %arg2[%c1408, %c0_3] : memref<2960x128xf32, #tpu.memory_space<vmem>>, vector<1x128xf32>
    %7 = vector.broadcast %6 : vector<1x128xf32> to vector<8x128xf32>
    %8 = arith.addf %5, %7 : vector<8x128xf32>
    %9 = math.tanh %8 : vector<8x128xf32>
    %c128 = arith.constant 128 : index
    %c0_4 = arith.constant 0 : index
    %10 = vector.load %arg2[%c128, %c0_4] : memref<2960x128xf32, #tpu.memory_space<vmem>>, vector<128x128xf32>
    %cst_5 = arith.constant dense<0.000000e+00> : vector<8x128xf32>
    %11 = tpu.matmul %9, %10, %cst_5 {dimension_numbers = #tpu.dot_dimension_numbers<[1], [0], [0], [1], [0, 0, 1, 1], [], []>} : vector<8x128xf32>, vector<128x128xf32>, vector<8x128xf32> -> vector<8x128xf32>
    %c1409 = arith.constant 1409 : index
    %c0_6 = arith.constant 0 : index
    %12 = vector.load %arg2[%c1409, %c0_6] : memref<2960x128xf32, #tpu.memory_space<vmem>>, vector<1x128xf32>
    %13 = vector.broadcast %12 : vector<1x128xf32> to vector<8x128xf32>
    %14 = arith.addf %11, %13 : vector<8x128xf32>
    %c256 = arith.constant 256 : index
    %c0_7 = arith.constant 0 : index
    %15 = vector.load %arg2[%c256, %c0_7] : memref<2960x128xf32, #tpu.memory_space<vmem>>, vector<128x128xf32>
    %cst_8 = arith.constant dense<0.000000e+00> : vector<8x128xf32>
    %16 = tpu.matmul %9, %15, %cst_8 {dimension_numbers = #tpu.dot_dimension_numbers<[1], [0], [0], [1], [0, 0, 1, 1], [], []>} : vector<8x128xf32>, vector<128x128xf32>, vector<8x128xf32> -> vector<8x128xf32>
    %cst_9 = arith.constant 2.500000e-01 : f32
    %17 = vector.broadcast %cst_9 : f32 to vector<8x128xf32>
    %18 = arith.mulf %16, %17 : vector<8x128xf32>
    %c384 = arith.constant 384 : index
    %c0_10 = arith.constant 0 : index
    %19 = vector.load %arg2[%c384, %c0_10] : memref<2960x128xf32, #tpu.memory_space<vmem>>, vector<128x128xf32>
    %cst_11 = arith.constant dense<0.000000e+00> : vector<8x128xf32>
    %20 = tpu.matmul %9, %19, %cst_11 {dimension_numbers = #tpu.dot_dimension_numbers<[1], [0], [0], [1], [0, 0, 1, 1], [], []>} : vector<8x128xf32>, vector<128x128xf32>, vector<8x128xf32> -> vector<8x128xf32>
    %c512 = arith.constant 512 : index
    %c0_12 = arith.constant 0 : index
    %21 = vector.load %arg2[%c512, %c0_12] : memref<2960x128xf32, #tpu.memory_space<vmem>>, vector<128x128xf32>
    %cst_13 = arith.constant dense<0.000000e+00> : vector<8x128xf32>
    %22 = tpu.matmul %9, %21, %cst_13 {dimension_numbers = #tpu.dot_dimension_numbers<[1], [0], [0], [1], [0, 0, 1, 1], [], []>} : vector<8x128xf32>, vector<128x128xf32>, vector<8x128xf32> -> vector<8x128xf32>
    %c127_i32 = arith.constant 127 : i32
    %23 = tpu.dynamic_rotate %20 by %c127_i32 dim 1 : vector<8x128xf32>, i32 -> vector<8x128xf32>
    %c15_i32_14 = arith.constant 15 : i32
    %24 = tpu.dynamic_rotate %20 by %c15_i32_14 dim 1 : vector<8x128xf32>, i32 -> vector<8x128xf32>
    %c15_i32_15 = arith.constant 15 : i32
    %25 = vector.broadcast %c15_i32_15 : i32 to vector<8x128xi32>
    %26 = arith.cmpi slt, %2, %25 : vector<8x128xi32>
    %27 = arith.select %26, %23, %24 : vector<8x128xi1>, vector<8x128xf32>
    %28 = arith.maximumf %20, %27 : vector<8x128xf32>
    %c127_i32_16 = arith.constant 127 : i32
    %29 = tpu.dynamic_rotate %20 by %c127_i32_16 dim 1 : vector<8x128xf32>, i32 -> vector<8x128xf32>
    %c15_i32_17 = arith.constant 15 : i32
    %30 = tpu.dynamic_rotate %20 by %c15_i32_17 dim 1 : vector<8x128xf32>, i32 -> vector<8x128xf32>
    %c15_i32_18 = arith.constant 15 : i32
    %31 = vector.broadcast %c15_i32_18 : i32 to vector<8x128xi32>
    %32 = arith.cmpi slt, %2, %31 : vector<8x128xi32>
    %33 = arith.select %32, %29, %30 : vector<8x128xi1>, vector<8x128xf32>
    %34 = arith.minimumf %20, %33 : vector<8x128xf32>
    %c126_i32 = arith.constant 126 : i32
    %35 = tpu.dynamic_rotate %28 by %c126_i32 dim 1 : vector<8x128xf32>, i32 -> vector<8x128xf32>
    %c14_i32 = arith.constant 14 : i32
    %36 = tpu.dynamic_rotate %28 by %c14_i32 dim 1 : vector<8x128xf32>, i32 -> vector<8x128xf32>
    %c14_i32_19 = arith.constant 14 : i32
    %37 = vector.broadcast %c14_i32_19 : i32 to vector<8x128xi32>
    %38 = arith.cmpi slt, %2, %37 : vector<8x128xi32>
    %39 = arith.select %38, %35, %36 : vector<8x128xi1>, vector<8x128xf32>
    %40 = arith.maximumf %28, %39 : vector<8x128xf32>
    %c126_i32_20 = arith.constant 126 : i32
    %41 = tpu.dynamic_rotate %34 by %c126_i32_20 dim 1 : vector<8x128xf32>, i32 -> vector<8x128xf32>
    %c14_i32_21 = arith.constant 14 : i32
    %42 = tpu.dynamic_rotate %34 by %c14_i32_21 dim 1 : vector<8x128xf32>, i32 -> vector<8x128xf32>
    %c14_i32_22 = arith.constant 14 : i32
    %43 = vector.broadcast %c14_i32_22 : i32 to vector<8x128xi32>
    %44 = arith.cmpi slt, %2, %43 : vector<8x128xi32>
    %45 = arith.select %44, %41, %42 : vector<8x128xi1>, vector<8x128xf32>
    %46 = arith.minimumf %34, %45 : vector<8x128xf32>
    %c124_i32 = arith.constant 124 : i32
    %47 = tpu.dynamic_rotate %40 by %c124_i32 dim 1 : vector<8x128xf32>, i32 -> vector<8x128xf32>
    %c12_i32 = arith.constant 12 : i32
    %48 = tpu.dynamic_rotate %40 by %c12_i32 dim 1 : vector<8x128xf32>, i32 -> vector<8x128xf32>
    %c12_i32_23 = arith.constant 12 : i32
    %49 = vector.broadcast %c12_i32_23 : i32 to vector<8x128xi32>
    %50 = arith.cmpi slt, %2, %49 : vector<8x128xi32>
    %51 = arith.select %50, %47, %48 : vector<8x128xi1>, vector<8x128xf32>
    %52 = arith.maximumf %40, %51 : vector<8x128xf32>
    %c124_i32_24 = arith.constant 124 : i32
    %53 = tpu.dynamic_rotate %46 by %c124_i32_24 dim 1 : vector<8x128xf32>, i32 -> vector<8x128xf32>
    %c12_i32_25 = arith.constant 12 : i32
    %54 = tpu.dynamic_rotate %46 by %c12_i32_25 dim 1 : vector<8x128xf32>, i32 -> vector<8x128xf32>
    %c12_i32_26 = arith.constant 12 : i32
    %55 = vector.broadcast %c12_i32_26 : i32 to vector<8x128xi32>
    %56 = arith.cmpi slt, %2, %55 : vector<8x128xi32>
    %57 = arith.select %56, %53, %54 : vector<8x128xi1>, vector<8x128xf32>
    %58 = arith.minimumf %46, %57 : vector<8x128xf32>
    %c120_i32 = arith.constant 120 : i32
    %59 = tpu.dynamic_rotate %52 by %c120_i32 dim 1 : vector<8x128xf32>, i32 -> vector<8x128xf32>
    %c8_i32 = arith.constant 8 : i32
    %60 = tpu.dynamic_rotate %52 by %c8_i32 dim 1 : vector<8x128xf32>, i32 -> vector<8x128xf32>
    %c8_i32_27 = arith.constant 8 : i32
    %61 = vector.broadcast %c8_i32_27 : i32 to vector<8x128xi32>
    %62 = arith.cmpi slt, %2, %61 : vector<8x128xi32>
    %63 = arith.select %62, %59, %60 : vector<8x128xi1>, vector<8x128xf32>
    %64 = arith.maximumf %52, %63 : vector<8x128xf32>
    %c120_i32_28 = arith.constant 120 : i32
    %65 = tpu.dynamic_rotate %58 by %c120_i32_28 dim 1 : vector<8x128xf32>, i32 -> vector<8x128xf32>
    %c8_i32_29 = arith.constant 8 : i32
    %66 = tpu.dynamic_rotate %58 by %c8_i32_29 dim 1 : vector<8x128xf32>, i32 -> vector<8x128xf32>
    %c8_i32_30 = arith.constant 8 : i32
    %67 = vector.broadcast %c8_i32_30 : i32 to vector<8x128xi32>
    %68 = arith.cmpi slt, %2, %67 : vector<8x128xi32>
    %69 = arith.select %68, %65, %66 : vector<8x128xi1>, vector<8x128xf32>
    %70 = arith.minimumf %58, %69 : vector<8x128xf32>
    %71 = arith.mulf %18, %64 : vector<8x128xf32>
    %72 = arith.mulf %18, %70 : vector<8x128xf32>
    %73 = arith.maximumf %71, %72 : vector<8x128xf32>
    %cst_31 = arith.constant 0.000000e+00 : f32
    %74 = vector.broadcast %cst_31 : f32 to vector<8x128xf32>
    %cst_32 = arith.constant 0.000000e+00 : f32
    %75 = vector.broadcast %cst_32 : f32 to vector<8x128xf32>
    %76 = arith.mulf %18, %20 : vector<8x128xf32>
    %77 = arith.subf %76, %73 : vector<8x128xf32>
    %78 = math.exp %77 : vector<8x128xf32>
    %79 = arith.addf %75, %78 : vector<8x128xf32>
    %80 = arith.mulf %78, %22 : vector<8x128xf32>
    %81 = arith.addf %74, %80 : vector<8x128xf32>
    %c127_i32_33 = arith.constant 127 : i32
    %82 = tpu.dynamic_rotate %20 by %c127_i32_33 dim 1 : vector<8x128xf32>, i32 -> vector<8x128xf32>
    %c15_i32_34 = arith.constant 15 : i32
    %83 = tpu.dynamic_rotate %20 by %c15_i32_34 dim 1 : vector<8x128xf32>, i32 -> vector<8x128xf32>
    %c15_i32_35 = arith.constant 15 : i32
    %84 = vector.broadcast %c15_i32_35 : i32 to vector<8x128xi32>
    %85 = arith.cmpi slt, %2, %84 : vector<8x128xi32>
    %86 = arith.select %85, %82, %83 : vector<8x128xi1>, vector<8x128xf32>
    %c127_i32_36 = arith.constant 127 : i32
    %87 = tpu.dynamic_rotate %22 by %c127_i32_36 dim 1 : vector<8x128xf32>, i32 -> vector<8x128xf32>
    %c15_i32_37 = arith.constant 15 : i32
    %88 = tpu.dynamic_rotate %22 by %c15_i32_37 dim 1 : vector<8x128xf32>, i32 -> vector<8x128xf32>
    %c15_i32_38 = arith.constant 15 : i32
    %89 = vector.broadcast %c15_i32_38 : i32 to vector<8x128xi32>
    %90 = arith.cmpi slt, %2, %89 : vector<8x128xi32>
    %91 = arith.select %90, %87, %88 : vector<8x128xi1>, vector<8x128xf32>
    %92 = arith.mulf %18, %86 : vector<8x128xf32>
    %93 = arith.subf %92, %73 : vector<8x128xf32>
    %94 = math.exp %93 : vector<8x128xf32>
    %95 = arith.addf %79, %94 : vector<8x128xf32>
    %96 = arith.mulf %94, %91 : vector<8x128xf32>
    %97 = arith.addf %81, %96 : vector<8x128xf32>
    %c126_i32_39 = arith.constant 126 : i32
    %98 = tpu.dynamic_rotate %20 by %c126_i32_39 dim 1 : vector<8x128xf32>, i32 -> vector<8x128xf32>
    %c14_i32_40 = arith.constant 14 : i32
    %99 = tpu.dynamic_rotate %20 by %c14_i32_40 dim 1 : vector<8x128xf32>, i32 -> vector<8x128xf32>
    %c14_i32_41 = arith.constant 14 : i32
    %100 = vector.broadcast %c14_i32_41 : i32 to vector<8x128xi32>
    %101 = arith.cmpi slt, %2, %100 : vector<8x128xi32>
    %102 = arith.select %101, %98, %99 : vector<8x128xi1>, vector<8x128xf32>
    %c126_i32_42 = arith.constant 126 : i32
    %103 = tpu.dynamic_rotate %22 by %c126_i32_42 dim 1 : vector<8x128xf32>, i32 -> vector<8x128xf32>
    %c14_i32_43 = arith.constant 14 : i32
    %104 = tpu.dynamic_rotate %22 by %c14_i32_43 dim 1 : vector<8x128xf32>, i32 -> vector<8x128xf32>
    %c14_i32_44 = arith.constant 14 : i32
    %105 = vector.broadcast %c14_i32_44 : i32 to vector<8x128xi32>
    %106 = arith.cmpi slt, %2, %105 : vector<8x128xi32>
    %107 = arith.select %106, %103, %104 : vector<8x128xi1>, vector<8x128xf32>
    %108 = arith.mulf %18, %102 : vector<8x128xf32>
    %109 = arith.subf %108, %73 : vector<8x128xf32>
    %110 = math.exp %109 : vector<8x128xf32>
    %111 = arith.addf %95, %110 : vector<8x128xf32>
    %112 = arith.mulf %110, %107 : vector<8x128xf32>
    %113 = arith.addf %97, %112 : vector<8x128xf32>
    %c125_i32 = arith.constant 125 : i32
    %114 = tpu.dynamic_rotate %20 by %c125_i32 dim 1 : vector<8x128xf32>, i32 -> vector<8x128xf32>
    %c13_i32 = arith.constant 13 : i32
    %115 = tpu.dynamic_rotate %20 by %c13_i32 dim 1 : vector<8x128xf32>, i32 -> vector<8x128xf32>
    %c13_i32_45 = arith.constant 13 : i32
    %116 = vector.broadcast %c13_i32_45 : i32 to vector<8x128xi32>
    %117 = arith.cmpi slt, %2, %116 : vector<8x128xi32>
    %118 = arith.select %117, %114, %115 : vector<8x128xi1>, vector<8x128xf32>
    %c125_i32_46 = arith.constant 125 : i32
    %119 = tpu.dynamic_rotate %22 by %c125_i32_46 dim 1 : vector<8x128xf32>, i32 -> vector<8x128xf32>
    %c13_i32_47 = arith.constant 13 : i32
    %120 = tpu.dynamic_rotate %22 by %c13_i32_47 dim 1 : vector<8x128xf32>, i32 -> vector<8x128xf32>
    %c13_i32_48 = arith.constant 13 : i32
    %121 = vector.broadcast %c13_i32_48 : i32 to vector<8x128xi32>
    %122 = arith.cmpi slt, %2, %121 : vector<8x128xi32>
    %123 = arith.select %122, %119, %120 : vector<8x128xi1>, vector<8x128xf32>
    %124 = arith.mulf %18, %118 : vector<8x128xf32>
    %125 = arith.subf %124, %73 : vector<8x128xf32>
    %126 = math.exp %125 : vector<8x128xf32>
    %127 = arith.addf %111, %126 : vector<8x128xf32>
    %128 = arith.mulf %126, %123 : vector<8x128xf32>
    %129 = arith.addf %113, %128 : vector<8x128xf32>
    %c124_i32_49 = arith.constant 124 : i32
    %130 = tpu.dynamic_rotate %20 by %c124_i32_49 dim 1 : vector<8x128xf32>, i32 -> vector<8x128xf32>
    %c12_i32_50 = arith.constant 12 : i32
    %131 = tpu.dynamic_rotate %20 by %c12_i32_50 dim 1 : vector<8x128xf32>, i32 -> vector<8x128xf32>
    %c12_i32_51 = arith.constant 12 : i32
    %132 = vector.broadcast %c12_i32_51 : i32 to vector<8x128xi32>
    %133 = arith.cmpi slt, %2, %132 : vector<8x128xi32>
    %134 = arith.select %133, %130, %131 : vector<8x128xi1>, vector<8x128xf32>
    %c124_i32_52 = arith.constant 124 : i32
    %135 = tpu.dynamic_rotate %22 by %c124_i32_52 dim 1 : vector<8x128xf32>, i32 -> vector<8x128xf32>
    %c12_i32_53 = arith.constant 12 : i32
    %136 = tpu.dynamic_rotate %22 by %c12_i32_53 dim 1 : vector<8x128xf32>, i32 -> vector<8x128xf32>
    %c12_i32_54 = arith.constant 12 : i32
    %137 = vector.broadcast %c12_i32_54 : i32 to vector<8x128xi32>
    %138 = arith.cmpi slt, %2, %137 : vector<8x128xi32>
    %139 = arith.select %138, %135, %136 : vector<8x128xi1>, vector<8x128xf32>
    %140 = arith.mulf %18, %134 : vector<8x128xf32>
    %141 = arith.subf %140, %73 : vector<8x128xf32>
    %142 = math.exp %141 : vector<8x128xf32>
    %143 = arith.addf %127, %142 : vector<8x128xf32>
    %144 = arith.mulf %142, %139 : vector<8x128xf32>
    %145 = arith.addf %129, %144 : vector<8x128xf32>
    %c123_i32 = arith.constant 123 : i32
    %146 = tpu.dynamic_rotate %20 by %c123_i32 dim 1 : vector<8x128xf32>, i32 -> vector<8x128xf32>
    %c11_i32 = arith.constant 11 : i32
    %147 = tpu.dynamic_rotate %20 by %c11_i32 dim 1 : vector<8x128xf32>, i32 -> vector<8x128xf32>
    %c11_i32_55 = arith.constant 11 : i32
    %148 = vector.broadcast %c11_i32_55 : i32 to vector<8x128xi32>
    %149 = arith.cmpi slt, %2, %148 : vector<8x128xi32>
    %150 = arith.select %149, %146, %147 : vector<8x128xi1>, vector<8x128xf32>
    %c123_i32_56 = arith.constant 123 : i32
    %151 = tpu.dynamic_rotate %22 by %c123_i32_56 dim 1 : vector<8x128xf32>, i32 -> vector<8x128xf32>
    %c11_i32_57 = arith.constant 11 : i32
    %152 = tpu.dynamic_rotate %22 by %c11_i32_57 dim 1 : vector<8x128xf32>, i32 -> vector<8x128xf32>
    %c11_i32_58 = arith.constant 11 : i32
    %153 = vector.broadcast %c11_i32_58 : i32 to vector<8x128xi32>
    %154 = arith.cmpi slt, %2, %153 : vector<8x128xi32>
    %155 = arith.select %154, %151, %152 : vector<8x128xi1>, vector<8x128xf32>
    %156 = arith.mulf %18, %150 : vector<8x128xf32>
    %157 = arith.subf %156, %73 : vector<8x128xf32>
    %158 = math.exp %157 : vector<8x128xf32>
    %159 = arith.addf %143, %158 : vector<8x128xf32>
    %160 = arith.mulf %158, %155 : vector<8x128xf32>
    %161 = arith.addf %145, %160 : vector<8x128xf32>
    %c122_i32 = arith.constant 122 : i32
    %162 = tpu.dynamic_rotate %20 by %c122_i32 dim 1 : vector<8x128xf32>, i32 -> vector<8x128xf32>
    %c10_i32 = arith.constant 10 : i32
    %163 = tpu.dynamic_rotate %20 by %c10_i32 dim 1 : vector<8x128xf32>, i32 -> vector<8x128xf32>
    %c10_i32_59 = arith.constant 10 : i32
    %164 = vector.broadcast %c10_i32_59 : i32 to vector<8x128xi32>
    %165 = arith.cmpi slt, %2, %164 : vector<8x128xi32>
    %166 = arith.select %165, %162, %163 : vector<8x128xi1>, vector<8x128xf32>
    %c122_i32_60 = arith.constant 122 : i32
    %167 = tpu.dynamic_rotate %22 by %c122_i32_60 dim 1 : vector<8x128xf32>, i32 -> vector<8x128xf32>
    %c10_i32_61 = arith.constant 10 : i32
    %168 = tpu.dynamic_rotate %22 by %c10_i32_61 dim 1 : vector<8x128xf32>, i32 -> vector<8x128xf32>
    %c10_i32_62 = arith.constant 10 : i32
    %169 = vector.broadcast %c10_i32_62 : i32 to vector<8x128xi32>
    %170 = arith.cmpi slt, %2, %169 : vector<8x128xi32>
    %171 = arith.select %170, %167, %168 : vector<8x128xi1>, vector<8x128xf32>
    %172 = arith.mulf %18, %166 : vector<8x128xf32>
    %173 = arith.subf %172, %73 : vector<8x128xf32>
    %174 = math.exp %173 : vector<8x128xf32>
    %175 = arith.addf %159, %174 : vector<8x128xf32>
    %176 = arith.mulf %174, %171 : vector<8x128xf32>
    %177 = arith.addf %161, %176 : vector<8x128xf32>
    %c121_i32 = arith.constant 121 : i32
    %178 = tpu.dynamic_rotate %20 by %c121_i32 dim 1 : vector<8x128xf32>, i32 -> vector<8x128xf32>
    %c9_i32 = arith.constant 9 : i32
    %179 = tpu.dynamic_rotate %20 by %c9_i32 dim 1 : vector<8x128xf32>, i32 -> vector<8x128xf32>
    %c9_i32_63 = arith.constant 9 : i32
    %180 = vector.broadcast %c9_i32_63 : i32 to vector<8x128xi32>
    %181 = arith.cmpi slt, %2, %180 : vector<8x128xi32>
    %182 = arith.select %181, %178, %179 : vector<8x128xi1>, vector<8x128xf32>
    %c121_i32_64 = arith.constant 121 : i32
    %183 = tpu.dynamic_rotate %22 by %c121_i32_64 dim 1 : vector<8x128xf32>, i32 -> vector<8x128xf32>
    %c9_i32_65 = arith.constant 9 : i32
    %184 = tpu.dynamic_rotate %22 by %c9_i32_65 dim 1 : vector<8x128xf32>, i32 -> vector<8x128xf32>
    %c9_i32_66 = arith.constant 9 : i32
    %185 = vector.broadcast %c9_i32_66 : i32 to vector<8x128xi32>
    %186 = arith.cmpi slt, %2, %185 : vector<8x128xi32>
    %187 = arith.select %186, %183, %184 : vector<8x128xi1>, vector<8x128xf32>
    %188 = arith.mulf %18, %182 : vector<8x128xf32>
    %189 = arith.subf %188, %73 : vector<8x128xf32>
    %190 = math.exp %189 : vector<8x128xf32>
    %191 = arith.addf %175, %190 : vector<8x128xf32>
    %192 = arith.mulf %190, %187 : vector<8x128xf32>
    %193 = arith.addf %177, %192 : vector<8x128xf32>
    %c120_i32_67 = arith.constant 120 : i32
    %194 = tpu.dynamic_rotate %20 by %c120_i32_67 dim 1 : vector<8x128xf32>, i32 -> vector<8x128xf32>
    %c8_i32_68 = arith.constant 8 : i32
    %195 = tpu.dynamic_rotate %20 by %c8_i32_68 dim 1 : vector<8x128xf32>, i32 -> vector<8x128xf32>
    %c8_i32_69 = arith.constant 8 : i32
    %196 = vector.broadcast %c8_i32_69 : i32 to vector<8x128xi32>
    %197 = arith.cmpi slt, %2, %196 : vector<8x128xi32>
    %198 = arith.select %197, %194, %195 : vector<8x128xi1>, vector<8x128xf32>
    %c120_i32_70 = arith.constant 120 : i32
    %199 = tpu.dynamic_rotate %22 by %c120_i32_70 dim 1 : vector<8x128xf32>, i32 -> vector<8x128xf32>
    %c8_i32_71 = arith.constant 8 : i32
    %200 = tpu.dynamic_rotate %22 by %c8_i32_71 dim 1 : vector<8x128xf32>, i32 -> vector<8x128xf32>
    %c8_i32_72 = arith.constant 8 : i32
    %201 = vector.broadcast %c8_i32_72 : i32 to vector<8x128xi32>
    %202 = arith.cmpi slt, %2, %201 : vector<8x128xi32>
    %203 = arith.select %202, %199, %200 : vector<8x128xi1>, vector<8x128xf32>
    %204 = arith.mulf %18, %198 : vector<8x128xf32>
    %205 = arith.subf %204, %73 : vector<8x128xf32>
    %206 = math.exp %205 : vector<8x128xf32>
    %207 = arith.addf %191, %206 : vector<8x128xf32>
    %208 = arith.mulf %206, %203 : vector<8x128xf32>
    %209 = arith.addf %193, %208 : vector<8x128xf32>
    %c119_i32 = arith.constant 119 : i32
    %210 = tpu.dynamic_rotate %20 by %c119_i32 dim 1 : vector<8x128xf32>, i32 -> vector<8x128xf32>
    %c7_i32 = arith.constant 7 : i32
    %211 = tpu.dynamic_rotate %20 by %c7_i32 dim 1 : vector<8x128xf32>, i32 -> vector<8x128xf32>
    %c7_i32_73 = arith.constant 7 : i32
    %212 = vector.broadcast %c7_i32_73 : i32 to vector<8x128xi32>
    %213 = arith.cmpi slt, %2, %212 : vector<8x128xi32>
    %214 = arith.select %213, %210, %211 : vector<8x128xi1>, vector<8x128xf32>
    %c119_i32_74 = arith.constant 119 : i32
    %215 = tpu.dynamic_rotate %22 by %c119_i32_74 dim 1 : vector<8x128xf32>, i32 -> vector<8x128xf32>
    %c7_i32_75 = arith.constant 7 : i32
    %216 = tpu.dynamic_rotate %22 by %c7_i32_75 dim 1 : vector<8x128xf32>, i32 -> vector<8x128xf32>
    %c7_i32_76 = arith.constant 7 : i32
    %217 = vector.broadcast %c7_i32_76 : i32 to vector<8x128xi32>
    %218 = arith.cmpi slt, %2, %217 : vector<8x128xi32>
    %219 = arith.select %218, %215, %216 : vector<8x128xi1>, vector<8x128xf32>
    %220 = arith.mulf %18, %214 : vector<8x128xf32>
    %221 = arith.subf %220, %73 : vector<8x128xf32>
    %222 = math.exp %221 : vector<8x128xf32>
    %223 = arith.addf %207, %222 : vector<8x128xf32>
    %224 = arith.mulf %222, %219 : vector<8x128xf32>
    %225 = arith.addf %209, %224 : vector<8x128xf32>
    %c118_i32 = arith.constant 118 : i32
    %226 = tpu.dynamic_rotate %20 by %c118_i32 dim 1 : vector<8x128xf32>, i32 -> vector<8x128xf32>
    %c6_i32 = arith.constant 6 : i32
    %227 = tpu.dynamic_rotate %20 by %c6_i32 dim 1 : vector<8x128xf32>, i32 -> vector<8x128xf32>
    %c6_i32_77 = arith.constant 6 : i32
    %228 = vector.broadcast %c6_i32_77 : i32 to vector<8x128xi32>
    %229 = arith.cmpi slt, %2, %228 : vector<8x128xi32>
    %230 = arith.select %229, %226, %227 : vector<8x128xi1>, vector<8x128xf32>
    %c118_i32_78 = arith.constant 118 : i32
    %231 = tpu.dynamic_rotate %22 by %c118_i32_78 dim 1 : vector<8x128xf32>, i32 -> vector<8x128xf32>
    %c6_i32_79 = arith.constant 6 : i32
    %232 = tpu.dynamic_rotate %22 by %c6_i32_79 dim 1 : vector<8x128xf32>, i32 -> vector<8x128xf32>
    %c6_i32_80 = arith.constant 6 : i32
    %233 = vector.broadcast %c6_i32_80 : i32 to vector<8x128xi32>
    %234 = arith.cmpi slt, %2, %233 : vector<8x128xi32>
    %235 = arith.select %234, %231, %232 : vector<8x128xi1>, vector<8x128xf32>
    %236 = arith.mulf %18, %230 : vector<8x128xf32>
    %237 = arith.subf %236, %73 : vector<8x128xf32>
    %238 = math.exp %237 : vector<8x128xf32>
    %239 = arith.addf %223, %238 : vector<8x128xf32>
    %240 = arith.mulf %238, %235 : vector<8x128xf32>
    %241 = arith.addf %225, %240 : vector<8x128xf32>
    %c117_i32 = arith.constant 117 : i32
    %242 = tpu.dynamic_rotate %20 by %c117_i32 dim 1 : vector<8x128xf32>, i32 -> vector<8x128xf32>
    %c5_i32 = arith.constant 5 : i32
    %243 = tpu.dynamic_rotate %20 by %c5_i32 dim 1 : vector<8x128xf32>, i32 -> vector<8x128xf32>
    %c5_i32_81 = arith.constant 5 : i32
    %244 = vector.broadcast %c5_i32_81 : i32 to vector<8x128xi32>
    %245 = arith.cmpi slt, %2, %244 : vector<8x128xi32>
    %246 = arith.select %245, %242, %243 : vector<8x128xi1>, vector<8x128xf32>
    %c117_i32_82 = arith.constant 117 : i32
    %247 = tpu.dynamic_rotate %22 by %c117_i32_82 dim 1 : vector<8x128xf32>, i32 -> vector<8x128xf32>
    %c5_i32_83 = arith.constant 5 : i32
    %248 = tpu.dynamic_rotate %22 by %c5_i32_83 dim 1 : vector<8x128xf32>, i32 -> vector<8x128xf32>
    %c5_i32_84 = arith.constant 5 : i32
    %249 = vector.broadcast %c5_i32_84 : i32 to vector<8x128xi32>
    %250 = arith.cmpi slt, %2, %249 : vector<8x128xi32>
    %251 = arith.select %250, %247, %248 : vector<8x128xi1>, vector<8x128xf32>
    %252 = arith.mulf %18, %246 : vector<8x128xf32>
    %253 = arith.subf %252, %73 : vector<8x128xf32>
    %254 = math.exp %253 : vector<8x128xf32>
    %255 = arith.addf %239, %254 : vector<8x128xf32>
    %256 = arith.mulf %254, %251 : vector<8x128xf32>
    %257 = arith.addf %241, %256 : vector<8x128xf32>
    %c116_i32 = arith.constant 116 : i32
    %258 = tpu.dynamic_rotate %20 by %c116_i32 dim 1 : vector<8x128xf32>, i32 -> vector<8x128xf32>
    %c4_i32 = arith.constant 4 : i32
    %259 = tpu.dynamic_rotate %20 by %c4_i32 dim 1 : vector<8x128xf32>, i32 -> vector<8x128xf32>
    %c4_i32_85 = arith.constant 4 : i32
    %260 = vector.broadcast %c4_i32_85 : i32 to vector<8x128xi32>
    %261 = arith.cmpi slt, %2, %260 : vector<8x128xi32>
    %262 = arith.select %261, %258, %259 : vector<8x128xi1>, vector<8x128xf32>
    %c116_i32_86 = arith.constant 116 : i32
    %263 = tpu.dynamic_rotate %22 by %c116_i32_86 dim 1 : vector<8x128xf32>, i32 -> vector<8x128xf32>
    %c4_i32_87 = arith.constant 4 : i32
    %264 = tpu.dynamic_rotate %22 by %c4_i32_87 dim 1 : vector<8x128xf32>, i32 -> vector<8x128xf32>
    %c4_i32_88 = arith.constant 4 : i32
    %265 = vector.broadcast %c4_i32_88 : i32 to vector<8x128xi32>
    %266 = arith.cmpi slt, %2, %265 : vector<8x128xi32>
    %267 = arith.select %266, %263, %264 : vector<8x128xi1>, vector<8x128xf32>
    %268 = arith.mulf %18, %262 : vector<8x128xf32>
    %269 = arith.subf %268, %73 : vector<8x128xf32>
    %270 = math.exp %269 : vector<8x128xf32>
    %271 = arith.addf %255, %270 : vector<8x128xf32>
    %272 = arith.mulf %270, %267 : vector<8x128xf32>
    %273 = arith.addf %257, %272 : vector<8x128xf32>
    %c115_i32 = arith.constant 115 : i32
    %274 = tpu.dynamic_rotate %20 by %c115_i32 dim 1 : vector<8x128xf32>, i32 -> vector<8x128xf32>
    %c3_i32 = arith.constant 3 : i32
    %275 = tpu.dynamic_rotate %20 by %c3_i32 dim 1 : vector<8x128xf32>, i32 -> vector<8x128xf32>
    %c3_i32_89 = arith.constant 3 : i32
    %276 = vector.broadcast %c3_i32_89 : i32 to vector<8x128xi32>
    %277 = arith.cmpi slt, %2, %276 : vector<8x128xi32>
    %278 = arith.select %277, %274, %275 : vector<8x128xi1>, vector<8x128xf32>
    %c115_i32_90 = arith.constant 115 : i32
    %279 = tpu.dynamic_rotate %22 by %c115_i32_90 dim 1 : vector<8x128xf32>, i32 -> vector<8x128xf32>
    %c3_i32_91 = arith.constant 3 : i32
    %280 = tpu.dynamic_rotate %22 by %c3_i32_91 dim 1 : vector<8x128xf32>, i32 -> vector<8x128xf32>
    %c3_i32_92 = arith.constant 3 : i32
    %281 = vector.broadcast %c3_i32_92 : i32 to vector<8x128xi32>
    %282 = arith.cmpi slt, %2, %281 : vector<8x128xi32>
    %283 = arith.select %282, %279, %280 : vector<8x128xi1>, vector<8x128xf32>
    %284 = arith.mulf %18, %278 : vector<8x128xf32>
    %285 = arith.subf %284, %73 : vector<8x128xf32>
    %286 = math.exp %285 : vector<8x128xf32>
    %287 = arith.addf %271, %286 : vector<8x128xf32>
    %288 = arith.mulf %286, %283 : vector<8x128xf32>
    %289 = arith.addf %273, %288 : vector<8x128xf32>
    %c114_i32 = arith.constant 114 : i32
    %290 = tpu.dynamic_rotate %20 by %c114_i32 dim 1 : vector<8x128xf32>, i32 -> vector<8x128xf32>
    %c2_i32 = arith.constant 2 : i32
    %291 = tpu.dynamic_rotate %20 by %c2_i32 dim 1 : vector<8x128xf32>, i32 -> vector<8x128xf32>
    %c2_i32_93 = arith.constant 2 : i32
    %292 = vector.broadcast %c2_i32_93 : i32 to vector<8x128xi32>
    %293 = arith.cmpi slt, %2, %292 : vector<8x128xi32>
    %294 = arith.select %293, %290, %291 : vector<8x128xi1>, vector<8x128xf32>
    %c114_i32_94 = arith.constant 114 : i32
    %295 = tpu.dynamic_rotate %22 by %c114_i32_94 dim 1 : vector<8x128xf32>, i32 -> vector<8x128xf32>
    %c2_i32_95 = arith.constant 2 : i32
    %296 = tpu.dynamic_rotate %22 by %c2_i32_95 dim 1 : vector<8x128xf32>, i32 -> vector<8x128xf32>
    %c2_i32_96 = arith.constant 2 : i32
    %297 = vector.broadcast %c2_i32_96 : i32 to vector<8x128xi32>
    %298 = arith.cmpi slt, %2, %297 : vector<8x128xi32>
    %299 = arith.select %298, %295, %296 : vector<8x128xi1>, vector<8x128xf32>
    %300 = arith.mulf %18, %294 : vector<8x128xf32>
    %301 = arith.subf %300, %73 : vector<8x128xf32>
    %302 = math.exp %301 : vector<8x128xf32>
    %303 = arith.addf %287, %302 : vector<8x128xf32>
    %304 = arith.mulf %302, %299 : vector<8x128xf32>
    %305 = arith.addf %289, %304 : vector<8x128xf32>
    %c113_i32 = arith.constant 113 : i32
    %306 = tpu.dynamic_rotate %20 by %c113_i32 dim 1 : vector<8x128xf32>, i32 -> vector<8x128xf32>
    %c1_i32 = arith.constant 1 : i32
    %307 = tpu.dynamic_rotate %20 by %c1_i32 dim 1 : vector<8x128xf32>, i32 -> vector<8x128xf32>
    %c1_i32_97 = arith.constant 1 : i32
    %308 = vector.broadcast %c1_i32_97 : i32 to vector<8x128xi32>
    %309 = arith.cmpi slt, %2, %308 : vector<8x128xi32>
    %310 = arith.select %309, %306, %307 : vector<8x128xi1>, vector<8x128xf32>
    %c113_i32_98 = arith.constant 113 : i32
    %311 = tpu.dynamic_rotate %22 by %c113_i32_98 dim 1 : vector<8x128xf32>, i32 -> vector<8x128xf32>
    %c1_i32_99 = arith.constant 1 : i32
    %312 = tpu.dynamic_rotate %22 by %c1_i32_99 dim 1 : vector<8x128xf32>, i32 -> vector<8x128xf32>
    %c1_i32_100 = arith.constant 1 : i32
    %313 = vector.broadcast %c1_i32_100 : i32 to vector<8x128xi32>
    %314 = arith.cmpi slt, %2, %313 : vector<8x128xi32>
    %315 = arith.select %314, %311, %312 : vector<8x128xi1>, vector<8x128xf32>
    %316 = arith.mulf %18, %310 : vector<8x128xf32>
    %317 = arith.subf %316, %73 : vector<8x128xf32>
    %318 = math.exp %317 : vector<8x128xf32>
    %319 = arith.addf %303, %318 : vector<8x128xf32>
    %320 = arith.mulf %318, %315 : vector<8x128xf32>
    %321 = arith.addf %305, %320 : vector<8x128xf32>
    %322 = tpu.reciprocal %319 {approx = true} : vector<8x128xf32> -> vector<8x128xf32>
    %323 = arith.mulf %319, %322 : vector<8x128xf32>
    %cst_101 = arith.constant 2.000000e+00 : f32
    %324 = vector.broadcast %cst_101 : f32 to vector<8x128xf32>
    %325 = arith.subf %324, %323 : vector<8x128xf32>
    %326 = arith.mulf %322, %325 : vector<8x128xf32>
    %327 = arith.mulf %321, %326 : vector<8x128xf32>
    %c640 = arith.constant 640 : index
    %c0_102 = arith.constant 0 : index
    %328 = vector.load %arg2[%c640, %c0_102] : memref<2960x128xf32, #tpu.memory_space<vmem>>, vector<128x128xf32>
    %cst_103 = arith.constant dense<0.000000e+00> : vector<8x128xf32>
    %329 = tpu.matmul %327, %328, %cst_103 {dimension_numbers = #tpu.dot_dimension_numbers<[1], [0], [0], [1], [0, 0, 1, 1], [], []>} : vector<8x128xf32>, vector<128x128xf32>, vector<8x128xf32> -> vector<8x128xf32>
    %c1410 = arith.constant 1410 : index
    %c0_104 = arith.constant 0 : index
    %330 = vector.load %arg2[%c1410, %c0_104] : memref<2960x128xf32, #tpu.memory_space<vmem>>, vector<1x128xf32>
    %331 = vector.broadcast %330 : vector<1x128xf32> to vector<8x128xf32>
    %332 = arith.addf %329, %331 : vector<8x128xf32>
    %333 = math.tanh %332 : vector<8x128xf32>
    %c768 = arith.constant 768 : index
    %c0_105 = arith.constant 0 : index
    %334 = vector.load %arg2[%c768, %c0_105] : memref<2960x128xf32, #tpu.memory_space<vmem>>, vector<128x128xf32>
    %cst_106 = arith.constant dense<0.000000e+00> : vector<8x128xf32>
    %335 = tpu.matmul %333, %334, %cst_106 {dimension_numbers = #tpu.dot_dimension_numbers<[1], [0], [0], [1], [0, 0, 1, 1], [], []>} : vector<8x128xf32>, vector<128x128xf32>, vector<8x128xf32> -> vector<8x128xf32>
    %cst_107 = arith.constant 2.500000e-01 : f32
    %336 = vector.broadcast %cst_107 : f32 to vector<8x128xf32>
    %337 = arith.mulf %335, %336 : vector<8x128xf32>
    %c896 = arith.constant 896 : index
    %c0_108 = arith.constant 0 : index
    %338 = vector.load %arg2[%c896, %c0_108] : memref<2960x128xf32, #tpu.memory_space<vmem>>, vector<128x128xf32>
    %cst_109 = arith.constant dense<0.000000e+00> : vector<8x128xf32>
    %339 = tpu.matmul %333, %338, %cst_109 {dimension_numbers = #tpu.dot_dimension_numbers<[1], [0], [0], [1], [0, 0, 1, 1], [], []>} : vector<8x128xf32>, vector<128x128xf32>, vector<8x128xf32> -> vector<8x128xf32>
    %c1024 = arith.constant 1024 : index
    %c0_110 = arith.constant 0 : index
    %340 = vector.load %arg2[%c1024, %c0_110] : memref<2960x128xf32, #tpu.memory_space<vmem>>, vector<128x128xf32>
    %cst_111 = arith.constant dense<0.000000e+00> : vector<8x128xf32>
    %341 = tpu.matmul %333, %340, %cst_111 {dimension_numbers = #tpu.dot_dimension_numbers<[1], [0], [0], [1], [0, 0, 1, 1], [], []>} : vector<8x128xf32>, vector<128x128xf32>, vector<8x128xf32> -> vector<8x128xf32>
    %c127_i32_112 = arith.constant 127 : i32
    %342 = tpu.dynamic_rotate %339 by %c127_i32_112 dim 1 : vector<8x128xf32>, i32 -> vector<8x128xf32>
    %c15_i32_113 = arith.constant 15 : i32
    %343 = tpu.dynamic_rotate %339 by %c15_i32_113 dim 1 : vector<8x128xf32>, i32 -> vector<8x128xf32>
    %c15_i32_114 = arith.constant 15 : i32
    %344 = vector.broadcast %c15_i32_114 : i32 to vector<8x128xi32>
    %345 = arith.cmpi slt, %2, %344 : vector<8x128xi32>
    %346 = arith.select %345, %342, %343 : vector<8x128xi1>, vector<8x128xf32>
    %347 = arith.maximumf %339, %346 : vector<8x128xf32>
    %c127_i32_115 = arith.constant 127 : i32
    %348 = tpu.dynamic_rotate %339 by %c127_i32_115 dim 1 : vector<8x128xf32>, i32 -> vector<8x128xf32>
    %c15_i32_116 = arith.constant 15 : i32
    %349 = tpu.dynamic_rotate %339 by %c15_i32_116 dim 1 : vector<8x128xf32>, i32 -> vector<8x128xf32>
    %c15_i32_117 = arith.constant 15 : i32
    %350 = vector.broadcast %c15_i32_117 : i32 to vector<8x128xi32>
    %351 = arith.cmpi slt, %2, %350 : vector<8x128xi32>
    %352 = arith.select %351, %348, %349 : vector<8x128xi1>, vector<8x128xf32>
    %353 = arith.minimumf %339, %352 : vector<8x128xf32>
    %c126_i32_118 = arith.constant 126 : i32
    %354 = tpu.dynamic_rotate %347 by %c126_i32_118 dim 1 : vector<8x128xf32>, i32 -> vector<8x128xf32>
    %c14_i32_119 = arith.constant 14 : i32
    %355 = tpu.dynamic_rotate %347 by %c14_i32_119 dim 1 : vector<8x128xf32>, i32 -> vector<8x128xf32>
    %c14_i32_120 = arith.constant 14 : i32
    %356 = vector.broadcast %c14_i32_120 : i32 to vector<8x128xi32>
    %357 = arith.cmpi slt, %2, %356 : vector<8x128xi32>
    %358 = arith.select %357, %354, %355 : vector<8x128xi1>, vector<8x128xf32>
    %359 = arith.maximumf %347, %358 : vector<8x128xf32>
    %c126_i32_121 = arith.constant 126 : i32
    %360 = tpu.dynamic_rotate %353 by %c126_i32_121 dim 1 : vector<8x128xf32>, i32 -> vector<8x128xf32>
    %c14_i32_122 = arith.constant 14 : i32
    %361 = tpu.dynamic_rotate %353 by %c14_i32_122 dim 1 : vector<8x128xf32>, i32 -> vector<8x128xf32>
    %c14_i32_123 = arith.constant 14 : i32
    %362 = vector.broadcast %c14_i32_123 : i32 to vector<8x128xi32>
    %363 = arith.cmpi slt, %2, %362 : vector<8x128xi32>
    %364 = arith.select %363, %360, %361 : vector<8x128xi1>, vector<8x128xf32>
    %365 = arith.minimumf %353, %364 : vector<8x128xf32>
    %c124_i32_124 = arith.constant 124 : i32
    %366 = tpu.dynamic_rotate %359 by %c124_i32_124 dim 1 : vector<8x128xf32>, i32 -> vector<8x128xf32>
    %c12_i32_125 = arith.constant 12 : i32
    %367 = tpu.dynamic_rotate %359 by %c12_i32_125 dim 1 : vector<8x128xf32>, i32 -> vector<8x128xf32>
    %c12_i32_126 = arith.constant 12 : i32
    %368 = vector.broadcast %c12_i32_126 : i32 to vector<8x128xi32>
    %369 = arith.cmpi slt, %2, %368 : vector<8x128xi32>
    %370 = arith.select %369, %366, %367 : vector<8x128xi1>, vector<8x128xf32>
    %371 = arith.maximumf %359, %370 : vector<8x128xf32>
    %c124_i32_127 = arith.constant 124 : i32
    %372 = tpu.dynamic_rotate %365 by %c124_i32_127 dim 1 : vector<8x128xf32>, i32 -> vector<8x128xf32>
    %c12_i32_128 = arith.constant 12 : i32
    %373 = tpu.dynamic_rotate %365 by %c12_i32_128 dim 1 : vector<8x128xf32>, i32 -> vector<8x128xf32>
    %c12_i32_129 = arith.constant 12 : i32
    %374 = vector.broadcast %c12_i32_129 : i32 to vector<8x128xi32>
    %375 = arith.cmpi slt, %2, %374 : vector<8x128xi32>
    %376 = arith.select %375, %372, %373 : vector<8x128xi1>, vector<8x128xf32>
    %377 = arith.minimumf %365, %376 : vector<8x128xf32>
    %c120_i32_130 = arith.constant 120 : i32
    %378 = tpu.dynamic_rotate %371 by %c120_i32_130 dim 1 : vector<8x128xf32>, i32 -> vector<8x128xf32>
    %c8_i32_131 = arith.constant 8 : i32
    %379 = tpu.dynamic_rotate %371 by %c8_i32_131 dim 1 : vector<8x128xf32>, i32 -> vector<8x128xf32>
    %c8_i32_132 = arith.constant 8 : i32
    %380 = vector.broadcast %c8_i32_132 : i32 to vector<8x128xi32>
    %381 = arith.cmpi slt, %2, %380 : vector<8x128xi32>
    %382 = arith.select %381, %378, %379 : vector<8x128xi1>, vector<8x128xf32>
    %383 = arith.maximumf %371, %382 : vector<8x128xf32>
    %c120_i32_133 = arith.constant 120 : i32
    %384 = tpu.dynamic_rotate %377 by %c120_i32_133 dim 1 : vector<8x128xf32>, i32 -> vector<8x128xf32>
    %c8_i32_134 = arith.constant 8 : i32
    %385 = tpu.dynamic_rotate %377 by %c8_i32_134 dim 1 : vector<8x128xf32>, i32 -> vector<8x128xf32>
    %c8_i32_135 = arith.constant 8 : i32
    %386 = vector.broadcast %c8_i32_135 : i32 to vector<8x128xi32>
    %387 = arith.cmpi slt, %2, %386 : vector<8x128xi32>
    %388 = arith.select %387, %384, %385 : vector<8x128xi1>, vector<8x128xf32>
    %389 = arith.minimumf %377, %388 : vector<8x128xf32>
    %390 = arith.mulf %337, %383 : vector<8x128xf32>
    %391 = arith.mulf %337, %389 : vector<8x128xf32>
    %392 = arith.maximumf %390, %391 : vector<8x128xf32>
    %cst_136 = arith.constant 0.000000e+00 : f32
    %393 = vector.broadcast %cst_136 : f32 to vector<8x128xf32>
    %cst_137 = arith.constant 0.000000e+00 : f32
    %394 = vector.broadcast %cst_137 : f32 to vector<8x128xf32>
    %395 = arith.mulf %337, %339 : vector<8x128xf32>
    %396 = arith.subf %395, %392 : vector<8x128xf32>
    %397 = math.exp %396 : vector<8x128xf32>
    %398 = arith.addf %394, %397 : vector<8x128xf32>
    %399 = arith.mulf %397, %341 : vector<8x128xf32>
    %400 = arith.addf %393, %399 : vector<8x128xf32>
    %c127_i32_138 = arith.constant 127 : i32
    %401 = tpu.dynamic_rotate %339 by %c127_i32_138 dim 1 : vector<8x128xf32>, i32 -> vector<8x128xf32>
    %c15_i32_139 = arith.constant 15 : i32
    %402 = tpu.dynamic_rotate %339 by %c15_i32_139 dim 1 : vector<8x128xf32>, i32 -> vector<8x128xf32>
    %c15_i32_140 = arith.constant 15 : i32
    %403 = vector.broadcast %c15_i32_140 : i32 to vector<8x128xi32>
    %404 = arith.cmpi slt, %2, %403 : vector<8x128xi32>
    %405 = arith.select %404, %401, %402 : vector<8x128xi1>, vector<8x128xf32>
    %c127_i32_141 = arith.constant 127 : i32
    %406 = tpu.dynamic_rotate %341 by %c127_i32_141 dim 1 : vector<8x128xf32>, i32 -> vector<8x128xf32>
    %c15_i32_142 = arith.constant 15 : i32
    %407 = tpu.dynamic_rotate %341 by %c15_i32_142 dim 1 : vector<8x128xf32>, i32 -> vector<8x128xf32>
    %c15_i32_143 = arith.constant 15 : i32
    %408 = vector.broadcast %c15_i32_143 : i32 to vector<8x128xi32>
    %409 = arith.cmpi slt, %2, %408 : vector<8x128xi32>
    %410 = arith.select %409, %406, %407 : vector<8x128xi1>, vector<8x128xf32>
    %411 = arith.mulf %337, %405 : vector<8x128xf32>
    %412 = arith.subf %411, %392 : vector<8x128xf32>
    %413 = math.exp %412 : vector<8x128xf32>
    %414 = arith.addf %398, %413 : vector<8x128xf32>
    %415 = arith.mulf %413, %410 : vector<8x128xf32>
    %416 = arith.addf %400, %415 : vector<8x128xf32>
    %c126_i32_144 = arith.constant 126 : i32
    %417 = tpu.dynamic_rotate %339 by %c126_i32_144 dim 1 : vector<8x128xf32>, i32 -> vector<8x128xf32>
    %c14_i32_145 = arith.constant 14 : i32
    %418 = tpu.dynamic_rotate %339 by %c14_i32_145 dim 1 : vector<8x128xf32>, i32 -> vector<8x128xf32>
    %c14_i32_146 = arith.constant 14 : i32
    %419 = vector.broadcast %c14_i32_146 : i32 to vector<8x128xi32>
    %420 = arith.cmpi slt, %2, %419 : vector<8x128xi32>
    %421 = arith.select %420, %417, %418 : vector<8x128xi1>, vector<8x128xf32>
    %c126_i32_147 = arith.constant 126 : i32
    %422 = tpu.dynamic_rotate %341 by %c126_i32_147 dim 1 : vector<8x128xf32>, i32 -> vector<8x128xf32>
    %c14_i32_148 = arith.constant 14 : i32
    %423 = tpu.dynamic_rotate %341 by %c14_i32_148 dim 1 : vector<8x128xf32>, i32 -> vector<8x128xf32>
    %c14_i32_149 = arith.constant 14 : i32
    %424 = vector.broadcast %c14_i32_149 : i32 to vector<8x128xi32>
    %425 = arith.cmpi slt, %2, %424 : vector<8x128xi32>
    %426 = arith.select %425, %422, %423 : vector<8x128xi1>, vector<8x128xf32>
    %427 = arith.mulf %337, %421 : vector<8x128xf32>
    %428 = arith.subf %427, %392 : vector<8x128xf32>
    %429 = math.exp %428 : vector<8x128xf32>
    %430 = arith.addf %414, %429 : vector<8x128xf32>
    %431 = arith.mulf %429, %426 : vector<8x128xf32>
    %432 = arith.addf %416, %431 : vector<8x128xf32>
    %c125_i32_150 = arith.constant 125 : i32
    %433 = tpu.dynamic_rotate %339 by %c125_i32_150 dim 1 : vector<8x128xf32>, i32 -> vector<8x128xf32>
    %c13_i32_151 = arith.constant 13 : i32
    %434 = tpu.dynamic_rotate %339 by %c13_i32_151 dim 1 : vector<8x128xf32>, i32 -> vector<8x128xf32>
    %c13_i32_152 = arith.constant 13 : i32
    %435 = vector.broadcast %c13_i32_152 : i32 to vector<8x128xi32>
    %436 = arith.cmpi slt, %2, %435 : vector<8x128xi32>
    %437 = arith.select %436, %433, %434 : vector<8x128xi1>, vector<8x128xf32>
    %c125_i32_153 = arith.constant 125 : i32
    %438 = tpu.dynamic_rotate %341 by %c125_i32_153 dim 1 : vector<8x128xf32>, i32 -> vector<8x128xf32>
    %c13_i32_154 = arith.constant 13 : i32
    %439 = tpu.dynamic_rotate %341 by %c13_i32_154 dim 1 : vector<8x128xf32>, i32 -> vector<8x128xf32>
    %c13_i32_155 = arith.constant 13 : i32
    %440 = vector.broadcast %c13_i32_155 : i32 to vector<8x128xi32>
    %441 = arith.cmpi slt, %2, %440 : vector<8x128xi32>
    %442 = arith.select %441, %438, %439 : vector<8x128xi1>, vector<8x128xf32>
    %443 = arith.mulf %337, %437 : vector<8x128xf32>
    %444 = arith.subf %443, %392 : vector<8x128xf32>
    %445 = math.exp %444 : vector<8x128xf32>
    %446 = arith.addf %430, %445 : vector<8x128xf32>
    %447 = arith.mulf %445, %442 : vector<8x128xf32>
    %448 = arith.addf %432, %447 : vector<8x128xf32>
    %c124_i32_156 = arith.constant 124 : i32
    %449 = tpu.dynamic_rotate %339 by %c124_i32_156 dim 1 : vector<8x128xf32>, i32 -> vector<8x128xf32>
    %c12_i32_157 = arith.constant 12 : i32
    %450 = tpu.dynamic_rotate %339 by %c12_i32_157 dim 1 : vector<8x128xf32>, i32 -> vector<8x128xf32>
    %c12_i32_158 = arith.constant 12 : i32
    %451 = vector.broadcast %c12_i32_158 : i32 to vector<8x128xi32>
    %452 = arith.cmpi slt, %2, %451 : vector<8x128xi32>
    %453 = arith.select %452, %449, %450 : vector<8x128xi1>, vector<8x128xf32>
    %c124_i32_159 = arith.constant 124 : i32
    %454 = tpu.dynamic_rotate %341 by %c124_i32_159 dim 1 : vector<8x128xf32>, i32 -> vector<8x128xf32>
    %c12_i32_160 = arith.constant 12 : i32
    %455 = tpu.dynamic_rotate %341 by %c12_i32_160 dim 1 : vector<8x128xf32>, i32 -> vector<8x128xf32>
    %c12_i32_161 = arith.constant 12 : i32
    %456 = vector.broadcast %c12_i32_161 : i32 to vector<8x128xi32>
    %457 = arith.cmpi slt, %2, %456 : vector<8x128xi32>
    %458 = arith.select %457, %454, %455 : vector<8x128xi1>, vector<8x128xf32>
    %459 = arith.mulf %337, %453 : vector<8x128xf32>
    %460 = arith.subf %459, %392 : vector<8x128xf32>
    %461 = math.exp %460 : vector<8x128xf32>
    %462 = arith.addf %446, %461 : vector<8x128xf32>
    %463 = arith.mulf %461, %458 : vector<8x128xf32>
    %464 = arith.addf %448, %463 : vector<8x128xf32>
    %c123_i32_162 = arith.constant 123 : i32
    %465 = tpu.dynamic_rotate %339 by %c123_i32_162 dim 1 : vector<8x128xf32>, i32 -> vector<8x128xf32>
    %c11_i32_163 = arith.constant 11 : i32
    %466 = tpu.dynamic_rotate %339 by %c11_i32_163 dim 1 : vector<8x128xf32>, i32 -> vector<8x128xf32>
    %c11_i32_164 = arith.constant 11 : i32
    %467 = vector.broadcast %c11_i32_164 : i32 to vector<8x128xi32>
    %468 = arith.cmpi slt, %2, %467 : vector<8x128xi32>
    %469 = arith.select %468, %465, %466 : vector<8x128xi1>, vector<8x128xf32>
    %c123_i32_165 = arith.constant 123 : i32
    %470 = tpu.dynamic_rotate %341 by %c123_i32_165 dim 1 : vector<8x128xf32>, i32 -> vector<8x128xf32>
    %c11_i32_166 = arith.constant 11 : i32
    %471 = tpu.dynamic_rotate %341 by %c11_i32_166 dim 1 : vector<8x128xf32>, i32 -> vector<8x128xf32>
    %c11_i32_167 = arith.constant 11 : i32
    %472 = vector.broadcast %c11_i32_167 : i32 to vector<8x128xi32>
    %473 = arith.cmpi slt, %2, %472 : vector<8x128xi32>
    %474 = arith.select %473, %470, %471 : vector<8x128xi1>, vector<8x128xf32>
    %475 = arith.mulf %337, %469 : vector<8x128xf32>
    %476 = arith.subf %475, %392 : vector<8x128xf32>
    %477 = math.exp %476 : vector<8x128xf32>
    %478 = arith.addf %462, %477 : vector<8x128xf32>
    %479 = arith.mulf %477, %474 : vector<8x128xf32>
    %480 = arith.addf %464, %479 : vector<8x128xf32>
    %c122_i32_168 = arith.constant 122 : i32
    %481 = tpu.dynamic_rotate %339 by %c122_i32_168 dim 1 : vector<8x128xf32>, i32 -> vector<8x128xf32>
    %c10_i32_169 = arith.constant 10 : i32
    %482 = tpu.dynamic_rotate %339 by %c10_i32_169 dim 1 : vector<8x128xf32>, i32 -> vector<8x128xf32>
    %c10_i32_170 = arith.constant 10 : i32
    %483 = vector.broadcast %c10_i32_170 : i32 to vector<8x128xi32>
    %484 = arith.cmpi slt, %2, %483 : vector<8x128xi32>
    %485 = arith.select %484, %481, %482 : vector<8x128xi1>, vector<8x128xf32>
    %c122_i32_171 = arith.constant 122 : i32
    %486 = tpu.dynamic_rotate %341 by %c122_i32_171 dim 1 : vector<8x128xf32>, i32 -> vector<8x128xf32>
    %c10_i32_172 = arith.constant 10 : i32
    %487 = tpu.dynamic_rotate %341 by %c10_i32_172 dim 1 : vector<8x128xf32>, i32 -> vector<8x128xf32>
    %c10_i32_173 = arith.constant 10 : i32
    %488 = vector.broadcast %c10_i32_173 : i32 to vector<8x128xi32>
    %489 = arith.cmpi slt, %2, %488 : vector<8x128xi32>
    %490 = arith.select %489, %486, %487 : vector<8x128xi1>, vector<8x128xf32>
    %491 = arith.mulf %337, %485 : vector<8x128xf32>
    %492 = arith.subf %491, %392 : vector<8x128xf32>
    %493 = math.exp %492 : vector<8x128xf32>
    %494 = arith.addf %478, %493 : vector<8x128xf32>
    %495 = arith.mulf %493, %490 : vector<8x128xf32>
    %496 = arith.addf %480, %495 : vector<8x128xf32>
    %c121_i32_174 = arith.constant 121 : i32
    %497 = tpu.dynamic_rotate %339 by %c121_i32_174 dim 1 : vector<8x128xf32>, i32 -> vector<8x128xf32>
    %c9_i32_175 = arith.constant 9 : i32
    %498 = tpu.dynamic_rotate %339 by %c9_i32_175 dim 1 : vector<8x128xf32>, i32 -> vector<8x128xf32>
    %c9_i32_176 = arith.constant 9 : i32
    %499 = vector.broadcast %c9_i32_176 : i32 to vector<8x128xi32>
    %500 = arith.cmpi slt, %2, %499 : vector<8x128xi32>
    %501 = arith.select %500, %497, %498 : vector<8x128xi1>, vector<8x128xf32>
    %c121_i32_177 = arith.constant 121 : i32
    %502 = tpu.dynamic_rotate %341 by %c121_i32_177 dim 1 : vector<8x128xf32>, i32 -> vector<8x128xf32>
    %c9_i32_178 = arith.constant 9 : i32
    %503 = tpu.dynamic_rotate %341 by %c9_i32_178 dim 1 : vector<8x128xf32>, i32 -> vector<8x128xf32>
    %c9_i32_179 = arith.constant 9 : i32
    %504 = vector.broadcast %c9_i32_179 : i32 to vector<8x128xi32>
    %505 = arith.cmpi slt, %2, %504 : vector<8x128xi32>
    %506 = arith.select %505, %502, %503 : vector<8x128xi1>, vector<8x128xf32>
    %507 = arith.mulf %337, %501 : vector<8x128xf32>
    %508 = arith.subf %507, %392 : vector<8x128xf32>
    %509 = math.exp %508 : vector<8x128xf32>
    %510 = arith.addf %494, %509 : vector<8x128xf32>
    %511 = arith.mulf %509, %506 : vector<8x128xf32>
    %512 = arith.addf %496, %511 : vector<8x128xf32>
    %c120_i32_180 = arith.constant 120 : i32
    %513 = tpu.dynamic_rotate %339 by %c120_i32_180 dim 1 : vector<8x128xf32>, i32 -> vector<8x128xf32>
    %c8_i32_181 = arith.constant 8 : i32
    %514 = tpu.dynamic_rotate %339 by %c8_i32_181 dim 1 : vector<8x128xf32>, i32 -> vector<8x128xf32>
    %c8_i32_182 = arith.constant 8 : i32
    %515 = vector.broadcast %c8_i32_182 : i32 to vector<8x128xi32>
    %516 = arith.cmpi slt, %2, %515 : vector<8x128xi32>
    %517 = arith.select %516, %513, %514 : vector<8x128xi1>, vector<8x128xf32>
    %c120_i32_183 = arith.constant 120 : i32
    %518 = tpu.dynamic_rotate %341 by %c120_i32_183 dim 1 : vector<8x128xf32>, i32 -> vector<8x128xf32>
    %c8_i32_184 = arith.constant 8 : i32
    %519 = tpu.dynamic_rotate %341 by %c8_i32_184 dim 1 : vector<8x128xf32>, i32 -> vector<8x128xf32>
    %c8_i32_185 = arith.constant 8 : i32
    %520 = vector.broadcast %c8_i32_185 : i32 to vector<8x128xi32>
    %521 = arith.cmpi slt, %2, %520 : vector<8x128xi32>
    %522 = arith.select %521, %518, %519 : vector<8x128xi1>, vector<8x128xf32>
    %523 = arith.mulf %337, %517 : vector<8x128xf32>
    %524 = arith.subf %523, %392 : vector<8x128xf32>
    %525 = math.exp %524 : vector<8x128xf32>
    %526 = arith.addf %510, %525 : vector<8x128xf32>
    %527 = arith.mulf %525, %522 : vector<8x128xf32>
    %528 = arith.addf %512, %527 : vector<8x128xf32>
    %c119_i32_186 = arith.constant 119 : i32
    %529 = tpu.dynamic_rotate %339 by %c119_i32_186 dim 1 : vector<8x128xf32>, i32 -> vector<8x128xf32>
    %c7_i32_187 = arith.constant 7 : i32
    %530 = tpu.dynamic_rotate %339 by %c7_i32_187 dim 1 : vector<8x128xf32>, i32 -> vector<8x128xf32>
    %c7_i32_188 = arith.constant 7 : i32
    %531 = vector.broadcast %c7_i32_188 : i32 to vector<8x128xi32>
    %532 = arith.cmpi slt, %2, %531 : vector<8x128xi32>
    %533 = arith.select %532, %529, %530 : vector<8x128xi1>, vector<8x128xf32>
    %c119_i32_189 = arith.constant 119 : i32
    %534 = tpu.dynamic_rotate %341 by %c119_i32_189 dim 1 : vector<8x128xf32>, i32 -> vector<8x128xf32>
    %c7_i32_190 = arith.constant 7 : i32
    %535 = tpu.dynamic_rotate %341 by %c7_i32_190 dim 1 : vector<8x128xf32>, i32 -> vector<8x128xf32>
    %c7_i32_191 = arith.constant 7 : i32
    %536 = vector.broadcast %c7_i32_191 : i32 to vector<8x128xi32>
    %537 = arith.cmpi slt, %2, %536 : vector<8x128xi32>
    %538 = arith.select %537, %534, %535 : vector<8x128xi1>, vector<8x128xf32>
    %539 = arith.mulf %337, %533 : vector<8x128xf32>
    %540 = arith.subf %539, %392 : vector<8x128xf32>
    %541 = math.exp %540 : vector<8x128xf32>
    %542 = arith.addf %526, %541 : vector<8x128xf32>
    %543 = arith.mulf %541, %538 : vector<8x128xf32>
    %544 = arith.addf %528, %543 : vector<8x128xf32>
    %c118_i32_192 = arith.constant 118 : i32
    %545 = tpu.dynamic_rotate %339 by %c118_i32_192 dim 1 : vector<8x128xf32>, i32 -> vector<8x128xf32>
    %c6_i32_193 = arith.constant 6 : i32
    %546 = tpu.dynamic_rotate %339 by %c6_i32_193 dim 1 : vector<8x128xf32>, i32 -> vector<8x128xf32>
    %c6_i32_194 = arith.constant 6 : i32
    %547 = vector.broadcast %c6_i32_194 : i32 to vector<8x128xi32>
    %548 = arith.cmpi slt, %2, %547 : vector<8x128xi32>
    %549 = arith.select %548, %545, %546 : vector<8x128xi1>, vector<8x128xf32>
    %c118_i32_195 = arith.constant 118 : i32
    %550 = tpu.dynamic_rotate %341 by %c118_i32_195 dim 1 : vector<8x128xf32>, i32 -> vector<8x128xf32>
    %c6_i32_196 = arith.constant 6 : i32
    %551 = tpu.dynamic_rotate %341 by %c6_i32_196 dim 1 : vector<8x128xf32>, i32 -> vector<8x128xf32>
    %c6_i32_197 = arith.constant 6 : i32
    %552 = vector.broadcast %c6_i32_197 : i32 to vector<8x128xi32>
    %553 = arith.cmpi slt, %2, %552 : vector<8x128xi32>
    %554 = arith.select %553, %550, %551 : vector<8x128xi1>, vector<8x128xf32>
    %555 = arith.mulf %337, %549 : vector<8x128xf32>
    %556 = arith.subf %555, %392 : vector<8x128xf32>
    %557 = math.exp %556 : vector<8x128xf32>
    %558 = arith.addf %542, %557 : vector<8x128xf32>
    %559 = arith.mulf %557, %554 : vector<8x128xf32>
    %560 = arith.addf %544, %559 : vector<8x128xf32>
    %c117_i32_198 = arith.constant 117 : i32
    %561 = tpu.dynamic_rotate %339 by %c117_i32_198 dim 1 : vector<8x128xf32>, i32 -> vector<8x128xf32>
    %c5_i32_199 = arith.constant 5 : i32
    %562 = tpu.dynamic_rotate %339 by %c5_i32_199 dim 1 : vector<8x128xf32>, i32 -> vector<8x128xf32>
    %c5_i32_200 = arith.constant 5 : i32
    %563 = vector.broadcast %c5_i32_200 : i32 to vector<8x128xi32>
    %564 = arith.cmpi slt, %2, %563 : vector<8x128xi32>
    %565 = arith.select %564, %561, %562 : vector<8x128xi1>, vector<8x128xf32>
    %c117_i32_201 = arith.constant 117 : i32
    %566 = tpu.dynamic_rotate %341 by %c117_i32_201 dim 1 : vector<8x128xf32>, i32 -> vector<8x128xf32>
    %c5_i32_202 = arith.constant 5 : i32
    %567 = tpu.dynamic_rotate %341 by %c5_i32_202 dim 1 : vector<8x128xf32>, i32 -> vector<8x128xf32>
    %c5_i32_203 = arith.constant 5 : i32
    %568 = vector.broadcast %c5_i32_203 : i32 to vector<8x128xi32>
    %569 = arith.cmpi slt, %2, %568 : vector<8x128xi32>
    %570 = arith.select %569, %566, %567 : vector<8x128xi1>, vector<8x128xf32>
    %571 = arith.mulf %337, %565 : vector<8x128xf32>
    %572 = arith.subf %571, %392 : vector<8x128xf32>
    %573 = math.exp %572 : vector<8x128xf32>
    %574 = arith.addf %558, %573 : vector<8x128xf32>
    %575 = arith.mulf %573, %570 : vector<8x128xf32>
    %576 = arith.addf %560, %575 : vector<8x128xf32>
    %c116_i32_204 = arith.constant 116 : i32
    %577 = tpu.dynamic_rotate %339 by %c116_i32_204 dim 1 : vector<8x128xf32>, i32 -> vector<8x128xf32>
    %c4_i32_205 = arith.constant 4 : i32
    %578 = tpu.dynamic_rotate %339 by %c4_i32_205 dim 1 : vector<8x128xf32>, i32 -> vector<8x128xf32>
    %c4_i32_206 = arith.constant 4 : i32
    %579 = vector.broadcast %c4_i32_206 : i32 to vector<8x128xi32>
    %580 = arith.cmpi slt, %2, %579 : vector<8x128xi32>
    %581 = arith.select %580, %577, %578 : vector<8x128xi1>, vector<8x128xf32>
    %c116_i32_207 = arith.constant 116 : i32
    %582 = tpu.dynamic_rotate %341 by %c116_i32_207 dim 1 : vector<8x128xf32>, i32 -> vector<8x128xf32>
    %c4_i32_208 = arith.constant 4 : i32
    %583 = tpu.dynamic_rotate %341 by %c4_i32_208 dim 1 : vector<8x128xf32>, i32 -> vector<8x128xf32>
    %c4_i32_209 = arith.constant 4 : i32
    %584 = vector.broadcast %c4_i32_209 : i32 to vector<8x128xi32>
    %585 = arith.cmpi slt, %2, %584 : vector<8x128xi32>
    %586 = arith.select %585, %582, %583 : vector<8x128xi1>, vector<8x128xf32>
    %587 = arith.mulf %337, %581 : vector<8x128xf32>
    %588 = arith.subf %587, %392 : vector<8x128xf32>
    %589 = math.exp %588 : vector<8x128xf32>
    %590 = arith.addf %574, %589 : vector<8x128xf32>
    %591 = arith.mulf %589, %586 : vector<8x128xf32>
    %592 = arith.addf %576, %591 : vector<8x128xf32>
    %c115_i32_210 = arith.constant 115 : i32
    %593 = tpu.dynamic_rotate %339 by %c115_i32_210 dim 1 : vector<8x128xf32>, i32 -> vector<8x128xf32>
    %c3_i32_211 = arith.constant 3 : i32
    %594 = tpu.dynamic_rotate %339 by %c3_i32_211 dim 1 : vector<8x128xf32>, i32 -> vector<8x128xf32>
    %c3_i32_212 = arith.constant 3 : i32
    %595 = vector.broadcast %c3_i32_212 : i32 to vector<8x128xi32>
    %596 = arith.cmpi slt, %2, %595 : vector<8x128xi32>
    %597 = arith.select %596, %593, %594 : vector<8x128xi1>, vector<8x128xf32>
    %c115_i32_213 = arith.constant 115 : i32
    %598 = tpu.dynamic_rotate %341 by %c115_i32_213 dim 1 : vector<8x128xf32>, i32 -> vector<8x128xf32>
    %c3_i32_214 = arith.constant 3 : i32
    %599 = tpu.dynamic_rotate %341 by %c3_i32_214 dim 1 : vector<8x128xf32>, i32 -> vector<8x128xf32>
    %c3_i32_215 = arith.constant 3 : i32
    %600 = vector.broadcast %c3_i32_215 : i32 to vector<8x128xi32>
    %601 = arith.cmpi slt, %2, %600 : vector<8x128xi32>
    %602 = arith.select %601, %598, %599 : vector<8x128xi1>, vector<8x128xf32>
    %603 = arith.mulf %337, %597 : vector<8x128xf32>
    %604 = arith.subf %603, %392 : vector<8x128xf32>
    %605 = math.exp %604 : vector<8x128xf32>
    %606 = arith.addf %590, %605 : vector<8x128xf32>
    %607 = arith.mulf %605, %602 : vector<8x128xf32>
    %608 = arith.addf %592, %607 : vector<8x128xf32>
    %c114_i32_216 = arith.constant 114 : i32
    %609 = tpu.dynamic_rotate %339 by %c114_i32_216 dim 1 : vector<8x128xf32>, i32 -> vector<8x128xf32>
    %c2_i32_217 = arith.constant 2 : i32
    %610 = tpu.dynamic_rotate %339 by %c2_i32_217 dim 1 : vector<8x128xf32>, i32 -> vector<8x128xf32>
    %c2_i32_218 = arith.constant 2 : i32
    %611 = vector.broadcast %c2_i32_218 : i32 to vector<8x128xi32>
    %612 = arith.cmpi slt, %2, %611 : vector<8x128xi32>
    %613 = arith.select %612, %609, %610 : vector<8x128xi1>, vector<8x128xf32>
    %c114_i32_219 = arith.constant 114 : i32
    %614 = tpu.dynamic_rotate %341 by %c114_i32_219 dim 1 : vector<8x128xf32>, i32 -> vector<8x128xf32>
    %c2_i32_220 = arith.constant 2 : i32
    %615 = tpu.dynamic_rotate %341 by %c2_i32_220 dim 1 : vector<8x128xf32>, i32 -> vector<8x128xf32>
    %c2_i32_221 = arith.constant 2 : i32
    %616 = vector.broadcast %c2_i32_221 : i32 to vector<8x128xi32>
    %617 = arith.cmpi slt, %2, %616 : vector<8x128xi32>
    %618 = arith.select %617, %614, %615 : vector<8x128xi1>, vector<8x128xf32>
    %619 = arith.mulf %337, %613 : vector<8x128xf32>
    %620 = arith.subf %619, %392 : vector<8x128xf32>
    %621 = math.exp %620 : vector<8x128xf32>
    %622 = arith.addf %606, %621 : vector<8x128xf32>
    %623 = arith.mulf %621, %618 : vector<8x128xf32>
    %624 = arith.addf %608, %623 : vector<8x128xf32>
    %c113_i32_222 = arith.constant 113 : i32
    %625 = tpu.dynamic_rotate %339 by %c113_i32_222 dim 1 : vector<8x128xf32>, i32 -> vector<8x128xf32>
    %c1_i32_223 = arith.constant 1 : i32
    %626 = tpu.dynamic_rotate %339 by %c1_i32_223 dim 1 : vector<8x128xf32>, i32 -> vector<8x128xf32>
    %c1_i32_224 = arith.constant 1 : i32
    %627 = vector.broadcast %c1_i32_224 : i32 to vector<8x128xi32>
    %628 = arith.cmpi slt, %2, %627 : vector<8x128xi32>
    %629 = arith.select %628, %625, %626 : vector<8x128xi1>, vector<8x128xf32>
    %c113_i32_225 = arith.constant 113 : i32
    %630 = tpu.dynamic_rotate %341 by %c113_i32_225 dim 1 : vector<8x128xf32>, i32 -> vector<8x128xf32>
    %c1_i32_226 = arith.constant 1 : i32
    %631 = tpu.dynamic_rotate %341 by %c1_i32_226 dim 1 : vector<8x128xf32>, i32 -> vector<8x128xf32>
    %c1_i32_227 = arith.constant 1 : i32
    %632 = vector.broadcast %c1_i32_227 : i32 to vector<8x128xi32>
    %633 = arith.cmpi slt, %2, %632 : vector<8x128xi32>
    %634 = arith.select %633, %630, %631 : vector<8x128xi1>, vector<8x128xf32>
    %635 = arith.mulf %337, %629 : vector<8x128xf32>
    %636 = arith.subf %635, %392 : vector<8x128xf32>
    %637 = math.exp %636 : vector<8x128xf32>
    %638 = arith.addf %622, %637 : vector<8x128xf32>
    %639 = arith.mulf %637, %634 : vector<8x128xf32>
    %640 = arith.addf %624, %639 : vector<8x128xf32>
    %641 = tpu.reciprocal %638 {approx = true} : vector<8x128xf32> -> vector<8x128xf32>
    %642 = arith.mulf %638, %641 : vector<8x128xf32>
    %cst_228 = arith.constant 2.000000e+00 : f32
    %643 = vector.broadcast %cst_228 : f32 to vector<8x128xf32>
    %644 = arith.subf %643, %642 : vector<8x128xf32>
    %645 = arith.mulf %641, %644 : vector<8x128xf32>
    %646 = arith.mulf %640, %645 : vector<8x128xf32>
    %c1152 = arith.constant 1152 : index
    %c0_229 = arith.constant 0 : index
    %647 = vector.load %arg2[%c1152, %c0_229] : memref<2960x128xf32, #tpu.memory_space<vmem>>, vector<128x128xf32>
    %cst_230 = arith.constant dense<0.000000e+00> : vector<8x128xf32>
    %648 = tpu.matmul %646, %647, %cst_230 {dimension_numbers = #tpu.dot_dimension_numbers<[1], [0], [0], [1], [0, 0, 1, 1], [], []>} : vector<8x128xf32>, vector<128x128xf32>, vector<8x128xf32> -> vector<8x128xf32>
    %c1411 = arith.constant 1411 : index
    %c0_231 = arith.constant 0 : index
    %649 = vector.load %arg2[%c1411, %c0_231] : memref<2960x128xf32, #tpu.memory_space<vmem>>, vector<1x128xf32>
    %650 = vector.broadcast %649 : vector<1x128xf32> to vector<8x128xf32>
    %651 = arith.addf %648, %650 : vector<8x128xf32>
    %652 = math.tanh %651 : vector<8x128xf32>
    %c1280 = arith.constant 1280 : index
    %c0_232 = arith.constant 0 : index
    %653 = vector.load %arg2[%c1280, %c0_232] : memref<2960x128xf32, #tpu.memory_space<vmem>>, vector<128x128xf32>
    %cst_233 = arith.constant dense<0.000000e+00> : vector<8x128xf32>
    %654 = tpu.matmul %652, %653, %cst_233 {dimension_numbers = #tpu.dot_dimension_numbers<[1], [0], [0], [1], [0, 0, 1, 1], [], []>} : vector<8x128xf32>, vector<128x128xf32>, vector<8x128xf32> -> vector<8x128xf32>
    %c1412 = arith.constant 1412 : index
    %c0_234 = arith.constant 0 : index
    %655 = vector.load %arg2[%c1412, %c0_234] : memref<2960x128xf32, #tpu.memory_space<vmem>>, vector<1x128xf32>
    %656 = vector.broadcast %655 : vector<1x128xf32> to vector<8x128xf32>
    %657 = arith.addf %654, %656 : vector<8x128xf32>
    %658 = arith.addf %14, %657 : vector<8x128xf32>
    %c1416 = arith.constant 1416 : index
    %c0_235 = arith.constant 0 : index
    %659 = vector.load %arg2[%c1416, %c0_235] : memref<2960x128xf32, #tpu.memory_space<vmem>>, vector<128x128xf32>
    %cst_236 = arith.constant dense<0.000000e+00> : vector<8x128xf32>
    %660 = tpu.matmul %3, %659, %cst_236 {dimension_numbers = #tpu.dot_dimension_numbers<[1], [0], [0], [1], [0, 0, 1, 1], [], []>} : vector<8x128xf32>, vector<128x128xf32>, vector<8x128xf32> -> vector<8x128xf32>
    %c2952 = arith.constant 2952 : index
    %c0_237 = arith.constant 0 : index
    %661 = vector.load %arg2[%c2952, %c0_237] : memref<2960x128xf32, #tpu.memory_space<vmem>>, vector<1x128xf32>
    %662 = vector.broadcast %661 : vector<1x128xf32> to vector<8x128xf32>
    %663 = arith.addf %660, %662 : vector<8x128xf32>
    %c1544 = arith.constant 1544 : index
    %c0_238 = arith.constant 0 : index
    %664 = vector.load %arg2[%c1544, %c0_238] : memref<2960x128xf32, #tpu.memory_space<vmem>>, vector<128x128xf32>
    %cst_239 = arith.constant dense<0.000000e+00> : vector<8x128xf32>
    %665 = tpu.matmul %658, %664, %cst_239 {dimension_numbers = #tpu.dot_dimension_numbers<[1], [0], [0], [1], [0, 0, 1, 1], [], []>} : vector<8x128xf32>, vector<128x128xf32>, vector<8x128xf32> -> vector<8x128xf32>
    %666 = arith.addf %663, %665 : vector<8x128xf32>
    %667 = math.tanh %666 : vector<8x128xf32>
    %c1672 = arith.constant 1672 : index
    %c0_240 = arith.constant 0 : index
    %668 = vector.load %arg2[%c1672, %c0_240] : memref<2960x128xf32, #tpu.memory_space<vmem>>, vector<128x128xf32>
    %cst_241 = arith.constant dense<0.000000e+00> : vector<8x128xf32>
    %669 = tpu.matmul %667, %668, %cst_241 {dimension_numbers = #tpu.dot_dimension_numbers<[1], [0], [0], [1], [0, 0, 1, 1], [], []>} : vector<8x128xf32>, vector<128x128xf32>, vector<8x128xf32> -> vector<8x128xf32>
    %c2953 = arith.constant 2953 : index
    %c0_242 = arith.constant 0 : index
    %670 = vector.load %arg2[%c2953, %c0_242] : memref<2960x128xf32, #tpu.memory_space<vmem>>, vector<1x128xf32>
    %671 = vector.broadcast %670 : vector<1x128xf32> to vector<8x128xf32>
    %672 = arith.addf %669, %671 : vector<8x128xf32>
    %c1800 = arith.constant 1800 : index
    %c0_243 = arith.constant 0 : index
    %673 = vector.load %arg2[%c1800, %c0_243] : memref<2960x128xf32, #tpu.memory_space<vmem>>, vector<128x128xf32>
    %cst_244 = arith.constant dense<0.000000e+00> : vector<8x128xf32>
    %674 = tpu.matmul %667, %673, %cst_244 {dimension_numbers = #tpu.dot_dimension_numbers<[1], [0], [0], [1], [0, 0, 1, 1], [], []>} : vector<8x128xf32>, vector<128x128xf32>, vector<8x128xf32> -> vector<8x128xf32>
    %cst_245 = arith.constant 2.500000e-01 : f32
    %675 = vector.broadcast %cst_245 : f32 to vector<8x128xf32>
    %676 = arith.mulf %674, %675 : vector<8x128xf32>
    %c1928 = arith.constant 1928 : index
    %c0_246 = arith.constant 0 : index
    %677 = vector.load %arg2[%c1928, %c0_246] : memref<2960x128xf32, #tpu.memory_space<vmem>>, vector<128x128xf32>
    %cst_247 = arith.constant dense<0.000000e+00> : vector<8x128xf32>
    %678 = tpu.matmul %667, %677, %cst_247 {dimension_numbers = #tpu.dot_dimension_numbers<[1], [0], [0], [1], [0, 0, 1, 1], [], []>} : vector<8x128xf32>, vector<128x128xf32>, vector<8x128xf32> -> vector<8x128xf32>
    %c2056 = arith.constant 2056 : index
    %c0_248 = arith.constant 0 : index
    %679 = vector.load %arg2[%c2056, %c0_248] : memref<2960x128xf32, #tpu.memory_space<vmem>>, vector<128x128xf32>
    %cst_249 = arith.constant dense<0.000000e+00> : vector<8x128xf32>
    %680 = tpu.matmul %667, %679, %cst_249 {dimension_numbers = #tpu.dot_dimension_numbers<[1], [0], [0], [1], [0, 0, 1, 1], [], []>} : vector<8x128xf32>, vector<128x128xf32>, vector<8x128xf32> -> vector<8x128xf32>
    %c127_i32_250 = arith.constant 127 : i32
    %681 = tpu.dynamic_rotate %678 by %c127_i32_250 dim 1 : vector<8x128xf32>, i32 -> vector<8x128xf32>
    %c15_i32_251 = arith.constant 15 : i32
    %682 = tpu.dynamic_rotate %678 by %c15_i32_251 dim 1 : vector<8x128xf32>, i32 -> vector<8x128xf32>
    %c15_i32_252 = arith.constant 15 : i32
    %683 = vector.broadcast %c15_i32_252 : i32 to vector<8x128xi32>
    %684 = arith.cmpi slt, %2, %683 : vector<8x128xi32>
    %685 = arith.select %684, %681, %682 : vector<8x128xi1>, vector<8x128xf32>
    %686 = arith.maximumf %678, %685 : vector<8x128xf32>
    %c127_i32_253 = arith.constant 127 : i32
    %687 = tpu.dynamic_rotate %678 by %c127_i32_253 dim 1 : vector<8x128xf32>, i32 -> vector<8x128xf32>
    %c15_i32_254 = arith.constant 15 : i32
    %688 = tpu.dynamic_rotate %678 by %c15_i32_254 dim 1 : vector<8x128xf32>, i32 -> vector<8x128xf32>
    %c15_i32_255 = arith.constant 15 : i32
    %689 = vector.broadcast %c15_i32_255 : i32 to vector<8x128xi32>
    %690 = arith.cmpi slt, %2, %689 : vector<8x128xi32>
    %691 = arith.select %690, %687, %688 : vector<8x128xi1>, vector<8x128xf32>
    %692 = arith.minimumf %678, %691 : vector<8x128xf32>
    %c126_i32_256 = arith.constant 126 : i32
    %693 = tpu.dynamic_rotate %686 by %c126_i32_256 dim 1 : vector<8x128xf32>, i32 -> vector<8x128xf32>
    %c14_i32_257 = arith.constant 14 : i32
    %694 = tpu.dynamic_rotate %686 by %c14_i32_257 dim 1 : vector<8x128xf32>, i32 -> vector<8x128xf32>
    %c14_i32_258 = arith.constant 14 : i32
    %695 = vector.broadcast %c14_i32_258 : i32 to vector<8x128xi32>
    %696 = arith.cmpi slt, %2, %695 : vector<8x128xi32>
    %697 = arith.select %696, %693, %694 : vector<8x128xi1>, vector<8x128xf32>
    %698 = arith.maximumf %686, %697 : vector<8x128xf32>
    %c126_i32_259 = arith.constant 126 : i32
    %699 = tpu.dynamic_rotate %692 by %c126_i32_259 dim 1 : vector<8x128xf32>, i32 -> vector<8x128xf32>
    %c14_i32_260 = arith.constant 14 : i32
    %700 = tpu.dynamic_rotate %692 by %c14_i32_260 dim 1 : vector<8x128xf32>, i32 -> vector<8x128xf32>
    %c14_i32_261 = arith.constant 14 : i32
    %701 = vector.broadcast %c14_i32_261 : i32 to vector<8x128xi32>
    %702 = arith.cmpi slt, %2, %701 : vector<8x128xi32>
    %703 = arith.select %702, %699, %700 : vector<8x128xi1>, vector<8x128xf32>
    %704 = arith.minimumf %692, %703 : vector<8x128xf32>
    %c124_i32_262 = arith.constant 124 : i32
    %705 = tpu.dynamic_rotate %698 by %c124_i32_262 dim 1 : vector<8x128xf32>, i32 -> vector<8x128xf32>
    %c12_i32_263 = arith.constant 12 : i32
    %706 = tpu.dynamic_rotate %698 by %c12_i32_263 dim 1 : vector<8x128xf32>, i32 -> vector<8x128xf32>
    %c12_i32_264 = arith.constant 12 : i32
    %707 = vector.broadcast %c12_i32_264 : i32 to vector<8x128xi32>
    %708 = arith.cmpi slt, %2, %707 : vector<8x128xi32>
    %709 = arith.select %708, %705, %706 : vector<8x128xi1>, vector<8x128xf32>
    %710 = arith.maximumf %698, %709 : vector<8x128xf32>
    %c124_i32_265 = arith.constant 124 : i32
    %711 = tpu.dynamic_rotate %704 by %c124_i32_265 dim 1 : vector<8x128xf32>, i32 -> vector<8x128xf32>
    %c12_i32_266 = arith.constant 12 : i32
    %712 = tpu.dynamic_rotate %704 by %c12_i32_266 dim 1 : vector<8x128xf32>, i32 -> vector<8x128xf32>
    %c12_i32_267 = arith.constant 12 : i32
    %713 = vector.broadcast %c12_i32_267 : i32 to vector<8x128xi32>
    %714 = arith.cmpi slt, %2, %713 : vector<8x128xi32>
    %715 = arith.select %714, %711, %712 : vector<8x128xi1>, vector<8x128xf32>
    %716 = arith.minimumf %704, %715 : vector<8x128xf32>
    %c120_i32_268 = arith.constant 120 : i32
    %717 = tpu.dynamic_rotate %710 by %c120_i32_268 dim 1 : vector<8x128xf32>, i32 -> vector<8x128xf32>
    %c8_i32_269 = arith.constant 8 : i32
    %718 = tpu.dynamic_rotate %710 by %c8_i32_269 dim 1 : vector<8x128xf32>, i32 -> vector<8x128xf32>
    %c8_i32_270 = arith.constant 8 : i32
    %719 = vector.broadcast %c8_i32_270 : i32 to vector<8x128xi32>
    %720 = arith.cmpi slt, %2, %719 : vector<8x128xi32>
    %721 = arith.select %720, %717, %718 : vector<8x128xi1>, vector<8x128xf32>
    %722 = arith.maximumf %710, %721 : vector<8x128xf32>
    %c120_i32_271 = arith.constant 120 : i32
    %723 = tpu.dynamic_rotate %716 by %c120_i32_271 dim 1 : vector<8x128xf32>, i32 -> vector<8x128xf32>
    %c8_i32_272 = arith.constant 8 : i32
    %724 = tpu.dynamic_rotate %716 by %c8_i32_272 dim 1 : vector<8x128xf32>, i32 -> vector<8x128xf32>
    %c8_i32_273 = arith.constant 8 : i32
    %725 = vector.broadcast %c8_i32_273 : i32 to vector<8x128xi32>
    %726 = arith.cmpi slt, %2, %725 : vector<8x128xi32>
    %727 = arith.select %726, %723, %724 : vector<8x128xi1>, vector<8x128xf32>
    %728 = arith.minimumf %716, %727 : vector<8x128xf32>
    %729 = arith.mulf %676, %722 : vector<8x128xf32>
    %730 = arith.mulf %676, %728 : vector<8x128xf32>
    %731 = arith.maximumf %729, %730 : vector<8x128xf32>
    %cst_274 = arith.constant 0.000000e+00 : f32
    %732 = vector.broadcast %cst_274 : f32 to vector<8x128xf32>
    %cst_275 = arith.constant 0.000000e+00 : f32
    %733 = vector.broadcast %cst_275 : f32 to vector<8x128xf32>
    %734 = arith.mulf %676, %678 : vector<8x128xf32>
    %735 = arith.subf %734, %731 : vector<8x128xf32>
    %736 = math.exp %735 : vector<8x128xf32>
    %737 = arith.addf %733, %736 : vector<8x128xf32>
    %738 = arith.mulf %736, %680 : vector<8x128xf32>
    %739 = arith.addf %732, %738 : vector<8x128xf32>
    %c127_i32_276 = arith.constant 127 : i32
    %740 = tpu.dynamic_rotate %678 by %c127_i32_276 dim 1 : vector<8x128xf32>, i32 -> vector<8x128xf32>
    %c15_i32_277 = arith.constant 15 : i32
    %741 = tpu.dynamic_rotate %678 by %c15_i32_277 dim 1 : vector<8x128xf32>, i32 -> vector<8x128xf32>
    %c15_i32_278 = arith.constant 15 : i32
    %742 = vector.broadcast %c15_i32_278 : i32 to vector<8x128xi32>
    %743 = arith.cmpi slt, %2, %742 : vector<8x128xi32>
    %744 = arith.select %743, %740, %741 : vector<8x128xi1>, vector<8x128xf32>
    %c127_i32_279 = arith.constant 127 : i32
    %745 = tpu.dynamic_rotate %680 by %c127_i32_279 dim 1 : vector<8x128xf32>, i32 -> vector<8x128xf32>
    %c15_i32_280 = arith.constant 15 : i32
    %746 = tpu.dynamic_rotate %680 by %c15_i32_280 dim 1 : vector<8x128xf32>, i32 -> vector<8x128xf32>
    %c15_i32_281 = arith.constant 15 : i32
    %747 = vector.broadcast %c15_i32_281 : i32 to vector<8x128xi32>
    %748 = arith.cmpi slt, %2, %747 : vector<8x128xi32>
    %749 = arith.select %748, %745, %746 : vector<8x128xi1>, vector<8x128xf32>
    %750 = arith.mulf %676, %744 : vector<8x128xf32>
    %751 = arith.subf %750, %731 : vector<8x128xf32>
    %752 = math.exp %751 : vector<8x128xf32>
    %753 = arith.addf %737, %752 : vector<8x128xf32>
    %754 = arith.mulf %752, %749 : vector<8x128xf32>
    %755 = arith.addf %739, %754 : vector<8x128xf32>
    %c126_i32_282 = arith.constant 126 : i32
    %756 = tpu.dynamic_rotate %678 by %c126_i32_282 dim 1 : vector<8x128xf32>, i32 -> vector<8x128xf32>
    %c14_i32_283 = arith.constant 14 : i32
    %757 = tpu.dynamic_rotate %678 by %c14_i32_283 dim 1 : vector<8x128xf32>, i32 -> vector<8x128xf32>
    %c14_i32_284 = arith.constant 14 : i32
    %758 = vector.broadcast %c14_i32_284 : i32 to vector<8x128xi32>
    %759 = arith.cmpi slt, %2, %758 : vector<8x128xi32>
    %760 = arith.select %759, %756, %757 : vector<8x128xi1>, vector<8x128xf32>
    %c126_i32_285 = arith.constant 126 : i32
    %761 = tpu.dynamic_rotate %680 by %c126_i32_285 dim 1 : vector<8x128xf32>, i32 -> vector<8x128xf32>
    %c14_i32_286 = arith.constant 14 : i32
    %762 = tpu.dynamic_rotate %680 by %c14_i32_286 dim 1 : vector<8x128xf32>, i32 -> vector<8x128xf32>
    %c14_i32_287 = arith.constant 14 : i32
    %763 = vector.broadcast %c14_i32_287 : i32 to vector<8x128xi32>
    %764 = arith.cmpi slt, %2, %763 : vector<8x128xi32>
    %765 = arith.select %764, %761, %762 : vector<8x128xi1>, vector<8x128xf32>
    %766 = arith.mulf %676, %760 : vector<8x128xf32>
    %767 = arith.subf %766, %731 : vector<8x128xf32>
    %768 = math.exp %767 : vector<8x128xf32>
    %769 = arith.addf %753, %768 : vector<8x128xf32>
    %770 = arith.mulf %768, %765 : vector<8x128xf32>
    %771 = arith.addf %755, %770 : vector<8x128xf32>
    %c125_i32_288 = arith.constant 125 : i32
    %772 = tpu.dynamic_rotate %678 by %c125_i32_288 dim 1 : vector<8x128xf32>, i32 -> vector<8x128xf32>
    %c13_i32_289 = arith.constant 13 : i32
    %773 = tpu.dynamic_rotate %678 by %c13_i32_289 dim 1 : vector<8x128xf32>, i32 -> vector<8x128xf32>
    %c13_i32_290 = arith.constant 13 : i32
    %774 = vector.broadcast %c13_i32_290 : i32 to vector<8x128xi32>
    %775 = arith.cmpi slt, %2, %774 : vector<8x128xi32>
    %776 = arith.select %775, %772, %773 : vector<8x128xi1>, vector<8x128xf32>
    %c125_i32_291 = arith.constant 125 : i32
    %777 = tpu.dynamic_rotate %680 by %c125_i32_291 dim 1 : vector<8x128xf32>, i32 -> vector<8x128xf32>
    %c13_i32_292 = arith.constant 13 : i32
    %778 = tpu.dynamic_rotate %680 by %c13_i32_292 dim 1 : vector<8x128xf32>, i32 -> vector<8x128xf32>
    %c13_i32_293 = arith.constant 13 : i32
    %779 = vector.broadcast %c13_i32_293 : i32 to vector<8x128xi32>
    %780 = arith.cmpi slt, %2, %779 : vector<8x128xi32>
    %781 = arith.select %780, %777, %778 : vector<8x128xi1>, vector<8x128xf32>
    %782 = arith.mulf %676, %776 : vector<8x128xf32>
    %783 = arith.subf %782, %731 : vector<8x128xf32>
    %784 = math.exp %783 : vector<8x128xf32>
    %785 = arith.addf %769, %784 : vector<8x128xf32>
    %786 = arith.mulf %784, %781 : vector<8x128xf32>
    %787 = arith.addf %771, %786 : vector<8x128xf32>
    %c124_i32_294 = arith.constant 124 : i32
    %788 = tpu.dynamic_rotate %678 by %c124_i32_294 dim 1 : vector<8x128xf32>, i32 -> vector<8x128xf32>
    %c12_i32_295 = arith.constant 12 : i32
    %789 = tpu.dynamic_rotate %678 by %c12_i32_295 dim 1 : vector<8x128xf32>, i32 -> vector<8x128xf32>
    %c12_i32_296 = arith.constant 12 : i32
    %790 = vector.broadcast %c12_i32_296 : i32 to vector<8x128xi32>
    %791 = arith.cmpi slt, %2, %790 : vector<8x128xi32>
    %792 = arith.select %791, %788, %789 : vector<8x128xi1>, vector<8x128xf32>
    %c124_i32_297 = arith.constant 124 : i32
    %793 = tpu.dynamic_rotate %680 by %c124_i32_297 dim 1 : vector<8x128xf32>, i32 -> vector<8x128xf32>
    %c12_i32_298 = arith.constant 12 : i32
    %794 = tpu.dynamic_rotate %680 by %c12_i32_298 dim 1 : vector<8x128xf32>, i32 -> vector<8x128xf32>
    %c12_i32_299 = arith.constant 12 : i32
    %795 = vector.broadcast %c12_i32_299 : i32 to vector<8x128xi32>
    %796 = arith.cmpi slt, %2, %795 : vector<8x128xi32>
    %797 = arith.select %796, %793, %794 : vector<8x128xi1>, vector<8x128xf32>
    %798 = arith.mulf %676, %792 : vector<8x128xf32>
    %799 = arith.subf %798, %731 : vector<8x128xf32>
    %800 = math.exp %799 : vector<8x128xf32>
    %801 = arith.addf %785, %800 : vector<8x128xf32>
    %802 = arith.mulf %800, %797 : vector<8x128xf32>
    %803 = arith.addf %787, %802 : vector<8x128xf32>
    %c123_i32_300 = arith.constant 123 : i32
    %804 = tpu.dynamic_rotate %678 by %c123_i32_300 dim 1 : vector<8x128xf32>, i32 -> vector<8x128xf32>
    %c11_i32_301 = arith.constant 11 : i32
    %805 = tpu.dynamic_rotate %678 by %c11_i32_301 dim 1 : vector<8x128xf32>, i32 -> vector<8x128xf32>
    %c11_i32_302 = arith.constant 11 : i32
    %806 = vector.broadcast %c11_i32_302 : i32 to vector<8x128xi32>
    %807 = arith.cmpi slt, %2, %806 : vector<8x128xi32>
    %808 = arith.select %807, %804, %805 : vector<8x128xi1>, vector<8x128xf32>
    %c123_i32_303 = arith.constant 123 : i32
    %809 = tpu.dynamic_rotate %680 by %c123_i32_303 dim 1 : vector<8x128xf32>, i32 -> vector<8x128xf32>
    %c11_i32_304 = arith.constant 11 : i32
    %810 = tpu.dynamic_rotate %680 by %c11_i32_304 dim 1 : vector<8x128xf32>, i32 -> vector<8x128xf32>
    %c11_i32_305 = arith.constant 11 : i32
    %811 = vector.broadcast %c11_i32_305 : i32 to vector<8x128xi32>
    %812 = arith.cmpi slt, %2, %811 : vector<8x128xi32>
    %813 = arith.select %812, %809, %810 : vector<8x128xi1>, vector<8x128xf32>
    %814 = arith.mulf %676, %808 : vector<8x128xf32>
    %815 = arith.subf %814, %731 : vector<8x128xf32>
    %816 = math.exp %815 : vector<8x128xf32>
    %817 = arith.addf %801, %816 : vector<8x128xf32>
    %818 = arith.mulf %816, %813 : vector<8x128xf32>
    %819 = arith.addf %803, %818 : vector<8x128xf32>
    %c122_i32_306 = arith.constant 122 : i32
    %820 = tpu.dynamic_rotate %678 by %c122_i32_306 dim 1 : vector<8x128xf32>, i32 -> vector<8x128xf32>
    %c10_i32_307 = arith.constant 10 : i32
    %821 = tpu.dynamic_rotate %678 by %c10_i32_307 dim 1 : vector<8x128xf32>, i32 -> vector<8x128xf32>
    %c10_i32_308 = arith.constant 10 : i32
    %822 = vector.broadcast %c10_i32_308 : i32 to vector<8x128xi32>
    %823 = arith.cmpi slt, %2, %822 : vector<8x128xi32>
    %824 = arith.select %823, %820, %821 : vector<8x128xi1>, vector<8x128xf32>
    %c122_i32_309 = arith.constant 122 : i32
    %825 = tpu.dynamic_rotate %680 by %c122_i32_309 dim 1 : vector<8x128xf32>, i32 -> vector<8x128xf32>
    %c10_i32_310 = arith.constant 10 : i32
    %826 = tpu.dynamic_rotate %680 by %c10_i32_310 dim 1 : vector<8x128xf32>, i32 -> vector<8x128xf32>
    %c10_i32_311 = arith.constant 10 : i32
    %827 = vector.broadcast %c10_i32_311 : i32 to vector<8x128xi32>
    %828 = arith.cmpi slt, %2, %827 : vector<8x128xi32>
    %829 = arith.select %828, %825, %826 : vector<8x128xi1>, vector<8x128xf32>
    %830 = arith.mulf %676, %824 : vector<8x128xf32>
    %831 = arith.subf %830, %731 : vector<8x128xf32>
    %832 = math.exp %831 : vector<8x128xf32>
    %833 = arith.addf %817, %832 : vector<8x128xf32>
    %834 = arith.mulf %832, %829 : vector<8x128xf32>
    %835 = arith.addf %819, %834 : vector<8x128xf32>
    %c121_i32_312 = arith.constant 121 : i32
    %836 = tpu.dynamic_rotate %678 by %c121_i32_312 dim 1 : vector<8x128xf32>, i32 -> vector<8x128xf32>
    %c9_i32_313 = arith.constant 9 : i32
    %837 = tpu.dynamic_rotate %678 by %c9_i32_313 dim 1 : vector<8x128xf32>, i32 -> vector<8x128xf32>
    %c9_i32_314 = arith.constant 9 : i32
    %838 = vector.broadcast %c9_i32_314 : i32 to vector<8x128xi32>
    %839 = arith.cmpi slt, %2, %838 : vector<8x128xi32>
    %840 = arith.select %839, %836, %837 : vector<8x128xi1>, vector<8x128xf32>
    %c121_i32_315 = arith.constant 121 : i32
    %841 = tpu.dynamic_rotate %680 by %c121_i32_315 dim 1 : vector<8x128xf32>, i32 -> vector<8x128xf32>
    %c9_i32_316 = arith.constant 9 : i32
    %842 = tpu.dynamic_rotate %680 by %c9_i32_316 dim 1 : vector<8x128xf32>, i32 -> vector<8x128xf32>
    %c9_i32_317 = arith.constant 9 : i32
    %843 = vector.broadcast %c9_i32_317 : i32 to vector<8x128xi32>
    %844 = arith.cmpi slt, %2, %843 : vector<8x128xi32>
    %845 = arith.select %844, %841, %842 : vector<8x128xi1>, vector<8x128xf32>
    %846 = arith.mulf %676, %840 : vector<8x128xf32>
    %847 = arith.subf %846, %731 : vector<8x128xf32>
    %848 = math.exp %847 : vector<8x128xf32>
    %849 = arith.addf %833, %848 : vector<8x128xf32>
    %850 = arith.mulf %848, %845 : vector<8x128xf32>
    %851 = arith.addf %835, %850 : vector<8x128xf32>
    %c120_i32_318 = arith.constant 120 : i32
    %852 = tpu.dynamic_rotate %678 by %c120_i32_318 dim 1 : vector<8x128xf32>, i32 -> vector<8x128xf32>
    %c8_i32_319 = arith.constant 8 : i32
    %853 = tpu.dynamic_rotate %678 by %c8_i32_319 dim 1 : vector<8x128xf32>, i32 -> vector<8x128xf32>
    %c8_i32_320 = arith.constant 8 : i32
    %854 = vector.broadcast %c8_i32_320 : i32 to vector<8x128xi32>
    %855 = arith.cmpi slt, %2, %854 : vector<8x128xi32>
    %856 = arith.select %855, %852, %853 : vector<8x128xi1>, vector<8x128xf32>
    %c120_i32_321 = arith.constant 120 : i32
    %857 = tpu.dynamic_rotate %680 by %c120_i32_321 dim 1 : vector<8x128xf32>, i32 -> vector<8x128xf32>
    %c8_i32_322 = arith.constant 8 : i32
    %858 = tpu.dynamic_rotate %680 by %c8_i32_322 dim 1 : vector<8x128xf32>, i32 -> vector<8x128xf32>
    %c8_i32_323 = arith.constant 8 : i32
    %859 = vector.broadcast %c8_i32_323 : i32 to vector<8x128xi32>
    %860 = arith.cmpi slt, %2, %859 : vector<8x128xi32>
    %861 = arith.select %860, %857, %858 : vector<8x128xi1>, vector<8x128xf32>
    %862 = arith.mulf %676, %856 : vector<8x128xf32>
    %863 = arith.subf %862, %731 : vector<8x128xf32>
    %864 = math.exp %863 : vector<8x128xf32>
    %865 = arith.addf %849, %864 : vector<8x128xf32>
    %866 = arith.mulf %864, %861 : vector<8x128xf32>
    %867 = arith.addf %851, %866 : vector<8x128xf32>
    %c119_i32_324 = arith.constant 119 : i32
    %868 = tpu.dynamic_rotate %678 by %c119_i32_324 dim 1 : vector<8x128xf32>, i32 -> vector<8x128xf32>
    %c7_i32_325 = arith.constant 7 : i32
    %869 = tpu.dynamic_rotate %678 by %c7_i32_325 dim 1 : vector<8x128xf32>, i32 -> vector<8x128xf32>
    %c7_i32_326 = arith.constant 7 : i32
    %870 = vector.broadcast %c7_i32_326 : i32 to vector<8x128xi32>
    %871 = arith.cmpi slt, %2, %870 : vector<8x128xi32>
    %872 = arith.select %871, %868, %869 : vector<8x128xi1>, vector<8x128xf32>
    %c119_i32_327 = arith.constant 119 : i32
    %873 = tpu.dynamic_rotate %680 by %c119_i32_327 dim 1 : vector<8x128xf32>, i32 -> vector<8x128xf32>
    %c7_i32_328 = arith.constant 7 : i32
    %874 = tpu.dynamic_rotate %680 by %c7_i32_328 dim 1 : vector<8x128xf32>, i32 -> vector<8x128xf32>
    %c7_i32_329 = arith.constant 7 : i32
    %875 = vector.broadcast %c7_i32_329 : i32 to vector<8x128xi32>
    %876 = arith.cmpi slt, %2, %875 : vector<8x128xi32>
    %877 = arith.select %876, %873, %874 : vector<8x128xi1>, vector<8x128xf32>
    %878 = arith.mulf %676, %872 : vector<8x128xf32>
    %879 = arith.subf %878, %731 : vector<8x128xf32>
    %880 = math.exp %879 : vector<8x128xf32>
    %881 = arith.addf %865, %880 : vector<8x128xf32>
    %882 = arith.mulf %880, %877 : vector<8x128xf32>
    %883 = arith.addf %867, %882 : vector<8x128xf32>
    %c118_i32_330 = arith.constant 118 : i32
    %884 = tpu.dynamic_rotate %678 by %c118_i32_330 dim 1 : vector<8x128xf32>, i32 -> vector<8x128xf32>
    %c6_i32_331 = arith.constant 6 : i32
    %885 = tpu.dynamic_rotate %678 by %c6_i32_331 dim 1 : vector<8x128xf32>, i32 -> vector<8x128xf32>
    %c6_i32_332 = arith.constant 6 : i32
    %886 = vector.broadcast %c6_i32_332 : i32 to vector<8x128xi32>
    %887 = arith.cmpi slt, %2, %886 : vector<8x128xi32>
    %888 = arith.select %887, %884, %885 : vector<8x128xi1>, vector<8x128xf32>
    %c118_i32_333 = arith.constant 118 : i32
    %889 = tpu.dynamic_rotate %680 by %c118_i32_333 dim 1 : vector<8x128xf32>, i32 -> vector<8x128xf32>
    %c6_i32_334 = arith.constant 6 : i32
    %890 = tpu.dynamic_rotate %680 by %c6_i32_334 dim 1 : vector<8x128xf32>, i32 -> vector<8x128xf32>
    %c6_i32_335 = arith.constant 6 : i32
    %891 = vector.broadcast %c6_i32_335 : i32 to vector<8x128xi32>
    %892 = arith.cmpi slt, %2, %891 : vector<8x128xi32>
    %893 = arith.select %892, %889, %890 : vector<8x128xi1>, vector<8x128xf32>
    %894 = arith.mulf %676, %888 : vector<8x128xf32>
    %895 = arith.subf %894, %731 : vector<8x128xf32>
    %896 = math.exp %895 : vector<8x128xf32>
    %897 = arith.addf %881, %896 : vector<8x128xf32>
    %898 = arith.mulf %896, %893 : vector<8x128xf32>
    %899 = arith.addf %883, %898 : vector<8x128xf32>
    %c117_i32_336 = arith.constant 117 : i32
    %900 = tpu.dynamic_rotate %678 by %c117_i32_336 dim 1 : vector<8x128xf32>, i32 -> vector<8x128xf32>
    %c5_i32_337 = arith.constant 5 : i32
    %901 = tpu.dynamic_rotate %678 by %c5_i32_337 dim 1 : vector<8x128xf32>, i32 -> vector<8x128xf32>
    %c5_i32_338 = arith.constant 5 : i32
    %902 = vector.broadcast %c5_i32_338 : i32 to vector<8x128xi32>
    %903 = arith.cmpi slt, %2, %902 : vector<8x128xi32>
    %904 = arith.select %903, %900, %901 : vector<8x128xi1>, vector<8x128xf32>
    %c117_i32_339 = arith.constant 117 : i32
    %905 = tpu.dynamic_rotate %680 by %c117_i32_339 dim 1 : vector<8x128xf32>, i32 -> vector<8x128xf32>
    %c5_i32_340 = arith.constant 5 : i32
    %906 = tpu.dynamic_rotate %680 by %c5_i32_340 dim 1 : vector<8x128xf32>, i32 -> vector<8x128xf32>
    %c5_i32_341 = arith.constant 5 : i32
    %907 = vector.broadcast %c5_i32_341 : i32 to vector<8x128xi32>
    %908 = arith.cmpi slt, %2, %907 : vector<8x128xi32>
    %909 = arith.select %908, %905, %906 : vector<8x128xi1>, vector<8x128xf32>
    %910 = arith.mulf %676, %904 : vector<8x128xf32>
    %911 = arith.subf %910, %731 : vector<8x128xf32>
    %912 = math.exp %911 : vector<8x128xf32>
    %913 = arith.addf %897, %912 : vector<8x128xf32>
    %914 = arith.mulf %912, %909 : vector<8x128xf32>
    %915 = arith.addf %899, %914 : vector<8x128xf32>
    %c116_i32_342 = arith.constant 116 : i32
    %916 = tpu.dynamic_rotate %678 by %c116_i32_342 dim 1 : vector<8x128xf32>, i32 -> vector<8x128xf32>
    %c4_i32_343 = arith.constant 4 : i32
    %917 = tpu.dynamic_rotate %678 by %c4_i32_343 dim 1 : vector<8x128xf32>, i32 -> vector<8x128xf32>
    %c4_i32_344 = arith.constant 4 : i32
    %918 = vector.broadcast %c4_i32_344 : i32 to vector<8x128xi32>
    %919 = arith.cmpi slt, %2, %918 : vector<8x128xi32>
    %920 = arith.select %919, %916, %917 : vector<8x128xi1>, vector<8x128xf32>
    %c116_i32_345 = arith.constant 116 : i32
    %921 = tpu.dynamic_rotate %680 by %c116_i32_345 dim 1 : vector<8x128xf32>, i32 -> vector<8x128xf32>
    %c4_i32_346 = arith.constant 4 : i32
    %922 = tpu.dynamic_rotate %680 by %c4_i32_346 dim 1 : vector<8x128xf32>, i32 -> vector<8x128xf32>
    %c4_i32_347 = arith.constant 4 : i32
    %923 = vector.broadcast %c4_i32_347 : i32 to vector<8x128xi32>
    %924 = arith.cmpi slt, %2, %923 : vector<8x128xi32>
    %925 = arith.select %924, %921, %922 : vector<8x128xi1>, vector<8x128xf32>
    %926 = arith.mulf %676, %920 : vector<8x128xf32>
    %927 = arith.subf %926, %731 : vector<8x128xf32>
    %928 = math.exp %927 : vector<8x128xf32>
    %929 = arith.addf %913, %928 : vector<8x128xf32>
    %930 = arith.mulf %928, %925 : vector<8x128xf32>
    %931 = arith.addf %915, %930 : vector<8x128xf32>
    %c115_i32_348 = arith.constant 115 : i32
    %932 = tpu.dynamic_rotate %678 by %c115_i32_348 dim 1 : vector<8x128xf32>, i32 -> vector<8x128xf32>
    %c3_i32_349 = arith.constant 3 : i32
    %933 = tpu.dynamic_rotate %678 by %c3_i32_349 dim 1 : vector<8x128xf32>, i32 -> vector<8x128xf32>
    %c3_i32_350 = arith.constant 3 : i32
    %934 = vector.broadcast %c3_i32_350 : i32 to vector<8x128xi32>
    %935 = arith.cmpi slt, %2, %934 : vector<8x128xi32>
    %936 = arith.select %935, %932, %933 : vector<8x128xi1>, vector<8x128xf32>
    %c115_i32_351 = arith.constant 115 : i32
    %937 = tpu.dynamic_rotate %680 by %c115_i32_351 dim 1 : vector<8x128xf32>, i32 -> vector<8x128xf32>
    %c3_i32_352 = arith.constant 3 : i32
    %938 = tpu.dynamic_rotate %680 by %c3_i32_352 dim 1 : vector<8x128xf32>, i32 -> vector<8x128xf32>
    %c3_i32_353 = arith.constant 3 : i32
    %939 = vector.broadcast %c3_i32_353 : i32 to vector<8x128xi32>
    %940 = arith.cmpi slt, %2, %939 : vector<8x128xi32>
    %941 = arith.select %940, %937, %938 : vector<8x128xi1>, vector<8x128xf32>
    %942 = arith.mulf %676, %936 : vector<8x128xf32>
    %943 = arith.subf %942, %731 : vector<8x128xf32>
    %944 = math.exp %943 : vector<8x128xf32>
    %945 = arith.addf %929, %944 : vector<8x128xf32>
    %946 = arith.mulf %944, %941 : vector<8x128xf32>
    %947 = arith.addf %931, %946 : vector<8x128xf32>
    %c114_i32_354 = arith.constant 114 : i32
    %948 = tpu.dynamic_rotate %678 by %c114_i32_354 dim 1 : vector<8x128xf32>, i32 -> vector<8x128xf32>
    %c2_i32_355 = arith.constant 2 : i32
    %949 = tpu.dynamic_rotate %678 by %c2_i32_355 dim 1 : vector<8x128xf32>, i32 -> vector<8x128xf32>
    %c2_i32_356 = arith.constant 2 : i32
    %950 = vector.broadcast %c2_i32_356 : i32 to vector<8x128xi32>
    %951 = arith.cmpi slt, %2, %950 : vector<8x128xi32>
    %952 = arith.select %951, %948, %949 : vector<8x128xi1>, vector<8x128xf32>
    %c114_i32_357 = arith.constant 114 : i32
    %953 = tpu.dynamic_rotate %680 by %c114_i32_357 dim 1 : vector<8x128xf32>, i32 -> vector<8x128xf32>
    %c2_i32_358 = arith.constant 2 : i32
    %954 = tpu.dynamic_rotate %680 by %c2_i32_358 dim 1 : vector<8x128xf32>, i32 -> vector<8x128xf32>
    %c2_i32_359 = arith.constant 2 : i32
    %955 = vector.broadcast %c2_i32_359 : i32 to vector<8x128xi32>
    %956 = arith.cmpi slt, %2, %955 : vector<8x128xi32>
    %957 = arith.select %956, %953, %954 : vector<8x128xi1>, vector<8x128xf32>
    %958 = arith.mulf %676, %952 : vector<8x128xf32>
    %959 = arith.subf %958, %731 : vector<8x128xf32>
    %960 = math.exp %959 : vector<8x128xf32>
    %961 = arith.addf %945, %960 : vector<8x128xf32>
    %962 = arith.mulf %960, %957 : vector<8x128xf32>
    %963 = arith.addf %947, %962 : vector<8x128xf32>
    %c113_i32_360 = arith.constant 113 : i32
    %964 = tpu.dynamic_rotate %678 by %c113_i32_360 dim 1 : vector<8x128xf32>, i32 -> vector<8x128xf32>
    %c1_i32_361 = arith.constant 1 : i32
    %965 = tpu.dynamic_rotate %678 by %c1_i32_361 dim 1 : vector<8x128xf32>, i32 -> vector<8x128xf32>
    %c1_i32_362 = arith.constant 1 : i32
    %966 = vector.broadcast %c1_i32_362 : i32 to vector<8x128xi32>
    %967 = arith.cmpi slt, %2, %966 : vector<8x128xi32>
    %968 = arith.select %967, %964, %965 : vector<8x128xi1>, vector<8x128xf32>
    %c113_i32_363 = arith.constant 113 : i32
    %969 = tpu.dynamic_rotate %680 by %c113_i32_363 dim 1 : vector<8x128xf32>, i32 -> vector<8x128xf32>
    %c1_i32_364 = arith.constant 1 : i32
    %970 = tpu.dynamic_rotate %680 by %c1_i32_364 dim 1 : vector<8x128xf32>, i32 -> vector<8x128xf32>
    %c1_i32_365 = arith.constant 1 : i32
    %971 = vector.broadcast %c1_i32_365 : i32 to vector<8x128xi32>
    %972 = arith.cmpi slt, %2, %971 : vector<8x128xi32>
    %973 = arith.select %972, %969, %970 : vector<8x128xi1>, vector<8x128xf32>
    %974 = arith.mulf %676, %968 : vector<8x128xf32>
    %975 = arith.subf %974, %731 : vector<8x128xf32>
    %976 = math.exp %975 : vector<8x128xf32>
    %977 = arith.addf %961, %976 : vector<8x128xf32>
    %978 = arith.mulf %976, %973 : vector<8x128xf32>
    %979 = arith.addf %963, %978 : vector<8x128xf32>
    %980 = tpu.reciprocal %977 {approx = true} : vector<8x128xf32> -> vector<8x128xf32>
    %981 = arith.mulf %977, %980 : vector<8x128xf32>
    %cst_366 = arith.constant 2.000000e+00 : f32
    %982 = vector.broadcast %cst_366 : f32 to vector<8x128xf32>
    %983 = arith.subf %982, %981 : vector<8x128xf32>
    %984 = arith.mulf %980, %983 : vector<8x128xf32>
    %985 = arith.mulf %979, %984 : vector<8x128xf32>
    %c2184 = arith.constant 2184 : index
    %c0_367 = arith.constant 0 : index
    %986 = vector.load %arg2[%c2184, %c0_367] : memref<2960x128xf32, #tpu.memory_space<vmem>>, vector<128x128xf32>
    %cst_368 = arith.constant dense<0.000000e+00> : vector<8x128xf32>
    %987 = tpu.matmul %985, %986, %cst_368 {dimension_numbers = #tpu.dot_dimension_numbers<[1], [0], [0], [1], [0, 0, 1, 1], [], []>} : vector<8x128xf32>, vector<128x128xf32>, vector<8x128xf32> -> vector<8x128xf32>
    %c2954 = arith.constant 2954 : index
    %c0_369 = arith.constant 0 : index
    %988 = vector.load %arg2[%c2954, %c0_369] : memref<2960x128xf32, #tpu.memory_space<vmem>>, vector<1x128xf32>
    %989 = vector.broadcast %988 : vector<1x128xf32> to vector<8x128xf32>
    %990 = arith.addf %987, %989 : vector<8x128xf32>
    %991 = math.tanh %990 : vector<8x128xf32>
    %c2312 = arith.constant 2312 : index
    %c0_370 = arith.constant 0 : index
    %992 = vector.load %arg2[%c2312, %c0_370] : memref<2960x128xf32, #tpu.memory_space<vmem>>, vector<128x128xf32>
    %cst_371 = arith.constant dense<0.000000e+00> : vector<8x128xf32>
    %993 = tpu.matmul %991, %992, %cst_371 {dimension_numbers = #tpu.dot_dimension_numbers<[1], [0], [0], [1], [0, 0, 1, 1], [], []>} : vector<8x128xf32>, vector<128x128xf32>, vector<8x128xf32> -> vector<8x128xf32>
    %cst_372 = arith.constant 2.500000e-01 : f32
    %994 = vector.broadcast %cst_372 : f32 to vector<8x128xf32>
    %995 = arith.mulf %993, %994 : vector<8x128xf32>
    %c2440 = arith.constant 2440 : index
    %c0_373 = arith.constant 0 : index
    %996 = vector.load %arg2[%c2440, %c0_373] : memref<2960x128xf32, #tpu.memory_space<vmem>>, vector<128x128xf32>
    %cst_374 = arith.constant dense<0.000000e+00> : vector<8x128xf32>
    %997 = tpu.matmul %991, %996, %cst_374 {dimension_numbers = #tpu.dot_dimension_numbers<[1], [0], [0], [1], [0, 0, 1, 1], [], []>} : vector<8x128xf32>, vector<128x128xf32>, vector<8x128xf32> -> vector<8x128xf32>
    %c2568 = arith.constant 2568 : index
    %c0_375 = arith.constant 0 : index
    %998 = vector.load %arg2[%c2568, %c0_375] : memref<2960x128xf32, #tpu.memory_space<vmem>>, vector<128x128xf32>
    %cst_376 = arith.constant dense<0.000000e+00> : vector<8x128xf32>
    %999 = tpu.matmul %991, %998, %cst_376 {dimension_numbers = #tpu.dot_dimension_numbers<[1], [0], [0], [1], [0, 0, 1, 1], [], []>} : vector<8x128xf32>, vector<128x128xf32>, vector<8x128xf32> -> vector<8x128xf32>
    %c127_i32_377 = arith.constant 127 : i32
    %1000 = tpu.dynamic_rotate %997 by %c127_i32_377 dim 1 : vector<8x128xf32>, i32 -> vector<8x128xf32>
    %c15_i32_378 = arith.constant 15 : i32
    %1001 = tpu.dynamic_rotate %997 by %c15_i32_378 dim 1 : vector<8x128xf32>, i32 -> vector<8x128xf32>
    %c15_i32_379 = arith.constant 15 : i32
    %1002 = vector.broadcast %c15_i32_379 : i32 to vector<8x128xi32>
    %1003 = arith.cmpi slt, %2, %1002 : vector<8x128xi32>
    %1004 = arith.select %1003, %1000, %1001 : vector<8x128xi1>, vector<8x128xf32>
    %1005 = arith.maximumf %997, %1004 : vector<8x128xf32>
    %c127_i32_380 = arith.constant 127 : i32
    %1006 = tpu.dynamic_rotate %997 by %c127_i32_380 dim 1 : vector<8x128xf32>, i32 -> vector<8x128xf32>
    %c15_i32_381 = arith.constant 15 : i32
    %1007 = tpu.dynamic_rotate %997 by %c15_i32_381 dim 1 : vector<8x128xf32>, i32 -> vector<8x128xf32>
    %c15_i32_382 = arith.constant 15 : i32
    %1008 = vector.broadcast %c15_i32_382 : i32 to vector<8x128xi32>
    %1009 = arith.cmpi slt, %2, %1008 : vector<8x128xi32>
    %1010 = arith.select %1009, %1006, %1007 : vector<8x128xi1>, vector<8x128xf32>
    %1011 = arith.minimumf %997, %1010 : vector<8x128xf32>
    %c126_i32_383 = arith.constant 126 : i32
    %1012 = tpu.dynamic_rotate %1005 by %c126_i32_383 dim 1 : vector<8x128xf32>, i32 -> vector<8x128xf32>
    %c14_i32_384 = arith.constant 14 : i32
    %1013 = tpu.dynamic_rotate %1005 by %c14_i32_384 dim 1 : vector<8x128xf32>, i32 -> vector<8x128xf32>
    %c14_i32_385 = arith.constant 14 : i32
    %1014 = vector.broadcast %c14_i32_385 : i32 to vector<8x128xi32>
    %1015 = arith.cmpi slt, %2, %1014 : vector<8x128xi32>
    %1016 = arith.select %1015, %1012, %1013 : vector<8x128xi1>, vector<8x128xf32>
    %1017 = arith.maximumf %1005, %1016 : vector<8x128xf32>
    %c126_i32_386 = arith.constant 126 : i32
    %1018 = tpu.dynamic_rotate %1011 by %c126_i32_386 dim 1 : vector<8x128xf32>, i32 -> vector<8x128xf32>
    %c14_i32_387 = arith.constant 14 : i32
    %1019 = tpu.dynamic_rotate %1011 by %c14_i32_387 dim 1 : vector<8x128xf32>, i32 -> vector<8x128xf32>
    %c14_i32_388 = arith.constant 14 : i32
    %1020 = vector.broadcast %c14_i32_388 : i32 to vector<8x128xi32>
    %1021 = arith.cmpi slt, %2, %1020 : vector<8x128xi32>
    %1022 = arith.select %1021, %1018, %1019 : vector<8x128xi1>, vector<8x128xf32>
    %1023 = arith.minimumf %1011, %1022 : vector<8x128xf32>
    %c124_i32_389 = arith.constant 124 : i32
    %1024 = tpu.dynamic_rotate %1017 by %c124_i32_389 dim 1 : vector<8x128xf32>, i32 -> vector<8x128xf32>
    %c12_i32_390 = arith.constant 12 : i32
    %1025 = tpu.dynamic_rotate %1017 by %c12_i32_390 dim 1 : vector<8x128xf32>, i32 -> vector<8x128xf32>
    %c12_i32_391 = arith.constant 12 : i32
    %1026 = vector.broadcast %c12_i32_391 : i32 to vector<8x128xi32>
    %1027 = arith.cmpi slt, %2, %1026 : vector<8x128xi32>
    %1028 = arith.select %1027, %1024, %1025 : vector<8x128xi1>, vector<8x128xf32>
    %1029 = arith.maximumf %1017, %1028 : vector<8x128xf32>
    %c124_i32_392 = arith.constant 124 : i32
    %1030 = tpu.dynamic_rotate %1023 by %c124_i32_392 dim 1 : vector<8x128xf32>, i32 -> vector<8x128xf32>
    %c12_i32_393 = arith.constant 12 : i32
    %1031 = tpu.dynamic_rotate %1023 by %c12_i32_393 dim 1 : vector<8x128xf32>, i32 -> vector<8x128xf32>
    %c12_i32_394 = arith.constant 12 : i32
    %1032 = vector.broadcast %c12_i32_394 : i32 to vector<8x128xi32>
    %1033 = arith.cmpi slt, %2, %1032 : vector<8x128xi32>
    %1034 = arith.select %1033, %1030, %1031 : vector<8x128xi1>, vector<8x128xf32>
    %1035 = arith.minimumf %1023, %1034 : vector<8x128xf32>
    %c120_i32_395 = arith.constant 120 : i32
    %1036 = tpu.dynamic_rotate %1029 by %c120_i32_395 dim 1 : vector<8x128xf32>, i32 -> vector<8x128xf32>
    %c8_i32_396 = arith.constant 8 : i32
    %1037 = tpu.dynamic_rotate %1029 by %c8_i32_396 dim 1 : vector<8x128xf32>, i32 -> vector<8x128xf32>
    %c8_i32_397 = arith.constant 8 : i32
    %1038 = vector.broadcast %c8_i32_397 : i32 to vector<8x128xi32>
    %1039 = arith.cmpi slt, %2, %1038 : vector<8x128xi32>
    %1040 = arith.select %1039, %1036, %1037 : vector<8x128xi1>, vector<8x128xf32>
    %1041 = arith.maximumf %1029, %1040 : vector<8x128xf32>
    %c120_i32_398 = arith.constant 120 : i32
    %1042 = tpu.dynamic_rotate %1035 by %c120_i32_398 dim 1 : vector<8x128xf32>, i32 -> vector<8x128xf32>
    %c8_i32_399 = arith.constant 8 : i32
    %1043 = tpu.dynamic_rotate %1035 by %c8_i32_399 dim 1 : vector<8x128xf32>, i32 -> vector<8x128xf32>
    %c8_i32_400 = arith.constant 8 : i32
    %1044 = vector.broadcast %c8_i32_400 : i32 to vector<8x128xi32>
    %1045 = arith.cmpi slt, %2, %1044 : vector<8x128xi32>
    %1046 = arith.select %1045, %1042, %1043 : vector<8x128xi1>, vector<8x128xf32>
    %1047 = arith.minimumf %1035, %1046 : vector<8x128xf32>
    %1048 = arith.mulf %995, %1041 : vector<8x128xf32>
    %1049 = arith.mulf %995, %1047 : vector<8x128xf32>
    %1050 = arith.maximumf %1048, %1049 : vector<8x128xf32>
    %cst_401 = arith.constant 0.000000e+00 : f32
    %1051 = vector.broadcast %cst_401 : f32 to vector<8x128xf32>
    %cst_402 = arith.constant 0.000000e+00 : f32
    %1052 = vector.broadcast %cst_402 : f32 to vector<8x128xf32>
    %1053 = arith.mulf %995, %997 : vector<8x128xf32>
    %1054 = arith.subf %1053, %1050 : vector<8x128xf32>
    %1055 = math.exp %1054 : vector<8x128xf32>
    %1056 = arith.addf %1052, %1055 : vector<8x128xf32>
    %1057 = arith.mulf %1055, %999 : vector<8x128xf32>
    %1058 = arith.addf %1051, %1057 : vector<8x128xf32>
    %c127_i32_403 = arith.constant 127 : i32
    %1059 = tpu.dynamic_rotate %997 by %c127_i32_403 dim 1 : vector<8x128xf32>, i32 -> vector<8x128xf32>
    %c15_i32_404 = arith.constant 15 : i32
    %1060 = tpu.dynamic_rotate %997 by %c15_i32_404 dim 1 : vector<8x128xf32>, i32 -> vector<8x128xf32>
    %c15_i32_405 = arith.constant 15 : i32
    %1061 = vector.broadcast %c15_i32_405 : i32 to vector<8x128xi32>
    %1062 = arith.cmpi slt, %2, %1061 : vector<8x128xi32>
    %1063 = arith.select %1062, %1059, %1060 : vector<8x128xi1>, vector<8x128xf32>
    %c127_i32_406 = arith.constant 127 : i32
    %1064 = tpu.dynamic_rotate %999 by %c127_i32_406 dim 1 : vector<8x128xf32>, i32 -> vector<8x128xf32>
    %c15_i32_407 = arith.constant 15 : i32
    %1065 = tpu.dynamic_rotate %999 by %c15_i32_407 dim 1 : vector<8x128xf32>, i32 -> vector<8x128xf32>
    %c15_i32_408 = arith.constant 15 : i32
    %1066 = vector.broadcast %c15_i32_408 : i32 to vector<8x128xi32>
    %1067 = arith.cmpi slt, %2, %1066 : vector<8x128xi32>
    %1068 = arith.select %1067, %1064, %1065 : vector<8x128xi1>, vector<8x128xf32>
    %1069 = arith.mulf %995, %1063 : vector<8x128xf32>
    %1070 = arith.subf %1069, %1050 : vector<8x128xf32>
    %1071 = math.exp %1070 : vector<8x128xf32>
    %1072 = arith.addf %1056, %1071 : vector<8x128xf32>
    %1073 = arith.mulf %1071, %1068 : vector<8x128xf32>
    %1074 = arith.addf %1058, %1073 : vector<8x128xf32>
    %c126_i32_409 = arith.constant 126 : i32
    %1075 = tpu.dynamic_rotate %997 by %c126_i32_409 dim 1 : vector<8x128xf32>, i32 -> vector<8x128xf32>
    %c14_i32_410 = arith.constant 14 : i32
    %1076 = tpu.dynamic_rotate %997 by %c14_i32_410 dim 1 : vector<8x128xf32>, i32 -> vector<8x128xf32>
    %c14_i32_411 = arith.constant 14 : i32
    %1077 = vector.broadcast %c14_i32_411 : i32 to vector<8x128xi32>
    %1078 = arith.cmpi slt, %2, %1077 : vector<8x128xi32>
    %1079 = arith.select %1078, %1075, %1076 : vector<8x128xi1>, vector<8x128xf32>
    %c126_i32_412 = arith.constant 126 : i32
    %1080 = tpu.dynamic_rotate %999 by %c126_i32_412 dim 1 : vector<8x128xf32>, i32 -> vector<8x128xf32>
    %c14_i32_413 = arith.constant 14 : i32
    %1081 = tpu.dynamic_rotate %999 by %c14_i32_413 dim 1 : vector<8x128xf32>, i32 -> vector<8x128xf32>
    %c14_i32_414 = arith.constant 14 : i32
    %1082 = vector.broadcast %c14_i32_414 : i32 to vector<8x128xi32>
    %1083 = arith.cmpi slt, %2, %1082 : vector<8x128xi32>
    %1084 = arith.select %1083, %1080, %1081 : vector<8x128xi1>, vector<8x128xf32>
    %1085 = arith.mulf %995, %1079 : vector<8x128xf32>
    %1086 = arith.subf %1085, %1050 : vector<8x128xf32>
    %1087 = math.exp %1086 : vector<8x128xf32>
    %1088 = arith.addf %1072, %1087 : vector<8x128xf32>
    %1089 = arith.mulf %1087, %1084 : vector<8x128xf32>
    %1090 = arith.addf %1074, %1089 : vector<8x128xf32>
    %c125_i32_415 = arith.constant 125 : i32
    %1091 = tpu.dynamic_rotate %997 by %c125_i32_415 dim 1 : vector<8x128xf32>, i32 -> vector<8x128xf32>
    %c13_i32_416 = arith.constant 13 : i32
    %1092 = tpu.dynamic_rotate %997 by %c13_i32_416 dim 1 : vector<8x128xf32>, i32 -> vector<8x128xf32>
    %c13_i32_417 = arith.constant 13 : i32
    %1093 = vector.broadcast %c13_i32_417 : i32 to vector<8x128xi32>
    %1094 = arith.cmpi slt, %2, %1093 : vector<8x128xi32>
    %1095 = arith.select %1094, %1091, %1092 : vector<8x128xi1>, vector<8x128xf32>
    %c125_i32_418 = arith.constant 125 : i32
    %1096 = tpu.dynamic_rotate %999 by %c125_i32_418 dim 1 : vector<8x128xf32>, i32 -> vector<8x128xf32>
    %c13_i32_419 = arith.constant 13 : i32
    %1097 = tpu.dynamic_rotate %999 by %c13_i32_419 dim 1 : vector<8x128xf32>, i32 -> vector<8x128xf32>
    %c13_i32_420 = arith.constant 13 : i32
    %1098 = vector.broadcast %c13_i32_420 : i32 to vector<8x128xi32>
    %1099 = arith.cmpi slt, %2, %1098 : vector<8x128xi32>
    %1100 = arith.select %1099, %1096, %1097 : vector<8x128xi1>, vector<8x128xf32>
    %1101 = arith.mulf %995, %1095 : vector<8x128xf32>
    %1102 = arith.subf %1101, %1050 : vector<8x128xf32>
    %1103 = math.exp %1102 : vector<8x128xf32>
    %1104 = arith.addf %1088, %1103 : vector<8x128xf32>
    %1105 = arith.mulf %1103, %1100 : vector<8x128xf32>
    %1106 = arith.addf %1090, %1105 : vector<8x128xf32>
    %c124_i32_421 = arith.constant 124 : i32
    %1107 = tpu.dynamic_rotate %997 by %c124_i32_421 dim 1 : vector<8x128xf32>, i32 -> vector<8x128xf32>
    %c12_i32_422 = arith.constant 12 : i32
    %1108 = tpu.dynamic_rotate %997 by %c12_i32_422 dim 1 : vector<8x128xf32>, i32 -> vector<8x128xf32>
    %c12_i32_423 = arith.constant 12 : i32
    %1109 = vector.broadcast %c12_i32_423 : i32 to vector<8x128xi32>
    %1110 = arith.cmpi slt, %2, %1109 : vector<8x128xi32>
    %1111 = arith.select %1110, %1107, %1108 : vector<8x128xi1>, vector<8x128xf32>
    %c124_i32_424 = arith.constant 124 : i32
    %1112 = tpu.dynamic_rotate %999 by %c124_i32_424 dim 1 : vector<8x128xf32>, i32 -> vector<8x128xf32>
    %c12_i32_425 = arith.constant 12 : i32
    %1113 = tpu.dynamic_rotate %999 by %c12_i32_425 dim 1 : vector<8x128xf32>, i32 -> vector<8x128xf32>
    %c12_i32_426 = arith.constant 12 : i32
    %1114 = vector.broadcast %c12_i32_426 : i32 to vector<8x128xi32>
    %1115 = arith.cmpi slt, %2, %1114 : vector<8x128xi32>
    %1116 = arith.select %1115, %1112, %1113 : vector<8x128xi1>, vector<8x128xf32>
    %1117 = arith.mulf %995, %1111 : vector<8x128xf32>
    %1118 = arith.subf %1117, %1050 : vector<8x128xf32>
    %1119 = math.exp %1118 : vector<8x128xf32>
    %1120 = arith.addf %1104, %1119 : vector<8x128xf32>
    %1121 = arith.mulf %1119, %1116 : vector<8x128xf32>
    %1122 = arith.addf %1106, %1121 : vector<8x128xf32>
    %c123_i32_427 = arith.constant 123 : i32
    %1123 = tpu.dynamic_rotate %997 by %c123_i32_427 dim 1 : vector<8x128xf32>, i32 -> vector<8x128xf32>
    %c11_i32_428 = arith.constant 11 : i32
    %1124 = tpu.dynamic_rotate %997 by %c11_i32_428 dim 1 : vector<8x128xf32>, i32 -> vector<8x128xf32>
    %c11_i32_429 = arith.constant 11 : i32
    %1125 = vector.broadcast %c11_i32_429 : i32 to vector<8x128xi32>
    %1126 = arith.cmpi slt, %2, %1125 : vector<8x128xi32>
    %1127 = arith.select %1126, %1123, %1124 : vector<8x128xi1>, vector<8x128xf32>
    %c123_i32_430 = arith.constant 123 : i32
    %1128 = tpu.dynamic_rotate %999 by %c123_i32_430 dim 1 : vector<8x128xf32>, i32 -> vector<8x128xf32>
    %c11_i32_431 = arith.constant 11 : i32
    %1129 = tpu.dynamic_rotate %999 by %c11_i32_431 dim 1 : vector<8x128xf32>, i32 -> vector<8x128xf32>
    %c11_i32_432 = arith.constant 11 : i32
    %1130 = vector.broadcast %c11_i32_432 : i32 to vector<8x128xi32>
    %1131 = arith.cmpi slt, %2, %1130 : vector<8x128xi32>
    %1132 = arith.select %1131, %1128, %1129 : vector<8x128xi1>, vector<8x128xf32>
    %1133 = arith.mulf %995, %1127 : vector<8x128xf32>
    %1134 = arith.subf %1133, %1050 : vector<8x128xf32>
    %1135 = math.exp %1134 : vector<8x128xf32>
    %1136 = arith.addf %1120, %1135 : vector<8x128xf32>
    %1137 = arith.mulf %1135, %1132 : vector<8x128xf32>
    %1138 = arith.addf %1122, %1137 : vector<8x128xf32>
    %c122_i32_433 = arith.constant 122 : i32
    %1139 = tpu.dynamic_rotate %997 by %c122_i32_433 dim 1 : vector<8x128xf32>, i32 -> vector<8x128xf32>
    %c10_i32_434 = arith.constant 10 : i32
    %1140 = tpu.dynamic_rotate %997 by %c10_i32_434 dim 1 : vector<8x128xf32>, i32 -> vector<8x128xf32>
    %c10_i32_435 = arith.constant 10 : i32
    %1141 = vector.broadcast %c10_i32_435 : i32 to vector<8x128xi32>
    %1142 = arith.cmpi slt, %2, %1141 : vector<8x128xi32>
    %1143 = arith.select %1142, %1139, %1140 : vector<8x128xi1>, vector<8x128xf32>
    %c122_i32_436 = arith.constant 122 : i32
    %1144 = tpu.dynamic_rotate %999 by %c122_i32_436 dim 1 : vector<8x128xf32>, i32 -> vector<8x128xf32>
    %c10_i32_437 = arith.constant 10 : i32
    %1145 = tpu.dynamic_rotate %999 by %c10_i32_437 dim 1 : vector<8x128xf32>, i32 -> vector<8x128xf32>
    %c10_i32_438 = arith.constant 10 : i32
    %1146 = vector.broadcast %c10_i32_438 : i32 to vector<8x128xi32>
    %1147 = arith.cmpi slt, %2, %1146 : vector<8x128xi32>
    %1148 = arith.select %1147, %1144, %1145 : vector<8x128xi1>, vector<8x128xf32>
    %1149 = arith.mulf %995, %1143 : vector<8x128xf32>
    %1150 = arith.subf %1149, %1050 : vector<8x128xf32>
    %1151 = math.exp %1150 : vector<8x128xf32>
    %1152 = arith.addf %1136, %1151 : vector<8x128xf32>
    %1153 = arith.mulf %1151, %1148 : vector<8x128xf32>
    %1154 = arith.addf %1138, %1153 : vector<8x128xf32>
    %c121_i32_439 = arith.constant 121 : i32
    %1155 = tpu.dynamic_rotate %997 by %c121_i32_439 dim 1 : vector<8x128xf32>, i32 -> vector<8x128xf32>
    %c9_i32_440 = arith.constant 9 : i32
    %1156 = tpu.dynamic_rotate %997 by %c9_i32_440 dim 1 : vector<8x128xf32>, i32 -> vector<8x128xf32>
    %c9_i32_441 = arith.constant 9 : i32
    %1157 = vector.broadcast %c9_i32_441 : i32 to vector<8x128xi32>
    %1158 = arith.cmpi slt, %2, %1157 : vector<8x128xi32>
    %1159 = arith.select %1158, %1155, %1156 : vector<8x128xi1>, vector<8x128xf32>
    %c121_i32_442 = arith.constant 121 : i32
    %1160 = tpu.dynamic_rotate %999 by %c121_i32_442 dim 1 : vector<8x128xf32>, i32 -> vector<8x128xf32>
    %c9_i32_443 = arith.constant 9 : i32
    %1161 = tpu.dynamic_rotate %999 by %c9_i32_443 dim 1 : vector<8x128xf32>, i32 -> vector<8x128xf32>
    %c9_i32_444 = arith.constant 9 : i32
    %1162 = vector.broadcast %c9_i32_444 : i32 to vector<8x128xi32>
    %1163 = arith.cmpi slt, %2, %1162 : vector<8x128xi32>
    %1164 = arith.select %1163, %1160, %1161 : vector<8x128xi1>, vector<8x128xf32>
    %1165 = arith.mulf %995, %1159 : vector<8x128xf32>
    %1166 = arith.subf %1165, %1050 : vector<8x128xf32>
    %1167 = math.exp %1166 : vector<8x128xf32>
    %1168 = arith.addf %1152, %1167 : vector<8x128xf32>
    %1169 = arith.mulf %1167, %1164 : vector<8x128xf32>
    %1170 = arith.addf %1154, %1169 : vector<8x128xf32>
    %c120_i32_445 = arith.constant 120 : i32
    %1171 = tpu.dynamic_rotate %997 by %c120_i32_445 dim 1 : vector<8x128xf32>, i32 -> vector<8x128xf32>
    %c8_i32_446 = arith.constant 8 : i32
    %1172 = tpu.dynamic_rotate %997 by %c8_i32_446 dim 1 : vector<8x128xf32>, i32 -> vector<8x128xf32>
    %c8_i32_447 = arith.constant 8 : i32
    %1173 = vector.broadcast %c8_i32_447 : i32 to vector<8x128xi32>
    %1174 = arith.cmpi slt, %2, %1173 : vector<8x128xi32>
    %1175 = arith.select %1174, %1171, %1172 : vector<8x128xi1>, vector<8x128xf32>
    %c120_i32_448 = arith.constant 120 : i32
    %1176 = tpu.dynamic_rotate %999 by %c120_i32_448 dim 1 : vector<8x128xf32>, i32 -> vector<8x128xf32>
    %c8_i32_449 = arith.constant 8 : i32
    %1177 = tpu.dynamic_rotate %999 by %c8_i32_449 dim 1 : vector<8x128xf32>, i32 -> vector<8x128xf32>
    %c8_i32_450 = arith.constant 8 : i32
    %1178 = vector.broadcast %c8_i32_450 : i32 to vector<8x128xi32>
    %1179 = arith.cmpi slt, %2, %1178 : vector<8x128xi32>
    %1180 = arith.select %1179, %1176, %1177 : vector<8x128xi1>, vector<8x128xf32>
    %1181 = arith.mulf %995, %1175 : vector<8x128xf32>
    %1182 = arith.subf %1181, %1050 : vector<8x128xf32>
    %1183 = math.exp %1182 : vector<8x128xf32>
    %1184 = arith.addf %1168, %1183 : vector<8x128xf32>
    %1185 = arith.mulf %1183, %1180 : vector<8x128xf32>
    %1186 = arith.addf %1170, %1185 : vector<8x128xf32>
    %c119_i32_451 = arith.constant 119 : i32
    %1187 = tpu.dynamic_rotate %997 by %c119_i32_451 dim 1 : vector<8x128xf32>, i32 -> vector<8x128xf32>
    %c7_i32_452 = arith.constant 7 : i32
    %1188 = tpu.dynamic_rotate %997 by %c7_i32_452 dim 1 : vector<8x128xf32>, i32 -> vector<8x128xf32>
    %c7_i32_453 = arith.constant 7 : i32
    %1189 = vector.broadcast %c7_i32_453 : i32 to vector<8x128xi32>
    %1190 = arith.cmpi slt, %2, %1189 : vector<8x128xi32>
    %1191 = arith.select %1190, %1187, %1188 : vector<8x128xi1>, vector<8x128xf32>
    %c119_i32_454 = arith.constant 119 : i32
    %1192 = tpu.dynamic_rotate %999 by %c119_i32_454 dim 1 : vector<8x128xf32>, i32 -> vector<8x128xf32>
    %c7_i32_455 = arith.constant 7 : i32
    %1193 = tpu.dynamic_rotate %999 by %c7_i32_455 dim 1 : vector<8x128xf32>, i32 -> vector<8x128xf32>
    %c7_i32_456 = arith.constant 7 : i32
    %1194 = vector.broadcast %c7_i32_456 : i32 to vector<8x128xi32>
    %1195 = arith.cmpi slt, %2, %1194 : vector<8x128xi32>
    %1196 = arith.select %1195, %1192, %1193 : vector<8x128xi1>, vector<8x128xf32>
    %1197 = arith.mulf %995, %1191 : vector<8x128xf32>
    %1198 = arith.subf %1197, %1050 : vector<8x128xf32>
    %1199 = math.exp %1198 : vector<8x128xf32>
    %1200 = arith.addf %1184, %1199 : vector<8x128xf32>
    %1201 = arith.mulf %1199, %1196 : vector<8x128xf32>
    %1202 = arith.addf %1186, %1201 : vector<8x128xf32>
    %c118_i32_457 = arith.constant 118 : i32
    %1203 = tpu.dynamic_rotate %997 by %c118_i32_457 dim 1 : vector<8x128xf32>, i32 -> vector<8x128xf32>
    %c6_i32_458 = arith.constant 6 : i32
    %1204 = tpu.dynamic_rotate %997 by %c6_i32_458 dim 1 : vector<8x128xf32>, i32 -> vector<8x128xf32>
    %c6_i32_459 = arith.constant 6 : i32
    %1205 = vector.broadcast %c6_i32_459 : i32 to vector<8x128xi32>
    %1206 = arith.cmpi slt, %2, %1205 : vector<8x128xi32>
    %1207 = arith.select %1206, %1203, %1204 : vector<8x128xi1>, vector<8x128xf32>
    %c118_i32_460 = arith.constant 118 : i32
    %1208 = tpu.dynamic_rotate %999 by %c118_i32_460 dim 1 : vector<8x128xf32>, i32 -> vector<8x128xf32>
    %c6_i32_461 = arith.constant 6 : i32
    %1209 = tpu.dynamic_rotate %999 by %c6_i32_461 dim 1 : vector<8x128xf32>, i32 -> vector<8x128xf32>
    %c6_i32_462 = arith.constant 6 : i32
    %1210 = vector.broadcast %c6_i32_462 : i32 to vector<8x128xi32>
    %1211 = arith.cmpi slt, %2, %1210 : vector<8x128xi32>
    %1212 = arith.select %1211, %1208, %1209 : vector<8x128xi1>, vector<8x128xf32>
    %1213 = arith.mulf %995, %1207 : vector<8x128xf32>
    %1214 = arith.subf %1213, %1050 : vector<8x128xf32>
    %1215 = math.exp %1214 : vector<8x128xf32>
    %1216 = arith.addf %1200, %1215 : vector<8x128xf32>
    %1217 = arith.mulf %1215, %1212 : vector<8x128xf32>
    %1218 = arith.addf %1202, %1217 : vector<8x128xf32>
    %c117_i32_463 = arith.constant 117 : i32
    %1219 = tpu.dynamic_rotate %997 by %c117_i32_463 dim 1 : vector<8x128xf32>, i32 -> vector<8x128xf32>
    %c5_i32_464 = arith.constant 5 : i32
    %1220 = tpu.dynamic_rotate %997 by %c5_i32_464 dim 1 : vector<8x128xf32>, i32 -> vector<8x128xf32>
    %c5_i32_465 = arith.constant 5 : i32
    %1221 = vector.broadcast %c5_i32_465 : i32 to vector<8x128xi32>
    %1222 = arith.cmpi slt, %2, %1221 : vector<8x128xi32>
    %1223 = arith.select %1222, %1219, %1220 : vector<8x128xi1>, vector<8x128xf32>
    %c117_i32_466 = arith.constant 117 : i32
    %1224 = tpu.dynamic_rotate %999 by %c117_i32_466 dim 1 : vector<8x128xf32>, i32 -> vector<8x128xf32>
    %c5_i32_467 = arith.constant 5 : i32
    %1225 = tpu.dynamic_rotate %999 by %c5_i32_467 dim 1 : vector<8x128xf32>, i32 -> vector<8x128xf32>
    %c5_i32_468 = arith.constant 5 : i32
    %1226 = vector.broadcast %c5_i32_468 : i32 to vector<8x128xi32>
    %1227 = arith.cmpi slt, %2, %1226 : vector<8x128xi32>
    %1228 = arith.select %1227, %1224, %1225 : vector<8x128xi1>, vector<8x128xf32>
    %1229 = arith.mulf %995, %1223 : vector<8x128xf32>
    %1230 = arith.subf %1229, %1050 : vector<8x128xf32>
    %1231 = math.exp %1230 : vector<8x128xf32>
    %1232 = arith.addf %1216, %1231 : vector<8x128xf32>
    %1233 = arith.mulf %1231, %1228 : vector<8x128xf32>
    %1234 = arith.addf %1218, %1233 : vector<8x128xf32>
    %c116_i32_469 = arith.constant 116 : i32
    %1235 = tpu.dynamic_rotate %997 by %c116_i32_469 dim 1 : vector<8x128xf32>, i32 -> vector<8x128xf32>
    %c4_i32_470 = arith.constant 4 : i32
    %1236 = tpu.dynamic_rotate %997 by %c4_i32_470 dim 1 : vector<8x128xf32>, i32 -> vector<8x128xf32>
    %c4_i32_471 = arith.constant 4 : i32
    %1237 = vector.broadcast %c4_i32_471 : i32 to vector<8x128xi32>
    %1238 = arith.cmpi slt, %2, %1237 : vector<8x128xi32>
    %1239 = arith.select %1238, %1235, %1236 : vector<8x128xi1>, vector<8x128xf32>
    %c116_i32_472 = arith.constant 116 : i32
    %1240 = tpu.dynamic_rotate %999 by %c116_i32_472 dim 1 : vector<8x128xf32>, i32 -> vector<8x128xf32>
    %c4_i32_473 = arith.constant 4 : i32
    %1241 = tpu.dynamic_rotate %999 by %c4_i32_473 dim 1 : vector<8x128xf32>, i32 -> vector<8x128xf32>
    %c4_i32_474 = arith.constant 4 : i32
    %1242 = vector.broadcast %c4_i32_474 : i32 to vector<8x128xi32>
    %1243 = arith.cmpi slt, %2, %1242 : vector<8x128xi32>
    %1244 = arith.select %1243, %1240, %1241 : vector<8x128xi1>, vector<8x128xf32>
    %1245 = arith.mulf %995, %1239 : vector<8x128xf32>
    %1246 = arith.subf %1245, %1050 : vector<8x128xf32>
    %1247 = math.exp %1246 : vector<8x128xf32>
    %1248 = arith.addf %1232, %1247 : vector<8x128xf32>
    %1249 = arith.mulf %1247, %1244 : vector<8x128xf32>
    %1250 = arith.addf %1234, %1249 : vector<8x128xf32>
    %c115_i32_475 = arith.constant 115 : i32
    %1251 = tpu.dynamic_rotate %997 by %c115_i32_475 dim 1 : vector<8x128xf32>, i32 -> vector<8x128xf32>
    %c3_i32_476 = arith.constant 3 : i32
    %1252 = tpu.dynamic_rotate %997 by %c3_i32_476 dim 1 : vector<8x128xf32>, i32 -> vector<8x128xf32>
    %c3_i32_477 = arith.constant 3 : i32
    %1253 = vector.broadcast %c3_i32_477 : i32 to vector<8x128xi32>
    %1254 = arith.cmpi slt, %2, %1253 : vector<8x128xi32>
    %1255 = arith.select %1254, %1251, %1252 : vector<8x128xi1>, vector<8x128xf32>
    %c115_i32_478 = arith.constant 115 : i32
    %1256 = tpu.dynamic_rotate %999 by %c115_i32_478 dim 1 : vector<8x128xf32>, i32 -> vector<8x128xf32>
    %c3_i32_479 = arith.constant 3 : i32
    %1257 = tpu.dynamic_rotate %999 by %c3_i32_479 dim 1 : vector<8x128xf32>, i32 -> vector<8x128xf32>
    %c3_i32_480 = arith.constant 3 : i32
    %1258 = vector.broadcast %c3_i32_480 : i32 to vector<8x128xi32>
    %1259 = arith.cmpi slt, %2, %1258 : vector<8x128xi32>
    %1260 = arith.select %1259, %1256, %1257 : vector<8x128xi1>, vector<8x128xf32>
    %1261 = arith.mulf %995, %1255 : vector<8x128xf32>
    %1262 = arith.subf %1261, %1050 : vector<8x128xf32>
    %1263 = math.exp %1262 : vector<8x128xf32>
    %1264 = arith.addf %1248, %1263 : vector<8x128xf32>
    %1265 = arith.mulf %1263, %1260 : vector<8x128xf32>
    %1266 = arith.addf %1250, %1265 : vector<8x128xf32>
    %c114_i32_481 = arith.constant 114 : i32
    %1267 = tpu.dynamic_rotate %997 by %c114_i32_481 dim 1 : vector<8x128xf32>, i32 -> vector<8x128xf32>
    %c2_i32_482 = arith.constant 2 : i32
    %1268 = tpu.dynamic_rotate %997 by %c2_i32_482 dim 1 : vector<8x128xf32>, i32 -> vector<8x128xf32>
    %c2_i32_483 = arith.constant 2 : i32
    %1269 = vector.broadcast %c2_i32_483 : i32 to vector<8x128xi32>
    %1270 = arith.cmpi slt, %2, %1269 : vector<8x128xi32>
    %1271 = arith.select %1270, %1267, %1268 : vector<8x128xi1>, vector<8x128xf32>
    %c114_i32_484 = arith.constant 114 : i32
    %1272 = tpu.dynamic_rotate %999 by %c114_i32_484 dim 1 : vector<8x128xf32>, i32 -> vector<8x128xf32>
    %c2_i32_485 = arith.constant 2 : i32
    %1273 = tpu.dynamic_rotate %999 by %c2_i32_485 dim 1 : vector<8x128xf32>, i32 -> vector<8x128xf32>
    %c2_i32_486 = arith.constant 2 : i32
    %1274 = vector.broadcast %c2_i32_486 : i32 to vector<8x128xi32>
    %1275 = arith.cmpi slt, %2, %1274 : vector<8x128xi32>
    %1276 = arith.select %1275, %1272, %1273 : vector<8x128xi1>, vector<8x128xf32>
    %1277 = arith.mulf %995, %1271 : vector<8x128xf32>
    %1278 = arith.subf %1277, %1050 : vector<8x128xf32>
    %1279 = math.exp %1278 : vector<8x128xf32>
    %1280 = arith.addf %1264, %1279 : vector<8x128xf32>
    %1281 = arith.mulf %1279, %1276 : vector<8x128xf32>
    %1282 = arith.addf %1266, %1281 : vector<8x128xf32>
    %c113_i32_487 = arith.constant 113 : i32
    %1283 = tpu.dynamic_rotate %997 by %c113_i32_487 dim 1 : vector<8x128xf32>, i32 -> vector<8x128xf32>
    %c1_i32_488 = arith.constant 1 : i32
    %1284 = tpu.dynamic_rotate %997 by %c1_i32_488 dim 1 : vector<8x128xf32>, i32 -> vector<8x128xf32>
    %c1_i32_489 = arith.constant 1 : i32
    %1285 = vector.broadcast %c1_i32_489 : i32 to vector<8x128xi32>
    %1286 = arith.cmpi slt, %2, %1285 : vector<8x128xi32>
    %1287 = arith.select %1286, %1283, %1284 : vector<8x128xi1>, vector<8x128xf32>
    %c113_i32_490 = arith.constant 113 : i32
    %1288 = tpu.dynamic_rotate %999 by %c113_i32_490 dim 1 : vector<8x128xf32>, i32 -> vector<8x128xf32>
    %c1_i32_491 = arith.constant 1 : i32
    %1289 = tpu.dynamic_rotate %999 by %c1_i32_491 dim 1 : vector<8x128xf32>, i32 -> vector<8x128xf32>
    %c1_i32_492 = arith.constant 1 : i32
    %1290 = vector.broadcast %c1_i32_492 : i32 to vector<8x128xi32>
    %1291 = arith.cmpi slt, %2, %1290 : vector<8x128xi32>
    %1292 = arith.select %1291, %1288, %1289 : vector<8x128xi1>, vector<8x128xf32>
    %1293 = arith.mulf %995, %1287 : vector<8x128xf32>
    %1294 = arith.subf %1293, %1050 : vector<8x128xf32>
    %1295 = math.exp %1294 : vector<8x128xf32>
    %1296 = arith.addf %1280, %1295 : vector<8x128xf32>
    %1297 = arith.mulf %1295, %1292 : vector<8x128xf32>
    %1298 = arith.addf %1282, %1297 : vector<8x128xf32>
    %1299 = tpu.reciprocal %1296 {approx = true} : vector<8x128xf32> -> vector<8x128xf32>
    %1300 = arith.mulf %1296, %1299 : vector<8x128xf32>
    %cst_493 = arith.constant 2.000000e+00 : f32
    %1301 = vector.broadcast %cst_493 : f32 to vector<8x128xf32>
    %1302 = arith.subf %1301, %1300 : vector<8x128xf32>
    %1303 = arith.mulf %1299, %1302 : vector<8x128xf32>
    %1304 = arith.mulf %1298, %1303 : vector<8x128xf32>
    %c2696 = arith.constant 2696 : index
    %c0_494 = arith.constant 0 : index
    %1305 = vector.load %arg2[%c2696, %c0_494] : memref<2960x128xf32, #tpu.memory_space<vmem>>, vector<128x128xf32>
    %cst_495 = arith.constant dense<0.000000e+00> : vector<8x128xf32>
    %1306 = tpu.matmul %1304, %1305, %cst_495 {dimension_numbers = #tpu.dot_dimension_numbers<[1], [0], [0], [1], [0, 0, 1, 1], [], []>} : vector<8x128xf32>, vector<128x128xf32>, vector<8x128xf32> -> vector<8x128xf32>
    %c2955 = arith.constant 2955 : index
    %c0_496 = arith.constant 0 : index
    %1307 = vector.load %arg2[%c2955, %c0_496] : memref<2960x128xf32, #tpu.memory_space<vmem>>, vector<1x128xf32>
    %1308 = vector.broadcast %1307 : vector<1x128xf32> to vector<8x128xf32>
    %1309 = arith.addf %1306, %1308 : vector<8x128xf32>
    %1310 = math.tanh %1309 : vector<8x128xf32>
    %c2824 = arith.constant 2824 : index
    %c0_497 = arith.constant 0 : index
    %1311 = vector.load %arg2[%c2824, %c0_497] : memref<2960x128xf32, #tpu.memory_space<vmem>>, vector<128x128xf32>
    %cst_498 = arith.constant dense<0.000000e+00> : vector<8x128xf32>
    %1312 = tpu.matmul %1310, %1311, %cst_498 {dimension_numbers = #tpu.dot_dimension_numbers<[1], [0], [0], [1], [0, 0, 1, 1], [], []>} : vector<8x128xf32>, vector<128x128xf32>, vector<8x128xf32> -> vector<8x128xf32>
    %c2956 = arith.constant 2956 : index
    %c0_499 = arith.constant 0 : index
    %1313 = vector.load %arg2[%c2956, %c0_499] : memref<2960x128xf32, #tpu.memory_space<vmem>>, vector<1x128xf32>
    %1314 = vector.broadcast %1313 : vector<1x128xf32> to vector<8x128xf32>
    %1315 = arith.addf %1312, %1314 : vector<8x128xf32>
    %1316 = arith.addf %672, %1315 : vector<8x128xf32>
    %c0_500 = arith.constant 0 : index
    %c0_501 = arith.constant 0 : index
    %1317 = vector.load %arg3[%c0_500, %c0_501] : memref<8x128xf32, #tpu.memory_space<vmem>>, vector<8x128xf32>
    tpu.vector_store %arg3[%c0_500, %c0_501], %1316 {strides = array<i32>} : memref<8x128xf32, #tpu.memory_space<vmem>>, vector<8x128xf32>,
    return
  }
  func.func @transform_0(%arg0: i32) -> (i32, i32) {
    %c0_i32 = arith.constant 0 : i32
    %c0_i32_0 = arith.constant 0 : i32
    return %arg0, %c0_i32 : i32, i32
  }
  func.func @transform_1(%arg0: i32) -> (i32, i32) {
    %c0_i32 = arith.constant 0 : i32
    %c0_i32_0 = arith.constant 0 : i32
    %c0_i32_1 = arith.constant 0 : i32
    return %c0_i32, %c0_i32_0 : i32, i32
  }
  func.func @transform_2(%arg0: i32) -> (i32, i32) {
    %c0_i32 = arith.constant 0 : i32
    %c0_i32_0 = arith.constant 0 : i32
    return %arg0, %c0_i32 : i32, i32
  }
}

</mosaic_0001>

<llo_original>
// kernel: tpu_custom_call.1
$region0: #{tpu_custom_call.1}
  #allocation0 [shape = 'u32[]', space=smem, size = 0x4, offset = 0x4, fixed_abs, tag = 'smem constant byte address 0x4 - core index']
  #allocation1 [shape = 'u32[72,128]{1,0:T(1,128)}', space=vmem, size = 0x9000, scoped, tag = 'internal scratch']
  %s0 = inlined_call_operand.hbm [shape: f32[8,128], index: 0, kind: input, shape index: {}]
  %s1 = inlined_call_operand.hbm [shape: f32[2960,128], index: 1, kind: input, shape index: {}]
  %s2 = inlined_call_operand.hbm [shape: f32[8,128], index: 2, kind: output, shape index: {}]
  %s3 = sld [smem:[#allocation0]]
  $region26: #{tpu_custom_call.1} parent=0
    _
  %s5 = ssub.s32 1, %s3
  %s6 = scalar_select 0, %s5, %s3
  $region1: #{tpu_custom_call.1} parent=0
    #allocation2 [shape = 'u8[4096]{0}', space=vmem, size = 0x1000, scoped, tag = 'input window, operand 0, single buffered']
    #allocation3 [shape = 's32[1]{0}', space=sflag, size = 0x4, scoped, tag = 'scoped memory for tpu_custom_call.1']
    #allocation4 [shape = 's32[1]{0}', space=sflag, size = 0x4, scoped, tag = 'scoped memory for tpu_custom_call.1']
    #allocation5 [shape = 'u8[1515520]{0}', space=vmem, size = 0x172000, scoped, tag = 'input window, operand 1, single buffered']
    #allocation6 [shape = 's32[1]{0}', space=sflag, size = 0x4, scoped, tag = 'scoped memory for tpu_custom_call.1']
    #allocation7 [shape = 'u8[4096]{0}', space=vmem, size = 0x1000, scoped, tag = 'output window, operand 0, single buffered']
    %7 = vsyncpa [#allocation3], 0
    %8 = vsyncpa [#allocation6], 0
    %9 = vsyncpa [#allocation4], 0
    // Predicated region
    $region2: #{tpu_custom_call.1} parent=1 // pred_check
      _
    $region3: #{tpu_custom_call.1} parent=1 // pred_check_branch
      %11 = sbr.rel (0) target = $region5
    $region4: #{tpu_custom_call.1} parent=1 // pred_region
      %13 = vsyncadd [#allocation3], 0
      %s15 = sshll.u32 %s0, 4
      %s16 = int_to_ptr.hbm [resolvable:$true] %s15
      %s17 = sshll.u32 [#allocation2], 4
      %s18 = int_to_ptr.vmem [resolvable:$true] %s17
      %20 = dma.hbm_to_vmem [thread:$0]  %s16, 128, %s18, [#allocation3]
    $region5: #{tpu_custom_call.1} parent=1 // pred_fallthru
      _
    // Predicated region
    $region6: #{tpu_custom_call.1} parent=1 // pred_check
      _
    $region7: #{tpu_custom_call.1} parent=1 // pred_check_branch
      %22 = sbr.rel (0) target = $region9
    $region8: #{tpu_custom_call.1} parent=1 // pred_region
      %24 = vsyncadd [#allocation6], 0
      %s25 = sshll.u32 %s1, 4
      %s26 = int_to_ptr.hbm [resolvable:$true] %s25
      %s27 = sshll.u32 [#allocation5], 4
      %s28 = int_to_ptr.vmem [resolvable:$true] %s27
      %33 = dma.hbm_to_vmem [thread:$0]  %s26, 47360, %s28, [#allocation6], 128, 128, 8
    $region9: #{tpu_custom_call.1} parent=1 // pred_fallthru
      _
    // Predicated region
    $region10: #{tpu_custom_call.1} parent=1 // pred_check
      _
    $region11: #{tpu_custom_call.1} parent=1 // pred_check_branch
      %35 = sbr.rel (0) target = $region13
    $region12: #{tpu_custom_call.1} parent=1 // pred_region
      %37 = dma.done [#allocation3], 128
    $region13: #{tpu_custom_call.1} parent=1 // pred_fallthru
      _
    // Predicated region
    $region14: #{tpu_custom_call.1} parent=1 // pred_check
      _
    $region15: #{tpu_custom_call.1} parent=1 // pred_check_branch
      %39 = sbr.rel (0) target = $region17
    $region16: #{tpu_custom_call.1} parent=1 // pred_region
      %41 = dma.done [#allocation6], 47360
    $region17: #{tpu_custom_call.1} parent=1 // pred_fallthru
      _
    %v42 = vlaneseq
    %v43 = vand.u32 %v42, 127
    %v44 = vand.u32 %v43, 15
    %v45 = vld [vmem:[#allocation2] sm:$0xff]
    %v46 = vld [vmem:[#allocation5] sm:$0xff]
    %v47 = vld [vmem:[#allocation5 + $0x8] sm:$0xff]
    %v48 = vld [vmem:[#allocation5 + $0x10] sm:$0xff]
    %v49 = vld [vmem:[#allocation5 + $0x18] sm:$0xff]
    %v50 = vld [vmem:[#allocation5 + $0x20] sm:$0xff]
    %v51 = vld [vmem:[#allocation5 + $0x28] sm:$0xff]
    %v52 = vld [vmem:[#allocation5 + $0x30] sm:$0xff]
    %v53 = vld [vmem:[#allocation5 + $0x38] sm:$0xff]
    %v54 = vld [vmem:[#allocation5 + $0x40] sm:$0xff]
    %v55 = vld [vmem:[#allocation5 + $0x48] sm:$0xff]
    %v56 = vld [vmem:[#allocation5 + $0x50] sm:$0xff]
    %v57 = vld [vmem:[#allocation5 + $0x58] sm:$0xff]
    %v58 = vld [vmem:[#allocation5 + $0x60] sm:$0xff]
    %v59 = vld [vmem:[#allocation5 + $0x68] sm:$0xff]
    %v60 = vld [vmem:[#allocation5 + $0x70] sm:$0xff]
    %v61 = vld [vmem:[#allocation5 + $0x78] sm:$0xff]
    %v62 = vld [vmem:[#allocation5 + $0x580] sm:$0x1]
    %v63 = vperm.slane %v62, 0
    %64 = vmatpush.msra.mxu0 %v61
    %65 = vmatpush.msra.mxu0 %v60
    %66 = vmatpush.msra.mxu0 %v59
    %67 = vmatpush.msra.mxu0 %v58
    %68 = vmatpush.msra.mxu0 %v57
    %69 = vmatpush.msra.mxu0 %v56
    %70 = vmatpush.msra.mxu0 %v55
    %71 = vmatpush.msra.mxu0 %v54
    %72 = vmatpush.msra.mxu0 %v53
    %73 = vmatpush.msra.mxu0 %v52
    %74 = vmatpush.msra.mxu0 %v51
    %75 = vmatpush.msra.mxu0 %v50
    %76 = vmatpush.msra.mxu0 %v49
    %77 = vmatpush.msra.mxu0 %v48
    %78 = vmatpush.msra.mxu0 %v47
    %79 = vmatpush.msra.mxu0 %v46
    %80 = vmatmul.f32.gmra.mxu0 %v45
    %v81 = vpop.f32.mrf.mxu0
    %v82 = vadd.f32 %v63, %v81
    %83 = vdwg.mxu0
    %v84 = vtanh.pop %v82
    %v85 = vld [vmem:[#allocation5 + $0x80] sm:$0xff]
    %v86 = vld [vmem:[#allocation5 + $0x88] sm:$0xff]
    %v87 = vld [vmem:[#allocation5 + $0x90] sm:$0xff]
    %v88 = vld [vmem:[#allocation5 + $0x98] sm:$0xff]
    %v89 = vld [vmem:[#allocation5 + $0xa0] sm:$0xff]
    %v90 = vld [vmem:[#allocation5 + $0xa8] sm:$0xff]
    %v91 = vld [vmem:[#allocation5 + $0xb0] sm:$0xff]
    %v92 = vld [vmem:[#allocation5 + $0xb8] sm:$0xff]
    %v93 = vld [vmem:[#allocation5 + $0xc0] sm:$0xff]
    %v94 = vld [vmem:[#allocation5 + $0xc8] sm:$0xff]
    %v95 = vld [vmem:[#allocation5 + $0xd0] sm:$0xff]
    %v96 = vld [vmem:[#allocation5 + $0xd8] sm:$0xff]
    %v97 = vld [vmem:[#allocation5 + $0xe0] sm:$0xff]
    %v98 = vld [vmem:[#allocation5 + $0xe8] sm:$0xff]
    %v99 = vld [vmem:[#allocation5 + $0xf0] sm:$0xff]
    %v100 = vld [vmem:[#allocation5 + $0xf8] sm:$0xff]
    %v101 = vld [vmem:[#allocation5 + $0x581] sm:$0x1]
    %v102 = vperm.slane %v101, 0
    %103 = vmatpush.msra.mxu0 %v100
    %104 = vmatpush.msra.mxu0 %v99
    %105 = vmatpush.msra.mxu0 %v98
    %106 = vmatpush.msra.mxu0 %v97
    %107 = vmatpush.msra.mxu0 %v96
    %108 = vmatpush.msra.mxu0 %v95
    %109 = vmatpush.msra.mxu0 %v94
    %110 = vmatpush.msra.mxu0 %v93
    %111 = vmatpush.msra.mxu0 %v92
    %112 = vmatpush.msra.mxu0 %v91
    %113 = vmatpush.msra.mxu0 %v90
    %114 = vmatpush.msra.mxu0 %v89
    %115 = vmatpush.msra.mxu0 %v88
    %116 = vmatpush.msra.mxu0 %v87
    %117 = vmatpush.msra.mxu0 %v86
    %118 = vmatpush.msra.mxu0 %v85
    %119 = vmatmul.f32.gmra.mxu0 %v84
    %v120 = vpop.f32.mrf.mxu0
    %v121 = vadd.f32 %v102, %v120
    %122 = vdwg.mxu0
    %v123 = vld [vmem:[#allocation5 + $0x100] sm:$0xff]
    %v124 = vld [vmem:[#allocation5 + $0x108] sm:$0xff]
    %v125 = vld [vmem:[#allocation5 + $0x110] sm:$0xff]
    %v126 = vld [vmem:[#allocation5 + $0x118] sm:$0xff]
    %v127 = vld [vmem:[#allocation5 + $0x120] sm:$0xff]
    %v128 = vld [vmem:[#allocation5 + $0x128] sm:$0xff]
    %v129 = vld [vmem:[#allocation5 + $0x130] sm:$0xff]
    %v130 = vld [vmem:[#allocation5 + $0x138] sm:$0xff]
    %v131 = vld [vmem:[#allocation5 + $0x140] sm:$0xff]
    %v132 = vld [vmem:[#allocation5 + $0x148] sm:$0xff]
    %v133 = vld [vmem:[#allocation5 + $0x150] sm:$0xff]
    %v134 = vld [vmem:[#allocation5 + $0x158] sm:$0xff]
    %v135 = vld [vmem:[#allocation5 + $0x160] sm:$0xff]
    %v136 = vld [vmem:[#allocation5 + $0x168] sm:$0xff]
    %v137 = vld [vmem:[#allocation5 + $0x170] sm:$0xff]
    %v138 = vld [vmem:[#allocation5 + $0x178] sm:$0xff]
    %139 = vmatpush.msra.mxu0 %v138
    %140 = vmatpush.msra.mxu0 %v137
    %141 = vmatpush.msra.mxu0 %v136
    %142 = vmatpush.msra.mxu0 %v135
    %143 = vmatpush.msra.mxu0 %v134
    %144 = vmatpush.msra.mxu0 %v133
    %145 = vmatpush.msra.mxu0 %v132
    %146 = vmatpush.msra.mxu0 %v131
    %147 = vmatpush.msra.mxu0 %v130
    %148 = vmatpush.msra.mxu0 %v129
    %149 = vmatpush.msra.mxu0 %v128
    %150 = vmatpush.msra.mxu0 %v127
    %151 = vmatpush.msra.mxu0 %v126
    %152 = vmatpush.msra.mxu0 %v125
    %153 = vmatpush.msra.mxu0 %v124
    %154 = vmatpush.msra.mxu0 %v123
    %155 = vmatmul.f32.gmra.mxu0 %v84
    %v156 = vpop.f32.mrf.mxu0
    %v157 = vadd.f32 0.0, %v156
    %158 = vdwg.mxu0
    %v159 = vmul.f32 %v157, 0.25
    %v160 = vld [vmem:[#allocation5 + $0x180] sm:$0xff]
    %v161 = vld [vmem:[#allocation5 + $0x188] sm:$0xff]
    %v162 = vld [vmem:[#allocation5 + $0x190] sm:$0xff]
    %v163 = vld [vmem:[#allocation5 + $0x198] sm:$0xff]
    %v164 = vld [vmem:[#allocation5 + $0x1a0] sm:$0xff]
    %v165 = vld [vmem:[#allocation5 + $0x1a8] sm:$0xff]
    %v166 = vld [vmem:[#allocation5 + $0x1b0] sm:$0xff]
    %v167 = vld [vmem:[#allocation5 + $0x1b8] sm:$0xff]
    %v168 = vld [vmem:[#allocation5 + $0x1c0] sm:$0xff]
    %v169 = vld [vmem:[#allocation5 + $0x1c8] sm:$0xff]
    %v170 = vld [vmem:[#allocation5 + $0x1d0] sm:$0xff]
    %v171 = vld [vmem:[#allocation5 + $0x1d8] sm:$0xff]
    %v172 = vld [vmem:[#allocation5 + $0x1e0] sm:$0xff]
    %v173 = vld [vmem:[#allocation5 + $0x1e8] sm:$0xff]
    %v174 = vld [vmem:[#allocation5 + $0x1f0] sm:$0xff]
    %v175 = vld [vmem:[#allocation5 + $0x1f8] sm:$0xff]
    %176 = vmatpush.msra.mxu0 %v175
    %177 = vmatpush.msra.mxu0 %v174
    %178 = vmatpush.msra.mxu0 %v173
    %179 = vmatpush.msra.mxu0 %v172
    %180 = vmatpush.msra.mxu0 %v171
    %181 = vmatpush.msra.mxu0 %v170
    %182 = vmatpush.msra.mxu0 %v169
    %183 = vmatpush.msra.mxu0 %v168
    %184 = vmatpush.msra.mxu0 %v167
    %185 = vmatpush.msra.mxu0 %v166
    %186 = vmatpush.msra.mxu0 %v165
    %187 = vmatpush.msra.mxu0 %v164
    %188 = vmatpush.msra.mxu0 %v163
    %189 = vmatpush.msra.mxu0 %v162
    %190 = vmatpush.msra.mxu0 %v161
    %191 = vmatpush.msra.mxu0 %v160
    %192 = vmatmul.f32.gmra.mxu0 %v84
    %v193 = vpop.f32.mrf.mxu0
    %v194 = vadd.f32 0.0, %v193
    %195 = vdwg.mxu0
    %v196 = vld [vmem:[#allocation5 + $0x200] sm:$0xff]
    %v197 = vld [vmem:[#allocation5 + $0x208] sm:$0xff]
    %v198 = vld [vmem:[#allocation5 + $0x210] sm:$0xff]
    %v199 = vld [vmem:[#allocation5 + $0x218] sm:$0xff]
    %v200 = vld [vmem:[#allocation5 + $0x220] sm:$0xff]
    %v201 = vld [vmem:[#allocation5 + $0x228] sm:$0xff]
    %v202 = vld [vmem:[#allocation5 + $0x230] sm:$0xff]
    %v203 = vld [vmem:[#allocation5 + $0x238] sm:$0xff]
    %v204 = vld [vmem:[#allocation5 + $0x240] sm:$0xff]
    %v205 = vld [vmem:[#allocation5 + $0x248] sm:$0xff]
    %v206 = vld [vmem:[#allocation5 + $0x250] sm:$0xff]
    %v207 = vld [vmem:[#allocation5 + $0x258] sm:$0xff]
    %v208 = vld [vmem:[#allocation5 + $0x260] sm:$0xff]
    %v209 = vld [vmem:[#allocation5 + $0x268] sm:$0xff]
    %v210 = vld [vmem:[#allocation5 + $0x270] sm:$0xff]
    %v211 = vld [vmem:[#allocation5 + $0x278] sm:$0xff]
    %212 = vmatpush.msra.mxu0 %v211
    %213 = vmatpush.msra.mxu0 %v210
    %214 = vmatpush.msra.mxu0 %v209
    %215 = vmatpush.msra.mxu0 %v208
    %216 = vmatpush.msra.mxu0 %v207
    %217 = vmatpush.msra.mxu0 %v206
    %218 = vmatpush.msra.mxu0 %v205
    %219 = vmatpush.msra.mxu0 %v204
    %220 = vmatpush.msra.mxu0 %v203
    %221 = vmatpush.msra.mxu0 %v202
    %222 = vmatpush.msra.mxu0 %v201
    %223 = vmatpush.msra.mxu0 %v200
    %224 = vmatpush.msra.mxu0 %v199
    %225 = vmatpush.msra.mxu0 %v198
    %226 = vmatpush.msra.mxu0 %v197
    %227 = vmatpush.msra.mxu0 %v196
    %228 = vmatmul.f32.gmra.mxu0 %v84
    %v229 = vpop.f32.mrf.mxu0
    %v230 = vadd.f32 0.0, %v229
    %231 = vdwg.mxu0
    %232 = vrot.lane.b32.xlu0 %v194, 127
    %v233 = vpop.permute.xlu0 %232
    %234 = vrot.lane.b32.xlu0 %v194, 15
    %v235 = vpop.permute.xlu0 %234
    %vm236 = vcmp.lt.s32.totalorder %v44, 15
    %v237 = vsel %vm236, %v233, %v235
    %v238 = vmax.f32 %v194, %v237
    %v239 = vmin.f32 %v194, %v237
    %240 = vrot.lane.b32.xlu0 %v238, 126
    %v241 = vpop.permute.xlu0 %240
    %242 = vrot.lane.b32.xlu0 %v238, 14
    %v243 = vpop.permute.xlu0 %242
    %vm244 = vcmp.lt.s32.totalorder %v44, 14
    %v245 = vsel %vm244, %v241, %v243
    %v246 = vmax.f32 %v238, %v245
    %247 = vrot.lane.b32.xlu0 %v239, 126
    %v248 = vpop.permute.xlu0 %247
    %249 = vrot.lane.b32.xlu0 %v239, 14
    %v250 = vpop.permute.xlu0 %249
    %v251 = vsel %vm244, %v248, %v250
    %v252 = vmin.f32 %v239, %v251
    %253 = vrot.lane.b32.xlu0 %v246, 124
    %v254 = vpop.permute.xlu0 %253
    %255 = vrot.lane.b32.xlu0 %v246, 12
    %v256 = vpop.permute.xlu0 %255
    %vm257 = vcmp.lt.s32.totalorder %v44, 12
    %v258 = vsel %vm257, %v254, %v256
    %v259 = vmax.f32 %v246, %v258
    %260 = vrot.lane.b32.xlu0 %v252, 124
    %v261 = vpop.permute.xlu0 %260
    %262 = vrot.lane.b32.xlu0 %v252, 12
    %v263 = vpop.permute.xlu0 %262
    %v264 = vsel %vm257, %v261, %v263
    %v265 = vmin.f32 %v252, %v264
    %266 = vrot.lane.b32.xlu0 %v259, 120
    %v267 = vpop.permute.xlu0 %266
    %268 = vrot.lane.b32.xlu0 %v259, 8
    %v269 = vpop.permute.xlu0 %268
    %vm270 = vcmp.lt.s32.totalorder %v44, 8
    %v271 = vsel %vm270, %v267, %v269
    %v272 = vmax.f32 %v259, %v271
    %273 = vrot.lane.b32.xlu0 %v265, 120
    %v274 = vpop.permute.xlu0 %273
    %275 = vrot.lane.b32.xlu0 %v265, 8
    %v276 = vpop.permute.xlu0 %275
    %v277 = vsel %vm270, %v274, %v276
    %v278 = vmin.f32 %v265, %v277
    %v279 = vmul.f32 %v159, %v272
    %v280 = vmul.f32 %v159, %v278
    %v281 = vmax.f32 %v279, %v280
    %v282 = vmul.f32 %v159, %v194
    %v283 = vsub.f32 %v282, %v281
    %v284 = vmul.f32 %v283, 1.442695
    %v285 = vpow.pop %v284
    %v286 = vadd.f32 %v285, 0.0
    %v287 = vmul.f32 %v285, %v230
    %v288 = vadd.f32 %v287, 0.0
    %289 = vrot.lane.b32.xlu0 %v230, 127
    %v290 = vpop.permute.xlu0 %289
    %291 = vrot.lane.b32.xlu0 %v230, 15
    %v292 = vpop.permute.xlu0 %291
    %v293 = vsel %vm236, %v290, %v292
    %v294 = vmul.f32 %v159, %v237
    %v295 = vsub.f32 %v294, %v281
    %v296 = vmul.f32 %v295, 1.442695
    %v297 = vpow.pop %v296
    %v298 = vadd.f32 %v286, %v297
    %v299 = vmul.f32 %v297, %v293
    %v300 = vadd.f32 %v288, %v299
    %301 = vrot.lane.b32.xlu0 %v194, 126
    %v302 = vpop.permute.xlu0 %301
    %303 = vrot.lane.b32.xlu0 %v194, 14
    %v304 = vpop.permute.xlu0 %303
    %v305 = vsel %vm244, %v302, %v304
    %306 = vrot.lane.b32.xlu0 %v230, 126
    %v307 = vpop.permute.xlu0 %306
    %308 = vrot.lane.b32.xlu0 %v230, 14
    %v309 = vpop.permute.xlu0 %308
    %v310 = vsel %vm244, %v307, %v309
    %v311 = vmul.f32 %v159, %v305
    %v312 = vsub.f32 %v311, %v281
    %v313 = vmul.f32 %v312, 1.442695
    %v314 = vpow.pop %v313
    %v315 = vadd.f32 %v298, %v314
    %v316 = vmul.f32 %v314, %v310
    %v317 = vadd.f32 %v300, %v316
    %318 = vrot.lane.b32.xlu0 %v194, 125
    %v319 = vpop.permute.xlu0 %318
    %320 = vrot.lane.b32.xlu0 %v194, 13
    %v321 = vpop.permute.xlu0 %320
    %vm322 = vcmp.lt.s32.totalorder %v44, 13
    %v323 = vsel %vm322, %v319, %v321
    %324 = vrot.lane.b32.xlu0 %v230, 125
    %v325 = vpop.permute.xlu0 %324
    %326 = vrot.lane.b32.xlu0 %v230, 13
    %v327 = vpop.permute.xlu0 %326
    %v328 = vsel %vm322, %v325, %v327
    %v329 = vmul.f32 %v159, %v323
    %v330 = vsub.f32 %v329, %v281
    %v331 = vmul.f32 %v330, 1.442695
    %v332 = vpow.pop %v331
    %v333 = vadd.f32 %v315, %v332
    %v334 = vmul.f32 %v332, %v328
    %v335 = vadd.f32 %v317, %v334
    %336 = vrot.lane.b32.xlu0 %v194, 124
    %v337 = vpop.permute.xlu0 %336
    %338 = vrot.lane.b32.xlu0 %v194, 12
    %v339 = vpop.permute.xlu0 %338
    %v340 = vsel %vm257, %v337, %v339
    %341 = vrot.lane.b32.xlu0 %v230, 124
    %v342 = vpop.permute.xlu0 %341
    %343 = vrot.lane.b32.xlu0 %v230, 12
    %v344 = vpop.permute.xlu0 %343
    %v345 = vsel %vm257, %v342, %v344
    %v346 = vmul.f32 %v159, %v340
    %v347 = vsub.f32 %v346, %v281
    %v348 = vmul.f32 %v347, 1.442695
    %v349 = vpow.pop %v348
    %v350 = vadd.f32 %v333, %v349
    %v351 = vmul.f32 %v349, %v345
    %v352 = vadd.f32 %v335, %v351
    %353 = vrot.lane.b32.xlu0 %v194, 123
    %v354 = vpop.permute.xlu0 %353
    %355 = vrot.lane.b32.xlu0 %v194, 11
    %v356 = vpop.permute.xlu0 %355
    %vm357 = vcmp.lt.s32.totalorder %v44, 11
    %v358 = vsel %vm357, %v354, %v356
    %359 = vrot.lane.b32.xlu0 %v230, 123
    %v360 = vpop.permute.xlu0 %359
    %361 = vrot.lane.b32.xlu0 %v230, 11
    %v362 = vpop.permute.xlu0 %361
    %v363 = vsel %vm357, %v360, %v362
    %v364 = vmul.f32 %v159, %v358
    %v365 = vsub.f32 %v364, %v281
    %v366 = vmul.f32 %v365, 1.442695
    %v367 = vpow.pop %v366
    %v368 = vadd.f32 %v350, %v367
    %v369 = vmul.f32 %v367, %v363
    %v370 = vadd.f32 %v352, %v369
    %371 = vrot.lane.b32.xlu0 %v194, 122
    %v372 = vpop.permute.xlu0 %371
    %373 = vrot.lane.b32.xlu0 %v194, 10
    %v374 = vpop.permute.xlu0 %373
    %vm375 = vcmp.lt.s32.totalorder %v44, 10
    %v376 = vsel %vm375, %v372, %v374
    %377 = vrot.lane.b32.xlu0 %v230, 122
    %v378 = vpop.permute.xlu0 %377
    %379 = vrot.lane.b32.xlu0 %v230, 10
    %v380 = vpop.permute.xlu0 %379
    %v381 = vsel %vm375, %v378, %v380
    %v382 = vmul.f32 %v159, %v376
    %v383 = vsub.f32 %v382, %v281
    %v384 = vmul.f32 %v383, 1.442695
    %v385 = vpow.pop %v384
    %v386 = vadd.f32 %v368, %v385
    %v387 = vmul.f32 %v385, %v381
    %v388 = vadd.f32 %v370, %v387
    %389 = vrot.lane.b32.xlu0 %v194, 121
    %v390 = vpop.permute.xlu0 %389
    %391 = vrot.lane.b32.xlu0 %v194, 9
    %v392 = vpop.permute.xlu0 %391
    %vm393 = vcmp.lt.s32.totalorder %v44, 9
    %v394 = vsel %vm393, %v390, %v392
    %395 = vrot.lane.b32.xlu0 %v230, 121
    %v396 = vpop.permute.xlu0 %395
    %397 = vrot.lane.b32.xlu0 %v230, 9
    %v398 = vpop.permute.xlu0 %397
    %v399 = vsel %vm393, %v396, %v398
    %v400 = vmul.f32 %v159, %v394
    %v401 = vsub.f32 %v400, %v281
    %v402 = vmul.f32 %v401, 1.442695
    %v403 = vpow.pop %v402
    %v404 = vadd.f32 %v386, %v403
    %v405 = vmul.f32 %v403, %v399
    %v406 = vadd.f32 %v388, %v405
    %407 = vrot.lane.b32.xlu0 %v194, 120
    %v408 = vpop.permute.xlu0 %407
    %409 = vrot.lane.b32.xlu0 %v194, 8
    %v410 = vpop.permute.xlu0 %409
    %v411 = vsel %vm270, %v408, %v410
    %412 = vrot.lane.b32.xlu0 %v230, 120
    %v413 = vpop.permute.xlu0 %412
    %414 = vrot.lane.b32.xlu0 %v230, 8
    %v415 = vpop.permute.xlu0 %414
    %v416 = vsel %vm270, %v413, %v415
    %v417 = vmul.f32 %v159, %v411
    %v418 = vsub.f32 %v417, %v281
    %v419 = vmul.f32 %v418, 1.442695
    %v420 = vpow.pop %v419
    %v421 = vadd.f32 %v404, %v420
    %v422 = vmul.f32 %v420, %v416
    %v423 = vadd.f32 %v406, %v422
    %424 = vrot.lane.b32.xlu0 %v194, 119
    %v425 = vpop.permute.xlu0 %424
    %426 = vrot.lane.b32.xlu0 %v194, 7
    %v427 = vpop.permute.xlu0 %426
    %vm428 = vcmp.lt.s32.totalorder %v44, 7
    %v429 = vsel %vm428, %v425, %v427
    %430 = vrot.lane.b32.xlu0 %v230, 119
    %v431 = vpop.permute.xlu0 %430
    %432 = vrot.lane.b32.xlu0 %v230, 7
    %v433 = vpop.permute.xlu0 %432
    %v434 = vsel %vm428, %v431, %v433
    %v435 = vmul.f32 %v159, %v429
    %v436 = vsub.f32 %v435, %v281
    %v437 = vmul.f32 %v436, 1.442695
    %v438 = vpow.pop %v437
    %v439 = vadd.f32 %v421, %v438
    %v440 = vmul.f32 %v438, %v434
    %v441 = vadd.f32 %v423, %v440
    %442 = vrot.lane.b32.xlu0 %v194, 118
    %v443 = vpop.permute.xlu0 %442
    %444 = vrot.lane.b32.xlu0 %v194, 6
    %v445 = vpop.permute.xlu0 %444
    %vm446 = vcmp.lt.s32.totalorder %v44, 6
    %v447 = vsel %vm446, %v443, %v445
    %448 = vrot.lane.b32.xlu0 %v230, 118
    %v449 = vpop.permute.xlu0 %448
    %450 = vrot.lane.b32.xlu0 %v230, 6
    %v451 = vpop.permute.xlu0 %450
    %v452 = vsel %vm446, %v449, %v451
    %v453 = vmul.f32 %v159, %v447
    %v454 = vsub.f32 %v453, %v281
    %v455 = vmul.f32 %v454, 1.442695
    %v456 = vpow.pop %v455
    %v457 = vadd.f32 %v439, %v456
    %v458 = vmul.f32 %v456, %v452
    %v459 = vadd.f32 %v441, %v458
    %460 = vrot.lane.b32.xlu0 %v194, 117
    %v461 = vpop.permute.xlu0 %460
    %462 = vrot.lane.b32.xlu0 %v194, 5
    %v463 = vpop.permute.xlu0 %462
    %vm464 = vcmp.lt.s32.totalorder %v44, 5
    %v465 = vsel %vm464, %v461, %v463
    %466 = vrot.lane.b32.xlu0 %v230, 117
    %v467 = vpop.permute.xlu0 %466
    %468 = vrot.lane.b32.xlu0 %v230, 5
    %v469 = vpop.permute.xlu0 %468
    %v470 = vsel %vm464, %v467, %v469
    %v471 = vmul.f32 %v159, %v465
    %v472 = vsub.f32 %v471, %v281
    %v473 = vmul.f32 %v472, 1.442695
    %v474 = vpow.pop %v473
    %v475 = vadd.f32 %v457, %v474
    %v476 = vmul.f32 %v474, %v470
    %v477 = vadd.f32 %v459, %v476
    %478 = vrot.lane.b32.xlu0 %v194, 116
    %v479 = vpop.permute.xlu0 %478
    %480 = vrot.lane.b32.xlu0 %v194, 4
    %v481 = vpop.permute.xlu0 %480
    %vm482 = vcmp.lt.s32.totalorder %v44, 4
    %v483 = vsel %vm482, %v479, %v481
    %484 = vrot.lane.b32.xlu0 %v230, 116
    %v485 = vpop.permute.xlu0 %484
    %486 = vrot.lane.b32.xlu0 %v230, 4
    %v487 = vpop.permute.xlu0 %486
    %v488 = vsel %vm482, %v485, %v487
    %v489 = vmul.f32 %v159, %v483
    %v490 = vsub.f32 %v489, %v281
    %v491 = vmul.f32 %v490, 1.442695
    %v492 = vpow.pop %v491
    %v493 = vadd.f32 %v475, %v492
    %v494 = vmul.f32 %v492, %v488
    %v495 = vadd.f32 %v477, %v494
    %496 = vrot.lane.b32.xlu0 %v194, 115
    %v497 = vpop.permute.xlu0 %496
    %498 = vrot.lane.b32.xlu0 %v194, 3
    %v499 = vpop.permute.xlu0 %498
    %vm500 = vcmp.lt.s32.totalorder %v44, 3
    %v501 = vsel %vm500, %v497, %v499
    %502 = vrot.lane.b32.xlu0 %v230, 115
    %v503 = vpop.permute.xlu0 %502
    %504 = vrot.lane.b32.xlu0 %v230, 3
    %v505 = vpop.permute.xlu0 %504
    %v506 = vsel %vm500, %v503, %v505
    %v507 = vmul.f32 %v159, %v501
    %v508 = vsub.f32 %v507, %v281
    %v509 = vmul.f32 %v508, 1.442695
    %v510 = vpow.pop %v509
    %v511 = vadd.f32 %v493, %v510
    %v512 = vmul.f32 %v510, %v506
    %v513 = vadd.f32 %v495, %v512
    %514 = vrot.lane.b32.xlu0 %v194, 114
    %v515 = vpop.permute.xlu0 %514
    %516 = vrot.lane.b32.xlu0 %v194, 2
    %v517 = vpop.permute.xlu0 %516
    %vm518 = vcmp.lt.s32.totalorder %v44, 2
    %v519 = vsel %vm518, %v515, %v517
    %520 = vrot.lane.b32.xlu0 %v230, 114
    %v521 = vpop.permute.xlu0 %520
    %522 = vrot.lane.b32.xlu0 %v230, 2
    %v523 = vpop.permute.xlu0 %522
    %v524 = vsel %vm518, %v521, %v523
    %v525 = vmul.f32 %v159, %v519
    %v526 = vsub.f32 %v525, %v281
    %v527 = vmul.f32 %v526, 1.442695
    %v528 = vpow.pop %v527
    %v529 = vadd.f32 %v511, %v528
    %v530 = vmul.f32 %v528, %v524
    %v531 = vadd.f32 %v513, %v530
    %532 = vrot.lane.b32.xlu0 %v194, 113
    %v533 = vpop.permute.xlu0 %532
    %534 = vrot.lane.b32.xlu0 %v194, 1
    %v535 = vpop.permute.xlu0 %534
    %vm536 = vcmp.lt.s32.totalorder %v44, 1
    %v537 = vsel %vm536, %v533, %v535
    %538 = vrot.lane.b32.xlu0 %v230, 113
    %v539 = vpop.permute.xlu0 %538
    %540 = vrot.lane.b32.xlu0 %v230, 1
    %v541 = vpop.permute.xlu0 %540
    %v542 = vsel %vm536, %v539, %v541
    %v543 = vmul.f32 %v159, %v537
    %v544 = vsub.f32 %v543, %v281
    %v545 = vmul.f32 %v544, 1.442695
    %v546 = vpow.pop %v545
    %v547 = vadd.f32 %v529, %v546
    %v548 = vmul.f32 %v546, %v542
    %v549 = vadd.f32 %v531, %v548
    %v550 = vrcp.pop %v547
    %v551 = vmul.f32 %v547, %v550
    %v552 = vsub.f32 2.0, %v551
    %v553 = vmul.f32 %v550, %v552
    %v554 = vmul.f32 %v549, %v553
    %v555 = vld [vmem:[#allocation5 + $0x280] sm:$0xff]
    %v556 = vld [vmem:[#allocation5 + $0x288] sm:$0xff]
    %v557 = vld [vmem:[#allocation5 + $0x290] sm:$0xff]
    %v558 = vld [vmem:[#allocation5 + $0x298] sm:$0xff]
    %v559 = vld [vmem:[#allocation5 + $0x2a0] sm:$0xff]
    %v560 = vld [vmem:[#allocation5 + $0x2a8] sm:$0xff]
    %v561 = vld [vmem:[#allocation5 + $0x2b0] sm:$0xff]
    %v562 = vld [vmem:[#allocation5 + $0x2b8] sm:$0xff]
    %v563 = vld [vmem:[#allocation5 + $0x2c0] sm:$0xff]
    %v564 = vld [vmem:[#allocation5 + $0x2c8] sm:$0xff]
    %v565 = vld [vmem:[#allocation5 + $0x2d0] sm:$0xff]
    %v566 = vld [vmem:[#allocation5 + $0x2d8] sm:$0xff]
    %v567 = vld [vmem:[#allocation5 + $0x2e0] sm:$0xff]
    %v568 = vld [vmem:[#allocation5 + $0x2e8] sm:$0xff]
    %v569 = vld [vmem:[#allocation5 + $0x2f0] sm:$0xff]
    %v570 = vld [vmem:[#allocation5 + $0x2f8] sm:$0xff]
    %v571 = vld [vmem:[#allocation5 + $0x582] sm:$0x1]
    %v572 = vperm.slane %v571, 0
    %573 = vmatpush.msra.mxu0 %v570
    %574 = vmatpush.msra.mxu0 %v569
    %575 = vmatpush.msra.mxu0 %v568
    %576 = vmatpush.msra.mxu0 %v567
    %577 = vmatpush.msra.mxu0 %v566
    %578 = vmatpush.msra.mxu0 %v565
    %579 = vmatpush.msra.mxu0 %v564
    %580 = vmatpush.msra.mxu0 %v563
    %581 = vmatpush.msra.mxu0 %v562
    %582 = vmatpush.msra.mxu0 %v561
    %583 = vmatpush.msra.mxu0 %v560
    %584 = vmatpush.msra.mxu0 %v559
    %585 = vmatpush.msra.mxu0 %v558
    %586 = vmatpush.msra.mxu0 %v557
    %587 = vmatpush.msra.mxu0 %v556
    %588 = vmatpush.msra.mxu0 %v555
    %589 = vmatmul.f32.gmra.mxu0 %v554
    %v590 = vpop.f32.mrf.mxu0
    %v591 = vadd.f32 %v572, %v590
    %592 = vdwg.mxu0
    %v593 = vtanh.pop %v591
    %v594 = vld [vmem:[#allocation5 + $0x300] sm:$0xff]
    %v595 = vld [vmem:[#allocation5 + $0x308] sm:$0xff]
    %v596 = vld [vmem:[#allocation5 + $0x310] sm:$0xff]
    %v597 = vld [vmem:[#allocation5 + $0x318] sm:$0xff]
    %v598 = vld [vmem:[#allocation5 + $0x320] sm:$0xff]
    %v599 = vld [vmem:[#allocation5 + $0x328] sm:$0xff]
    %v600 = vld [vmem:[#allocation5 + $0x330] sm:$0xff]
    %v601 = vld [vmem:[#allocation5 + $0x338] sm:$0xff]
    %v602 = vld [vmem:[#allocation5 + $0x340] sm:$0xff]
    %v603 = vld [vmem:[#allocation5 + $0x348] sm:$0xff]
    %v604 = vld [vmem:[#allocation5 + $0x350] sm:$0xff]
    %v605 = vld [vmem:[#allocation5 + $0x358] sm:$0xff]
    %v606 = vld [vmem:[#allocation5 + $0x360] sm:$0xff]
    %v607 = vld [vmem:[#allocation5 + $0x368] sm:$0xff]
    %v608 = vld [vmem:[#allocation5 + $0x370] sm:$0xff]
    %v609 = vld [vmem:[#allocation5 + $0x378] sm:$0xff]
    %610 = vmatpush.msra.mxu0 %v609
    %611 = vmatpush.msra.mxu0 %v608
    %612 = vmatpush.msra.mxu0 %v607
    %613 = vmatpush.msra.mxu0 %v606
    %614 = vmatpush.msra.mxu0 %v605
    %615 = vmatpush.msra.mxu0 %v604
    %616 = vmatpush.msra.mxu0 %v603
    %617 = vmatpush.msra.mxu0 %v602
    %618 = vmatpush.msra.mxu0 %v601
    %619 = vmatpush.msra.mxu0 %v600
    %620 = vmatpush.msra.mxu0 %v599
    %621 = vmatpush.msra.mxu0 %v598
    %622 = vmatpush.msra.mxu0 %v597
    %623 = vmatpush.msra.mxu0 %v596
    %624 = vmatpush.msra.mxu0 %v595
    %625 = vmatpush.msra.mxu0 %v594
    %626 = vmatmul.f32.gmra.mxu0 %v593
    %v627 = vpop.f32.mrf.mxu0
    %v628 = vadd.f32 0.0, %v627
    %629 = vdwg.mxu0
    %v630 = vmul.f32 %v628, 0.25
    %v631 = vld [vmem:[#allocation5 + $0x380] sm:$0xff]
    %v632 = vld [vmem:[#allocation5 + $0x388] sm:$0xff]
    %v633 = vld [vmem:[#allocation5 + $0x390] sm:$0xff]
    %v634 = vld [vmem:[#allocation5 + $0x398] sm:$0xff]
    %v635 = vld [vmem:[#allocation5 + $0x3a0] sm:$0xff]
    %v636 = vld [vmem:[#allocation5 + $0x3a8] sm:$0xff]
    %v637 = vld [vmem:[#allocation5 + $0x3b0] sm:$0xff]
    %v638 = vld [vmem:[#allocation5 + $0x3b8] sm:$0xff]
    %v639 = vld [vmem:[#allocation5 + $0x3c0] sm:$0xff]
    %v640 = vld [vmem:[#allocation5 + $0x3c8] sm:$0xff]
    %v641 = vld [vmem:[#allocation5 + $0x3d0] sm:$0xff]
    %v642 = vld [vmem:[#allocation5 + $0x3d8] sm:$0xff]
    %v643 = vld [vmem:[#allocation5 + $0x3e0] sm:$0xff]
    %v644 = vld [vmem:[#allocation5 + $0x3e8] sm:$0xff]
    %v645 = vld [vmem:[#allocation5 + $0x3f0] sm:$0xff]
    %v646 = vld [vmem:[#allocation5 + $0x3f8] sm:$0xff]
    %647 = vmatpush.msra.mxu0 %v646
    %648 = vmatpush.msra.mxu0 %v645
    %649 = vmatpush.msra.mxu0 %v644
    %650 = vmatpush.msra.mxu0 %v643
    %651 = vmatpush.msra.mxu0 %v642
    %652 = vmatpush.msra.mxu0 %v641
    %653 = vmatpush.msra.mxu0 %v640
    %654 = vmatpush.msra.mxu0 %v639
    %655 = vmatpush.msra.mxu0 %v638
    %656 = vmatpush.msra.mxu0 %v637
    %657 = vmatpush.msra.mxu0 %v636
    %658 = vmatpush.msra.mxu0 %v635
    %659 = vmatpush.msra.mxu0 %v634
    %660 = vmatpush.msra.mxu0 %v633
    %661 = vmatpush.msra.mxu0 %v632
    %662 = vmatpush.msra.mxu0 %v631
    %663 = vmatmul.f32.gmra.mxu0 %v593
    %v664 = vpop.f32.mrf.mxu0
    %v665 = vadd.f32 0.0, %v664
    %666 = vdwg.mxu0
    %v667 = vld [vmem:[#allocation5 + $0x400] sm:$0xff]
    %v668 = vld [vmem:[#allocation5 + $0x408] sm:$0xff]
    %v669 = vld [vmem:[#allocation5 + $0x410] sm:$0xff]
    %v670 = vld [vmem:[#allocation5 + $0x418] sm:$0xff]
    %v671 = vld [vmem:[#allocation5 + $0x420] sm:$0xff]
    %v672 = vld [vmem:[#allocation5 + $0x428] sm:$0xff]
    %v673 = vld [vmem:[#allocation5 + $0x430] sm:$0xff]
    %v674 = vld [vmem:[#allocation5 + $0x438] sm:$0xff]
    %v675 = vld [vmem:[#allocation5 + $0x440] sm:$0xff]
    %v676 = vld [vmem:[#allocation5 + $0x448] sm:$0xff]
    %v677 = vld [vmem:[#allocation5 + $0x450] sm:$0xff]
    %v678 = vld [vmem:[#allocation5 + $0x458] sm:$0xff]
    %v679 = vld [vmem:[#allocation5 + $0x460] sm:$0xff]
    %v680 = vld [vmem:[#allocation5 + $0x468] sm:$0xff]
    %v681 = vld [vmem:[#allocation5 + $0x470] sm:$0xff]
    %v682 = vld [vmem:[#allocation5 + $0x478] sm:$0xff]
    %683 = vmatpush.msra.mxu0 %v682
    %684 = vmatpush.msra.mxu0 %v681
    %685 = vmatpush.msra.mxu0 %v680
    %686 = vmatpush.msra.mxu0 %v679
    %687 = vmatpush.msra.mxu0 %v678
    %688 = vmatpush.msra.mxu0 %v677
    %689 = vmatpush.msra.mxu0 %v676
    %690 = vmatpush.msra.mxu0 %v675
    %691 = vmatpush.msra.mxu0 %v674
    %692 = vmatpush.msra.mxu0 %v673
    %693 = vmatpush.msra.mxu0 %v672
    %694 = vmatpush.msra.mxu0 %v671
    %695 = vmatpush.msra.mxu0 %v670
    %696 = vmatpush.msra.mxu0 %v669
    %697 = vmatpush.msra.mxu0 %v668
    %698 = vmatpush.msra.mxu0 %v667
    %699 = vmatmul.f32.gmra.mxu0 %v593
    %v700 = vpop.f32.mrf.mxu0
    %v701 = vadd.f32 0.0, %v700
    %702 = vdwg.mxu0
    %703 = vrot.lane.b32.xlu0 %v665, 127
    %v704 = vpop.permute.xlu0 %703
    %705 = vrot.lane.b32.xlu0 %v665, 15
    %v706 = vpop.permute.xlu0 %705
    %v707 = vsel %vm236, %v704, %v706
    %v708 = vmax.f32 %v665, %v707
    %v709 = vmin.f32 %v665, %v707
    %710 = vrot.lane.b32.xlu0 %v708, 126
    %v711 = vpop.permute.xlu0 %710
    %712 = vrot.lane.b32.xlu0 %v708, 14
    %v713 = vpop.permute.xlu0 %712
    %v714 = vsel %vm244, %v711, %v713
    %v715 = vmax.f32 %v708, %v714
    %716 = vrot.lane.b32.xlu0 %v709, 126
    %v717 = vpop.permute.xlu0 %716
    %718 = vrot.lane.b32.xlu0 %v709, 14
    %v719 = vpop.permute.xlu0 %718
    %v720 = vsel %vm244, %v717, %v719
    %v721 = vmin.f32 %v709, %v720
    %722 = vrot.lane.b32.xlu0 %v715, 124
    %v723 = vpop.permute.xlu0 %722
    %724 = vrot.lane.b32.xlu0 %v715, 12
    %v725 = vpop.permute.xlu0 %724
    %v726 = vsel %vm257, %v723, %v725
    %v727 = vmax.f32 %v715, %v726
    %728 = vrot.lane.b32.xlu0 %v721, 124
    %v729 = vpop.permute.xlu0 %728
    %730 = vrot.lane.b32.xlu0 %v721, 12
    %v731 = vpop.permute.xlu0 %730
    %v732 = vsel %vm257, %v729, %v731
    %v733 = vmin.f32 %v721, %v732
    %734 = vrot.lane.b32.xlu0 %v727, 120
    %v735 = vpop.permute.xlu0 %734
    %736 = vrot.lane.b32.xlu0 %v727, 8
    %v737 = vpop.permute.xlu0 %736
    %v738 = vsel %vm270, %v735, %v737
    %v739 = vmax.f32 %v727, %v738
    %740 = vrot.lane.b32.xlu0 %v733, 120
    %v741 = vpop.permute.xlu0 %740
    %742 = vrot.lane.b32.xlu0 %v733, 8
    %v743 = vpop.permute.xlu0 %742
    %v744 = vsel %vm270, %v741, %v743
    %v745 = vmin.f32 %v733, %v744
    %v746 = vmul.f32 %v630, %v739
    %v747 = vmul.f32 %v630, %v745
    %v748 = vmax.f32 %v746, %v747
    %v749 = vmul.f32 %v630, %v665
    %v750 = vsub.f32 %v749, %v748
    %v751 = vmul.f32 %v750, 1.442695
    %v752 = vpow.pop %v751
    %v753 = vadd.f32 %v752, 0.0
    %v754 = vmul.f32 %v752, %v701
    %v755 = vadd.f32 %v754, 0.0
    %756 = vrot.lane.b32.xlu0 %v701, 127
    %v757 = vpop.permute.xlu0 %756
    %758 = vrot.lane.b32.xlu0 %v701, 15
    %v759 = vpop.permute.xlu0 %758
    %v760 = vsel %vm236, %v757, %v759
    %v761 = vmul.f32 %v630, %v707
    %v762 = vsub.f32 %v761, %v748
    %v763 = vmul.f32 %v762, 1.442695
    %v764 = vpow.pop %v763
    %v765 = vadd.f32 %v753, %v764
    %v766 = vmul.f32 %v764, %v760
    %v767 = vadd.f32 %v755, %v766
    %768 = vrot.lane.b32.xlu0 %v665, 126
    %v769 = vpop.permute.xlu0 %768
    %770 = vrot.lane.b32.xlu0 %v665, 14
    %v771 = vpop.permute.xlu0 %770
    %v772 = vsel %vm244, %v769, %v771
    %773 = vrot.lane.b32.xlu0 %v701, 126
    %v774 = vpop.permute.xlu0 %773
    %775 = vrot.lane.b32.xlu0 %v701, 14
    %v776 = vpop.permute.xlu0 %775
    %v777 = vsel %vm244, %v774, %v776
    %v778 = vmul.f32 %v630, %v772
    %v779 = vsub.f32 %v778, %v748
    %v780 = vmul.f32 %v779, 1.442695
    %v781 = vpow.pop %v780
    %v782 = vadd.f32 %v765, %v781
    %v783 = vmul.f32 %v781, %v777
    %v784 = vadd.f32 %v767, %v783
    %785 = vrot.lane.b32.xlu0 %v665, 125
    %v786 = vpop.permute.xlu0 %785
    %787 = vrot.lane.b32.xlu0 %v665, 13
    %v788 = vpop.permute.xlu0 %787
    %v789 = vsel %vm322, %v786, %v788
    %790 = vrot.lane.b32.xlu0 %v701, 125
    %v791 = vpop.permute.xlu0 %790
    %792 = vrot.lane.b32.xlu0 %v701, 13
    %v793 = vpop.permute.xlu0 %792
    %v794 = vsel %vm322, %v791, %v793
    %v795 = vmul.f32 %v630, %v789
    %v796 = vsub.f32 %v795, %v748
    %v797 = vmul.f32 %v796, 1.442695
    %v798 = vpow.pop %v797
    %v799 = vadd.f32 %v782, %v798
    %v800 = vmul.f32 %v798, %v794
    %v801 = vadd.f32 %v784, %v800
    %802 = vrot.lane.b32.xlu0 %v665, 124
    %v803 = vpop.permute.xlu0 %802
    %804 = vrot.lane.b32.xlu0 %v665, 12
    %v805 = vpop.permute.xlu0 %804
    %v806 = vsel %vm257, %v803, %v805
    %807 = vrot.lane.b32.xlu0 %v701, 124
    %v808 = vpop.permute.xlu0 %807
    %809 = vrot.lane.b32.xlu0 %v701, 12
    %v810 = vpop.permute.xlu0 %809
    %v811 = vsel %vm257, %v808, %v810
    %v812 = vmul.f32 %v630, %v806
    %v813 = vsub.f32 %v812, %v748
    %v814 = vmul.f32 %v813, 1.442695
    %v815 = vpow.pop %v814
    %v816 = vadd.f32 %v799, %v815
    %v817 = vmul.f32 %v815, %v811
    %v818 = vadd.f32 %v801, %v817
    %819 = vrot.lane.b32.xlu0 %v665, 123
    %v820 = vpop.permute.xlu0 %819
    %821 = vrot.lane.b32.xlu0 %v665, 11
    %v822 = vpop.permute.xlu0 %821
    %v823 = vsel %vm357, %v820, %v822
    %824 = vrot.lane.b32.xlu0 %v701, 123
    %v825 = vpop.permute.xlu0 %824
    %826 = vrot.lane.b32.xlu0 %v701, 11
    %v827 = vpop.permute.xlu0 %826
    %v828 = vsel %vm357, %v825, %v827
    %v829 = vmul.f32 %v630, %v823
    %v830 = vsub.f32 %v829, %v748
    %v831 = vmul.f32 %v830, 1.442695
    %v832 = vpow.pop %v831
    %v833 = vadd.f32 %v816, %v832
    %v834 = vmul.f32 %v832, %v828
    %v835 = vadd.f32 %v818, %v834
    %836 = vrot.lane.b32.xlu0 %v665, 122
    %v837 = vpop.permute.xlu0 %836
    %838 = vrot.lane.b32.xlu0 %v665, 10
    %v839 = vpop.permute.xlu0 %838
    %v840 = vsel %vm375, %v837, %v839
    %841 = vrot.lane.b32.xlu0 %v701, 122
    %v842 = vpop.permute.xlu0 %841
    %843 = vrot.lane.b32.xlu0 %v701, 10
    %v844 = vpop.permute.xlu0 %843
    %v845 = vsel %vm375, %v842, %v844
    %v846 = vmul.f32 %v630, %v840
    %v847 = vsub.f32 %v846, %v748
    %v848 = vmul.f32 %v847, 1.442695
    %v849 = vpow.pop %v848
    %v850 = vadd.f32 %v833, %v849
    %v851 = vmul.f32 %v849, %v845
    %v852 = vadd.f32 %v835, %v851
    %853 = vrot.lane.b32.xlu0 %v665, 121
    %v854 = vpop.permute.xlu0 %853
    %855 = vrot.lane.b32.xlu0 %v665, 9
    %v856 = vpop.permute.xlu0 %855
    %v857 = vsel %vm393, %v854, %v856
    %858 = vrot.lane.b32.xlu0 %v701, 121
    %v859 = vpop.permute.xlu0 %858
    %860 = vrot.lane.b32.xlu0 %v701, 9
    %v861 = vpop.permute.xlu0 %860
    %v862 = vsel %vm393, %v859, %v861
    %v863 = vmul.f32 %v630, %v857
    %v864 = vsub.f32 %v863, %v748
    %v865 = vmul.f32 %v864, 1.442695
    %v866 = vpow.pop %v865
    %v867 = vadd.f32 %v850, %v866
    %v868 = vmul.f32 %v866, %v862
    %v869 = vadd.f32 %v852, %v868
    %870 = vrot.lane.b32.xlu0 %v665, 120
    %v871 = vpop.permute.xlu0 %870
    %872 = vrot.lane.b32.xlu0 %v665, 8
    %v873 = vpop.permute.xlu0 %872
    %v874 = vsel %vm270, %v871, %v873
    %875 = vrot.lane.b32.xlu0 %v701, 120
    %v876 = vpop.permute.xlu0 %875
    %877 = vrot.lane.b32.xlu0 %v701, 8
    %v878 = vpop.permute.xlu0 %877
    %v879 = vsel %vm270, %v876, %v878
    %v880 = vmul.f32 %v630, %v874
    %v881 = vsub.f32 %v880, %v748
    %v882 = vmul.f32 %v881, 1.442695
    %v883 = vpow.pop %v882
    %v884 = vadd.f32 %v867, %v883
    %v885 = vmul.f32 %v883, %v879
    %v886 = vadd.f32 %v869, %v885
    %887 = vrot.lane.b32.xlu0 %v665, 119
    %v888 = vpop.permute.xlu0 %887
    %889 = vrot.lane.b32.xlu0 %v665, 7
    %v890 = vpop.permute.xlu0 %889
    %v891 = vsel %vm428, %v888, %v890
    %892 = vrot.lane.b32.xlu0 %v701, 119
    %v893 = vpop.permute.xlu0 %892
    %894 = vrot.lane.b32.xlu0 %v701, 7
    %v895 = vpop.permute.xlu0 %894
    %v896 = vsel %vm428, %v893, %v895
    %v897 = vmul.f32 %v630, %v891
    %v898 = vsub.f32 %v897, %v748
    %v899 = vmul.f32 %v898, 1.442695
    %v900 = vpow.pop %v899
    %v901 = vadd.f32 %v884, %v900
    %v902 = vmul.f32 %v900, %v896
    %v903 = vadd.f32 %v886, %v902
    %904 = vrot.lane.b32.xlu0 %v665, 118
    %v905 = vpop.permute.xlu0 %904
    %906 = vrot.lane.b32.xlu0 %v665, 6
    %v907 = vpop.permute.xlu0 %906
    %v908 = vsel %vm446, %v905, %v907
    %909 = vrot.lane.b32.xlu0 %v701, 118
    %v910 = vpop.permute.xlu0 %909
    %911 = vrot.lane.b32.xlu0 %v701, 6
    %v912 = vpop.permute.xlu0 %911
    %v913 = vsel %vm446, %v910, %v912
    %v914 = vmul.f32 %v630, %v908
    %v915 = vsub.f32 %v914, %v748
    %v916 = vmul.f32 %v915, 1.442695
    %v917 = vpow.pop %v916
    %v918 = vadd.f32 %v901, %v917
    %v919 = vmul.f32 %v917, %v913
    %v920 = vadd.f32 %v903, %v919
    %921 = vrot.lane.b32.xlu0 %v665, 117
    %v922 = vpop.permute.xlu0 %921
    %923 = vrot.lane.b32.xlu0 %v665, 5
    %v924 = vpop.permute.xlu0 %923
    %v925 = vsel %vm464, %v922, %v924
    %926 = vrot.lane.b32.xlu0 %v701, 117
    %v927 = vpop.permute.xlu0 %926
    %928 = vrot.lane.b32.xlu0 %v701, 5
    %v929 = vpop.permute.xlu0 %928
    %v930 = vsel %vm464, %v927, %v929
    %v931 = vmul.f32 %v630, %v925
    %v932 = vsub.f32 %v931, %v748
    %v933 = vmul.f32 %v932, 1.442695
    %v934 = vpow.pop %v933
    %v935 = vadd.f32 %v918, %v934
    %v936 = vmul.f32 %v934, %v930
    %v937 = vadd.f32 %v920, %v936
    %938 = vrot.lane.b32.xlu0 %v665, 116
    %v939 = vpop.permute.xlu0 %938
    %940 = vrot.lane.b32.xlu0 %v665, 4
    %v941 = vpop.permute.xlu0 %940
    %v942 = vsel %vm482, %v939, %v941
    %943 = vrot.lane.b32.xlu0 %v701, 116
    %v944 = vpop.permute.xlu0 %943
    %945 = vrot.lane.b32.xlu0 %v701, 4
    %v946 = vpop.permute.xlu0 %945
    %v947 = vsel %vm482, %v944, %v946
    %v948 = vmul.f32 %v630, %v942
    %v949 = vsub.f32 %v948, %v748
    %v950 = vmul.f32 %v949, 1.442695
    %v951 = vpow.pop %v950
    %v952 = vadd.f32 %v935, %v951
    %v953 = vmul.f32 %v951, %v947
    %v954 = vadd.f32 %v937, %v953
    %955 = vrot.lane.b32.xlu0 %v665, 115
    %v956 = vpop.permute.xlu0 %955
    %957 = vrot.lane.b32.xlu0 %v665, 3
    %v958 = vpop.permute.xlu0 %957
    %v959 = vsel %vm500, %v956, %v958
    %960 = vrot.lane.b32.xlu0 %v701, 115
    %v961 = vpop.permute.xlu0 %960
    %962 = vrot.lane.b32.xlu0 %v701, 3
    %v963 = vpop.permute.xlu0 %962
    %v964 = vsel %vm500, %v961, %v963
    %v965 = vmul.f32 %v630, %v959
    %v966 = vsub.f32 %v965, %v748
    %v967 = vmul.f32 %v966, 1.442695
    %v968 = vpow.pop %v967
    %v969 = vadd.f32 %v952, %v968
    %v970 = vmul.f32 %v968, %v964
    %v971 = vadd.f32 %v954, %v970
    %972 = vrot.lane.b32.xlu0 %v665, 114
    %v973 = vpop.permute.xlu0 %972
    %974 = vrot.lane.b32.xlu0 %v665, 2
    %v975 = vpop.permute.xlu0 %974
    %v976 = vsel %vm518, %v973, %v975
    %977 = vrot.lane.b32.xlu0 %v701, 114
    %v978 = vpop.permute.xlu0 %977
    %979 = vrot.lane.b32.xlu0 %v701, 2
    %v980 = vpop.permute.xlu0 %979
    %v981 = vsel %vm518, %v978, %v980
    %v982 = vmul.f32 %v630, %v976
    %v983 = vsub.f32 %v982, %v748
    %v984 = vmul.f32 %v983, 1.442695
    %v985 = vpow.pop %v984
    %v986 = vadd.f32 %v969, %v985
    %v987 = vmul.f32 %v985, %v981
    %v988 = vadd.f32 %v971, %v987
    %989 = vrot.lane.b32.xlu0 %v665, 113
    %v990 = vpop.permute.xlu0 %989
    %991 = vrot.lane.b32.xlu0 %v665, 1
    %v992 = vpop.permute.xlu0 %991
    %v993 = vsel %vm536, %v990, %v992
    %994 = vrot.lane.b32.xlu0 %v701, 113
    %v995 = vpop.permute.xlu0 %994
    %996 = vrot.lane.b32.xlu0 %v701, 1
    %v997 = vpop.permute.xlu0 %996
    %v998 = vsel %vm536, %v995, %v997
    %v999 = vmul.f32 %v630, %v993
    %v1000 = vsub.f32 %v999, %v748
    %v1001 = vmul.f32 %v1000, 1.442695
    %v1002 = vpow.pop %v1001
    %v1003 = vadd.f32 %v986, %v1002
    %v1004 = vmul.f32 %v1002, %v998
    %v1005 = vadd.f32 %v988, %v1004
    %v1006 = vrcp.pop %v1003
    %v1007 = vmul.f32 %v1003, %v1006
    %v1008 = vsub.f32 2.0, %v1007
    %v1009 = vmul.f32 %v1006, %v1008
    %v1010 = vmul.f32 %v1005, %v1009
    %v1011 = vld [vmem:[#allocation5 + $0x480] sm:$0xff]
    %v1012 = vld [vmem:[#allocation5 + $0x488] sm:$0xff]
    %v1013 = vld [vmem:[#allocation5 + $0x490] sm:$0xff]
    %v1014 = vld [vmem:[#allocation5 + $0x498] sm:$0xff]
    %v1015 = vld [vmem:[#allocation5 + $0x4a0] sm:$0xff]
    %v1016 = vld [vmem:[#allocation5 + $0x4a8] sm:$0xff]
    %v1017 = vld [vmem:[#allocation5 + $0x4b0] sm:$0xff]
    %v1018 = vld [vmem:[#allocation5 + $0x4b8] sm:$0xff]
    %v1019 = vld [vmem:[#allocation5 + $0x4c0] sm:$0xff]
    %v1020 = vld [vmem:[#allocation5 + $0x4c8] sm:$0xff]
    %v1021 = vld [vmem:[#allocation5 + $0x4d0] sm:$0xff]
    %v1022 = vld [vmem:[#allocation5 + $0x4d8] sm:$0xff]
    %v1023 = vld [vmem:[#allocation5 + $0x4e0] sm:$0xff]
    %v1024 = vld [vmem:[#allocation5 + $0x4e8] sm:$0xff]
    %v1025 = vld [vmem:[#allocation5 + $0x4f0] sm:$0xff]
    %v1026 = vld [vmem:[#allocation5 + $0x4f8] sm:$0xff]
    %v1027 = vld [vmem:[#allocation5 + $0x583] sm:$0x1]
    %v1028 = vperm.slane %v1027, 0
    %1029 = vmatpush.msra.mxu0 %v1026
    %1030 = vmatpush.msra.mxu0 %v1025
    %1031 = vmatpush.msra.mxu0 %v1024
    %1032 = vmatpush.msra.mxu0 %v1023
    %1033 = vmatpush.msra.mxu0 %v1022
    %1034 = vmatpush.msra.mxu0 %v1021
    %1035 = vmatpush.msra.mxu0 %v1020
    %1036 = vmatpush.msra.mxu0 %v1019
    %1037 = vmatpush.msra.mxu0 %v1018
    %1038 = vmatpush.msra.mxu0 %v1017
    %1039 = vmatpush.msra.mxu0 %v1016
    %1040 = vmatpush.msra.mxu0 %v1015
    %1041 = vmatpush.msra.mxu0 %v1014
    %1042 = vmatpush.msra.mxu0 %v1013
    %1043 = vmatpush.msra.mxu0 %v1012
    %1044 = vmatpush.msra.mxu0 %v1011
    %1045 = vmatmul.f32.gmra.mxu0 %v1010
    %v1046 = vpop.f32.mrf.mxu0
    %v1047 = vadd.f32 %v1028, %v1046
    %1048 = vdwg.mxu0
    %v1049 = vtanh.pop %v1047
    %v1050 = vld [vmem:[#allocation5 + $0x500] sm:$0xff]
    %v1051 = vld [vmem:[#allocation5 + $0x508] sm:$0xff]
    %v1052 = vld [vmem:[#allocation5 + $0x510] sm:$0xff]
    %v1053 = vld [vmem:[#allocation5 + $0x518] sm:$0xff]
    %v1054 = vld [vmem:[#allocation5 + $0x520] sm:$0xff]
    %v1055 = vld [vmem:[#allocation5 + $0x528] sm:$0xff]
    %v1056 = vld [vmem:[#allocation5 + $0x530] sm:$0xff]
    %v1057 = vld [vmem:[#allocation5 + $0x538] sm:$0xff]
    %v1058 = vld [vmem:[#allocation5 + $0x540] sm:$0xff]
    %v1059 = vld [vmem:[#allocation5 + $0x548] sm:$0xff]
    %v1060 = vld [vmem:[#allocation5 + $0x550] sm:$0xff]
    %v1061 = vld [vmem:[#allocation5 + $0x558] sm:$0xff]
    %v1062 = vld [vmem:[#allocation5 + $0x560] sm:$0xff]
    %v1063 = vld [vmem:[#allocation5 + $0x568] sm:$0xff]
    %v1064 = vld [vmem:[#allocation5 + $0x570] sm:$0xff]
    %v1065 = vld [vmem:[#allocation5 + $0x578] sm:$0xff]
    %v1066 = vld [vmem:[#allocation5 + $0x584] sm:$0x1]
    %v1067 = vperm.slane %v1066, 0
    %1068 = vmatpush.msra.mxu0 %v1065
    %1069 = vmatpush.msra.mxu0 %v1064
    %1070 = vmatpush.msra.mxu0 %v1063
    %1071 = vmatpush.msra.mxu0 %v1062
    %1072 = vmatpush.msra.mxu0 %v1061
    %1073 = vmatpush.msra.mxu0 %v1060
    %1074 = vmatpush.msra.mxu0 %v1059
    %1075 = vmatpush.msra.mxu0 %v1058
    %1076 = vmatpush.msra.mxu0 %v1057
    %1077 = vmatpush.msra.mxu0 %v1056
    %1078 = vmatpush.msra.mxu0 %v1055
    %1079 = vmatpush.msra.mxu0 %v1054
    %1080 = vmatpush.msra.mxu0 %v1053
    %1081 = vmatpush.msra.mxu0 %v1052
    %1082 = vmatpush.msra.mxu0 %v1051
    %1083 = vmatpush.msra.mxu0 %v1050
    %1084 = vmatmul.f32.gmra.mxu0 %v1049
    %v1085 = vpop.f32.mrf.mxu0
    %v1086 = vadd.f32 %v1067, %v1085
    %1087 = vdwg.mxu0
    %v1088 = vadd.f32 %v121, %v1086
    %v1089 = vld [vmem:[#allocation5 + $0x588] sm:$0xff]
    %v1090 = vld [vmem:[#allocation5 + $0x590] sm:$0xff]
    %v1091 = vld [vmem:[#allocation5 + $0x598] sm:$0xff]
    %v1092 = vld [vmem:[#allocation5 + $0x5a0] sm:$0xff]
    %v1093 = vld [vmem:[#allocation5 + $0x5a8] sm:$0xff]
    %v1094 = vld [vmem:[#allocation5 + $0x5b0] sm:$0xff]
    %v1095 = vld [vmem:[#allocation5 + $0x5b8] sm:$0xff]
    %v1096 = vld [vmem:[#allocation5 + $0x5c0] sm:$0xff]
    %v1097 = vld [vmem:[#allocation5 + $0x5c8] sm:$0xff]
    %v1098 = vld [vmem:[#allocation5 + $0x5d0] sm:$0xff]
    %v1099 = vld [vmem:[#allocation5 + $0x5d8] sm:$0xff]
    %v1100 = vld [vmem:[#allocation5 + $0x5e0] sm:$0xff]
    %v1101 = vld [vmem:[#allocation5 + $0x5e8] sm:$0xff]
    %v1102 = vld [vmem:[#allocation5 + $0x5f0] sm:$0xff]
    %v1103 = vld [vmem:[#allocation5 + $0x5f8] sm:$0xff]
    %v1104 = vld [vmem:[#allocation5 + $0x600] sm:$0xff]
    %v1105 = vld [vmem:[#allocation5 + $0xb88] sm:$0x1]
    %v1106 = vperm.slane %v1105, 0
    %1107 = vmatpush.msra.mxu0 %v1104
    %1108 = vmatpush.msra.mxu0 %v1103
    %1109 = vmatpush.msra.mxu0 %v1102
    %1110 = vmatpush.msra.mxu0 %v1101
    %1111 = vmatpush.msra.mxu0 %v1100
    %1112 = vmatpush.msra.mxu0 %v1099
    %1113 = vmatpush.msra.mxu0 %v1098
    %1114 = vmatpush.msra.mxu0 %v1097
    %1115 = vmatpush.msra.mxu0 %v1096
    %1116 = vmatpush.msra.mxu0 %v1095
    %1117 = vmatpush.msra.mxu0 %v1094
    %1118 = vmatpush.msra.mxu0 %v1093
    %1119 = vmatpush.msra.mxu0 %v1092
    %1120 = vmatpush.msra.mxu0 %v1091
    %1121 = vmatpush.msra.mxu0 %v1090
    %1122 = vmatpush.msra.mxu0 %v1089
    %1123 = vmatmul.f32.gmra.mxu0 %v45
    %v1124 = vpop.f32.mrf.mxu0
    %v1125 = vadd.f32 %v1106, %v1124
    %1126 = vdwg.mxu0
    %v1127 = vld [vmem:[#allocation5 + $0x608] sm:$0xff]
    %v1128 = vld [vmem:[#allocation5 + $0x610] sm:$0xff]
    %v1129 = vld [vmem:[#allocation5 + $0x618] sm:$0xff]
    %v1130 = vld [vmem:[#allocation5 + $0x620] sm:$0xff]
    %v1131 = vld [vmem:[#allocation5 + $0x628] sm:$0xff]
    %v1132 = vld [vmem:[#allocation5 + $0x630] sm:$0xff]
    %v1133 = vld [vmem:[#allocation5 + $0x638] sm:$0xff]
    %v1134 = vld [vmem:[#allocation5 + $0x640] sm:$0xff]
    %v1135 = vld [vmem:[#allocation5 + $0x648] sm:$0xff]
    %v1136 = vld [vmem:[#allocation5 + $0x650] sm:$0xff]
    %v1137 = vld [vmem:[#allocation5 + $0x658] sm:$0xff]
    %v1138 = vld [vmem:[#allocation5 + $0x660] sm:$0xff]
    %v1139 = vld [vmem:[#allocation5 + $0x668] sm:$0xff]
    %v1140 = vld [vmem:[#allocation5 + $0x670] sm:$0xff]
    %v1141 = vld [vmem:[#allocation5 + $0x678] sm:$0xff]
    %v1142 = vld [vmem:[#allocation5 + $0x680] sm:$0xff]
    %1143 = vmatpush.msra.mxu0 %v1142
    %1144 = vmatpush.msra.mxu0 %v1141
    %1145 = vmatpush.msra.mxu0 %v1140
    %1146 = vmatpush.msra.mxu0 %v1139
    %1147 = vmatpush.msra.mxu0 %v1138
    %1148 = vmatpush.msra.mxu0 %v1137
    %1149 = vmatpush.msra.mxu0 %v1136
    %1150 = vmatpush.msra.mxu0 %v1135
    %1151 = vmatpush.msra.mxu0 %v1134
    %1152 = vmatpush.msra.mxu0 %v1133
    %1153 = vmatpush.msra.mxu0 %v1132
    %1154 = vmatpush.msra.mxu0 %v1131
    %1155 = vmatpush.msra.mxu0 %v1130
    %1156 = vmatpush.msra.mxu0 %v1129
    %1157 = vmatpush.msra.mxu0 %v1128
    %1158 = vmatpush.msra.mxu0 %v1127
    %1159 = vmatmul.f32.gmra.mxu0 %v1088
    %v1160 = vpop.f32.mrf.mxu0
    %v1161 = vadd.f32 0.0, %v1160
    %1162 = vdwg.mxu0
    %v1163 = vadd.f32 %v1125, %v1161
    %v1164 = vtanh.pop %v1163
    %v1165 = vld [vmem:[#allocation5 + $0x688] sm:$0xff]
    %v1166 = vld [vmem:[#allocation5 + $0x690] sm:$0xff]
    %v1167 = vld [vmem:[#allocation5 + $0x698] sm:$0xff]
    %v1168 = vld [vmem:[#allocation5 + $0x6a0] sm:$0xff]
    %v1169 = vld [vmem:[#allocation5 + $0x6a8] sm:$0xff]
    %v1170 = vld [vmem:[#allocation5 + $0x6b0] sm:$0xff]
    %v1171 = vld [vmem:[#allocation5 + $0x6b8] sm:$0xff]
    %v1172 = vld [vmem:[#allocation5 + $0x6c0] sm:$0xff]
    %v1173 = vld [vmem:[#allocation5 + $0x6c8] sm:$0xff]
    %v1174 = vld [vmem:[#allocation5 + $0x6d0] sm:$0xff]
    %v1175 = vld [vmem:[#allocation5 + $0x6d8] sm:$0xff]
    %v1176 = vld [vmem:[#allocation5 + $0x6e0] sm:$0xff]
    %v1177 = vld [vmem:[#allocation5 + $0x6e8] sm:$0xff]
    %v1178 = vld [vmem:[#allocation5 + $0x6f0] sm:$0xff]
    %v1179 = vld [vmem:[#allocation5 + $0x6f8] sm:$0xff]
    %v1180 = vld [vmem:[#allocation5 + $0x700] sm:$0xff]
    %v1181 = vld [vmem:[#allocation5 + $0xb89] sm:$0x1]
    %v1182 = vperm.slane %v1181, 0
    %1183 = vmatpush.msra.mxu0 %v1180
    %1184 = vmatpush.msra.mxu0 %v1179
    %1185 = vmatpush.msra.mxu0 %v1178
    %1186 = vmatpush.msra.mxu0 %v1177
    %1187 = vmatpush.msra.mxu0 %v1176
    %1188 = vmatpush.msra.mxu0 %v1175
    %1189 = vmatpush.msra.mxu0 %v1174
    %1190 = vmatpush.msra.mxu0 %v1173
    %1191 = vmatpush.msra.mxu0 %v1172
    %1192 = vmatpush.msra.mxu0 %v1171
    %1193 = vmatpush.msra.mxu0 %v1170
    %1194 = vmatpush.msra.mxu0 %v1169
    %1195 = vmatpush.msra.mxu0 %v1168
    %1196 = vmatpush.msra.mxu0 %v1167
    %1197 = vmatpush.msra.mxu0 %v1166
    %1198 = vmatpush.msra.mxu0 %v1165
    %1199 = vmatmul.f32.gmra.mxu0 %v1164
    %v1200 = vpop.f32.mrf.mxu0
    %v1201 = vadd.f32 %v1182, %v1200
    %1202 = vdwg.mxu0
    %v1203 = vld [vmem:[#allocation5 + $0x708] sm:$0xff]
    %v1204 = vld [vmem:[#allocation5 + $0x710] sm:$0xff]
    %v1205 = vld [vmem:[#allocation5 + $0x718] sm:$0xff]
    %v1206 = vld [vmem:[#allocation5 + $0x720] sm:$0xff]
    %v1207 = vld [vmem:[#allocation5 + $0x728] sm:$0xff]
    %v1208 = vld [vmem:[#allocation5 + $0x730] sm:$0xff]
    %v1209 = vld [vmem:[#allocation5 + $0x738] sm:$0xff]
    %v1210 = vld [vmem:[#allocation5 + $0x740] sm:$0xff]
    %v1211 = vld [vmem:[#allocation5 + $0x748] sm:$0xff]
    %v1212 = vld [vmem:[#allocation5 + $0x750] sm:$0xff]
    %v1213 = vld [vmem:[#allocation5 + $0x758] sm:$0xff]
    %v1214 = vld [vmem:[#allocation5 + $0x760] sm:$0xff]
    %v1215 = vld [vmem:[#allocation5 + $0x768] sm:$0xff]
    %v1216 = vld [vmem:[#allocation5 + $0x770] sm:$0xff]
    %v1217 = vld [vmem:[#allocation5 + $0x778] sm:$0xff]
    %v1218 = vld [vmem:[#allocation5 + $0x780] sm:$0xff]
    %1219 = vmatpush.msra.mxu0 %v1218
    %1220 = vmatpush.msra.mxu0 %v1217
    %1221 = vmatpush.msra.mxu0 %v1216
    %1222 = vmatpush.msra.mxu0 %v1215
    %1223 = vmatpush.msra.mxu0 %v1214
    %1224 = vmatpush.msra.mxu0 %v1213
    %1225 = vmatpush.msra.mxu0 %v1212
    %1226 = vmatpush.msra.mxu0 %v1211
    %1227 = vmatpush.msra.mxu0 %v1210
    %1228 = vmatpush.msra.mxu0 %v1209
    %1229 = vmatpush.msra.mxu0 %v1208
    %1230 = vmatpush.msra.mxu0 %v1207
    %1231 = vmatpush.msra.mxu0 %v1206
    %1232 = vmatpush.msra.mxu0 %v1205
    %1233 = vmatpush.msra.mxu0 %v1204
    %1234 = vmatpush.msra.mxu0 %v1203
    %1235 = vmatmul.f32.gmra.mxu0 %v1164
    %v1236 = vpop.f32.mrf.mxu0
    %v1237 = vadd.f32 0.0, %v1236
    %1238 = vdwg.mxu0
    %v1239 = vmul.f32 %v1237, 0.25
    %v1240 = vld [vmem:[#allocation5 + $0x788] sm:$0xff]
    %v1241 = vld [vmem:[#allocation5 + $0x790] sm:$0xff]
    %v1242 = vld [vmem:[#allocation5 + $0x798] sm:$0xff]
    %v1243 = vld [vmem:[#allocation5 + $0x7a0] sm:$0xff]
    %v1244 = vld [vmem:[#allocation5 + $0x7a8] sm:$0xff]
    %v1245 = vld [vmem:[#allocation5 + $0x7b0] sm:$0xff]
    %v1246 = vld [vmem:[#allocation5 + $0x7b8] sm:$0xff]
    %v1247 = vld [vmem:[#allocation5 + $0x7c0] sm:$0xff]
    %v1248 = vld [vmem:[#allocation5 + $0x7c8] sm:$0xff]
    %v1249 = vld [vmem:[#allocation5 + $0x7d0] sm:$0xff]
    %v1250 = vld [vmem:[#allocation5 + $0x7d8] sm:$0xff]
    %v1251 = vld [vmem:[#allocation5 + $0x7e0] sm:$0xff]
    %v1252 = vld [vmem:[#allocation5 + $0x7e8] sm:$0xff]
    %v1253 = vld [vmem:[#allocation5 + $0x7f0] sm:$0xff]
    %v1254 = vld [vmem:[#allocation5 + $0x7f8] sm:$0xff]
    %v1255 = vld [vmem:[#allocation5 + $0x800] sm:$0xff]
    %1256 = vmatpush.msra.mxu0 %v1255
    %1257 = vmatpush.msra.mxu0 %v1254
    %1258 = vmatpush.msra.mxu0 %v1253
    %1259 = vmatpush.msra.mxu0 %v1252
    %1260 = vmatpush.msra.mxu0 %v1251
    %1261 = vmatpush.msra.mxu0 %v1250
    %1262 = vmatpush.msra.mxu0 %v1249
    %1263 = vmatpush.msra.mxu0 %v1248
    %1264 = vmatpush.msra.mxu0 %v1247
    %1265 = vmatpush.msra.mxu0 %v1246
    %1266 = vmatpush.msra.mxu0 %v1245
    %1267 = vmatpush.msra.mxu0 %v1244
    %1268 = vmatpush.msra.mxu0 %v1243
    %1269 = vmatpush.msra.mxu0 %v1242
    %1270 = vmatpush.msra.mxu0 %v1241
    %1271 = vmatpush.msra.mxu0 %v1240
    %1272 = vmatmul.f32.gmra.mxu0 %v1164
    %v1273 = vpop.f32.mrf.mxu0
    %v1274 = vadd.f32 0.0, %v1273
    %1275 = vdwg.mxu0
    %v1276 = vld [vmem:[#allocation5 + $0x808] sm:$0xff]
    %v1277 = vld [vmem:[#allocation5 + $0x810] sm:$0xff]
    %v1278 = vld [vmem:[#allocation5 + $0x818] sm:$0xff]
    %v1279 = vld [vmem:[#allocation5 + $0x820] sm:$0xff]
    %v1280 = vld [vmem:[#allocation5 + $0x828] sm:$0xff]
    %v1281 = vld [vmem:[#allocation5 + $0x830] sm:$0xff]
    %v1282 = vld [vmem:[#allocation5 + $0x838] sm:$0xff]
    %v1283 = vld [vmem:[#allocation5 + $0x840] sm:$0xff]
    %v1284 = vld [vmem:[#allocation5 + $0x848] sm:$0xff]
    %v1285 = vld [vmem:[#allocation5 + $0x850] sm:$0xff]
    %v1286 = vld [vmem:[#allocation5 + $0x858] sm:$0xff]
    %v1287 = vld [vmem:[#allocation5 + $0x860] sm:$0xff]
    %v1288 = vld [vmem:[#allocation5 + $0x868] sm:$0xff]
    %v1289 = vld [vmem:[#allocation5 + $0x870] sm:$0xff]
    %v1290 = vld [vmem:[#allocation5 + $0x878] sm:$0xff]
    %v1291 = vld [vmem:[#allocation5 + $0x880] sm:$0xff]
    %1292 = vmatpush.msra.mxu0 %v1291
    %1293 = vmatpush.msra.mxu0 %v1290
    %1294 = vmatpush.msra.mxu0 %v1289
    %1295 = vmatpush.msra.mxu0 %v1288
    %1296 = vmatpush.msra.mxu0 %v1287
    %1297 = vmatpush.msra.mxu0 %v1286
    %1298 = vmatpush.msra.mxu0 %v1285
    %1299 = vmatpush.msra.mxu0 %v1284
    %1300 = vmatpush.msra.mxu0 %v1283
    %1301 = vmatpush.msra.mxu0 %v1282
    %1302 = vmatpush.msra.mxu0 %v1281
    %1303 = vmatpush.msra.mxu0 %v1280
    %1304 = vmatpush.msra.mxu0 %v1279
    %1305 = vmatpush.msra.mxu0 %v1278
    %1306 = vmatpush.msra.mxu0 %v1277
    %1307 = vmatpush.msra.mxu0 %v1276
    %1308 = vmatmul.f32.gmra.mxu0 %v1164
    %v1309 = vpop.f32.mrf.mxu0
    %v1310 = vadd.f32 0.0, %v1309
    %1311 = vdwg.mxu0
    %1312 = vrot.lane.b32.xlu0 %v1274, 127
    %v1313 = vpop.permute.xlu0 %1312
    %1314 = vrot.lane.b32.xlu0 %v1274, 15
    %v1315 = vpop.permute.xlu0 %1314
    %v1316 = vsel %vm236, %v1313, %v1315
    %v1317 = vmax.f32 %v1274, %v1316
    %v1318 = vmin.f32 %v1274, %v1316
    %1319 = vrot.lane.b32.xlu0 %v1317, 126
    %v1320 = vpop.permute.xlu0 %1319
    %1321 = vrot.lane.b32.xlu0 %v1317, 14
    %v1322 = vpop.permute.xlu0 %1321
    %v1323 = vsel %vm244, %v1320, %v1322
    %v1324 = vmax.f32 %v1317, %v1323
    %1325 = vrot.lane.b32.xlu0 %v1318, 126
    %v1326 = vpop.permute.xlu0 %1325
    %1327 = vrot.lane.b32.xlu0 %v1318, 14
    %v1328 = vpop.permute.xlu0 %1327
    %v1329 = vsel %vm244, %v1326, %v1328
    %v1330 = vmin.f32 %v1318, %v1329
    %1331 = vrot.lane.b32.xlu0 %v1324, 124
    %v1332 = vpop.permute.xlu0 %1331
    %1333 = vrot.lane.b32.xlu0 %v1324, 12
    %v1334 = vpop.permute.xlu0 %1333
    %v1335 = vsel %vm257, %v1332, %v1334
    %v1336 = vmax.f32 %v1324, %v1335
    %1337 = vrot.lane.b32.xlu0 %v1330, 124
    %v1338 = vpop.permute.xlu0 %1337
    %1339 = vrot.lane.b32.xlu0 %v1330, 12
    %v1340 = vpop.permute.xlu0 %1339
    %v1341 = vsel %vm257, %v1338, %v1340
    %v1342 = vmin.f32 %v1330, %v1341
    %1343 = vrot.lane.b32.xlu0 %v1336, 120
    %v1344 = vpop.permute.xlu0 %1343
    %1345 = vrot.lane.b32.xlu0 %v1336, 8
    %v1346 = vpop.permute.xlu0 %1345
    %v1347 = vsel %vm270, %v1344, %v1346
    %v1348 = vmax.f32 %v1336, %v1347
    %1349 = vrot.lane.b32.xlu0 %v1342, 120
    %v1350 = vpop.permute.xlu0 %1349
    %1351 = vrot.lane.b32.xlu0 %v1342, 8
    %v1352 = vpop.permute.xlu0 %1351
    %v1353 = vsel %vm270, %v1350, %v1352
    %v1354 = vmin.f32 %v1342, %v1353
    %v1355 = vmul.f32 %v1239, %v1348
    %v1356 = vmul.f32 %v1239, %v1354
    %v1357 = vmax.f32 %v1355, %v1356
    %v1358 = vmul.f32 %v1239, %v1274
    %v1359 = vsub.f32 %v1358, %v1357
    %v1360 = vmul.f32 %v1359, 1.442695
    %v1361 = vpow.pop %v1360
    %v1362 = vadd.f32 %v1361, 0.0
    %v1363 = vmul.f32 %v1361, %v1310
    %v1364 = vadd.f32 %v1363, 0.0
    %1365 = vrot.lane.b32.xlu0 %v1310, 127
    %v1366 = vpop.permute.xlu0 %1365
    %1367 = vrot.lane.b32.xlu0 %v1310, 15
    %v1368 = vpop.permute.xlu0 %1367
    %v1369 = vsel %vm236, %v1366, %v1368
    %v1370 = vmul.f32 %v1239, %v1316
    %v1371 = vsub.f32 %v1370, %v1357
    %v1372 = vmul.f32 %v1371, 1.442695
    %v1373 = vpow.pop %v1372
    %v1374 = vadd.f32 %v1362, %v1373
    %v1375 = vmul.f32 %v1373, %v1369
    %v1376 = vadd.f32 %v1364, %v1375
    %1377 = vrot.lane.b32.xlu0 %v1274, 126
    %v1378 = vpop.permute.xlu0 %1377
    %1379 = vrot.lane.b32.xlu0 %v1274, 14
    %v1380 = vpop.permute.xlu0 %1379
    %v1381 = vsel %vm244, %v1378, %v1380
    %1382 = vrot.lane.b32.xlu0 %v1310, 126
    %v1383 = vpop.permute.xlu0 %1382
    %1384 = vrot.lane.b32.xlu0 %v1310, 14
    %v1385 = vpop.permute.xlu0 %1384
    %v1386 = vsel %vm244, %v1383, %v1385
    %v1387 = vmul.f32 %v1239, %v1381
    %v1388 = vsub.f32 %v1387, %v1357
    %v1389 = vmul.f32 %v1388, 1.442695
    %v1390 = vpow.pop %v1389
    %v1391 = vadd.f32 %v1374, %v1390
    %v1392 = vmul.f32 %v1390, %v1386
    %v1393 = vadd.f32 %v1376, %v1392
    %1394 = vrot.lane.b32.xlu0 %v1274, 125
    %v1395 = vpop.permute.xlu0 %1394
    %1396 = vrot.lane.b32.xlu0 %v1274, 13
    %v1397 = vpop.permute.xlu0 %1396
    %v1398 = vsel %vm322, %v1395, %v1397
    %1399 = vrot.lane.b32.xlu0 %v1310, 125
    %v1400 = vpop.permute.xlu0 %1399
    %1401 = vrot.lane.b32.xlu0 %v1310, 13
    %v1402 = vpop.permute.xlu0 %1401
    %v1403 = vsel %vm322, %v1400, %v1402
    %v1404 = vmul.f32 %v1239, %v1398
    %v1405 = vsub.f32 %v1404, %v1357
    %v1406 = vmul.f32 %v1405, 1.442695
    %v1407 = vpow.pop %v1406
    %v1408 = vadd.f32 %v1391, %v1407
    %v1409 = vmul.f32 %v1407, %v1403
    %v1410 = vadd.f32 %v1393, %v1409
    %1411 = vrot.lane.b32.xlu0 %v1274, 124
    %v1412 = vpop.permute.xlu0 %1411
    %1413 = vrot.lane.b32.xlu0 %v1274, 12
    %v1414 = vpop.permute.xlu0 %1413
    %v1415 = vsel %vm257, %v1412, %v1414
    %1416 = vrot.lane.b32.xlu0 %v1310, 124
    %v1417 = vpop.permute.xlu0 %1416
    %1418 = vrot.lane.b32.xlu0 %v1310, 12
    %v1419 = vpop.permute.xlu0 %1418
    %v1420 = vsel %vm257, %v1417, %v1419
    %v1421 = vmul.f32 %v1239, %v1415
    %v1422 = vsub.f32 %v1421, %v1357
    %v1423 = vmul.f32 %v1422, 1.442695
    %v1424 = vpow.pop %v1423
    %v1425 = vadd.f32 %v1408, %v1424
    %v1426 = vmul.f32 %v1424, %v1420
    %v1427 = vadd.f32 %v1410, %v1426
    %1428 = vrot.lane.b32.xlu0 %v1274, 123
    %v1429 = vpop.permute.xlu0 %1428
    %1430 = vrot.lane.b32.xlu0 %v1274, 11
    %v1431 = vpop.permute.xlu0 %1430
    %v1432 = vsel %vm357, %v1429, %v1431
    %1433 = vrot.lane.b32.xlu0 %v1310, 123
    %v1434 = vpop.permute.xlu0 %1433
    %1435 = vrot.lane.b32.xlu0 %v1310, 11
    %v1436 = vpop.permute.xlu0 %1435
    %v1437 = vsel %vm357, %v1434, %v1436
    %v1438 = vmul.f32 %v1239, %v1432
    %v1439 = vsub.f32 %v1438, %v1357
    %v1440 = vmul.f32 %v1439, 1.442695
    %v1441 = vpow.pop %v1440
    %v1442 = vadd.f32 %v1425, %v1441
    %v1443 = vmul.f32 %v1441, %v1437
    %v1444 = vadd.f32 %v1427, %v1443
    %1445 = vrot.lane.b32.xlu0 %v1274, 122
    %v1446 = vpop.permute.xlu0 %1445
    %1447 = vrot.lane.b32.xlu0 %v1274, 10
    %v1448 = vpop.permute.xlu0 %1447
    %v1449 = vsel %vm375, %v1446, %v1448
    %1450 = vrot.lane.b32.xlu0 %v1310, 122
    %v1451 = vpop.permute.xlu0 %1450
    %1452 = vrot.lane.b32.xlu0 %v1310, 10
    %v1453 = vpop.permute.xlu0 %1452
    %v1454 = vsel %vm375, %v1451, %v1453
    %v1455 = vmul.f32 %v1239, %v1449
    %v1456 = vsub.f32 %v1455, %v1357
    %v1457 = vmul.f32 %v1456, 1.442695
    %v1458 = vpow.pop %v1457
    %v1459 = vadd.f32 %v1442, %v1458
    %v1460 = vmul.f32 %v1458, %v1454
    %v1461 = vadd.f32 %v1444, %v1460
    %1462 = vrot.lane.b32.xlu0 %v1274, 121
    %v1463 = vpop.permute.xlu0 %1462
    %1464 = vrot.lane.b32.xlu0 %v1274, 9
    %v1465 = vpop.permute.xlu0 %1464
    %v1466 = vsel %vm393, %v1463, %v1465
    %1467 = vrot.lane.b32.xlu0 %v1310, 121
    %v1468 = vpop.permute.xlu0 %1467
    %1469 = vrot.lane.b32.xlu0 %v1310, 9
    %v1470 = vpop.permute.xlu0 %1469
    %v1471 = vsel %vm393, %v1468, %v1470
    %v1472 = vmul.f32 %v1239, %v1466
    %v1473 = vsub.f32 %v1472, %v1357
    %v1474 = vmul.f32 %v1473, 1.442695
    %v1475 = vpow.pop %v1474
    %v1476 = vadd.f32 %v1459, %v1475
    %v1477 = vmul.f32 %v1475, %v1471
    %v1478 = vadd.f32 %v1461, %v1477
    %1479 = vrot.lane.b32.xlu0 %v1274, 120
    %v1480 = vpop.permute.xlu0 %1479
    %1481 = vrot.lane.b32.xlu0 %v1274, 8
    %v1482 = vpop.permute.xlu0 %1481
    %v1483 = vsel %vm270, %v1480, %v1482
    %1484 = vrot.lane.b32.xlu0 %v1310, 120
    %v1485 = vpop.permute.xlu0 %1484
    %1486 = vrot.lane.b32.xlu0 %v1310, 8
    %v1487 = vpop.permute.xlu0 %1486
    %v1488 = vsel %vm270, %v1485, %v1487
    %v1489 = vmul.f32 %v1239, %v1483
    %v1490 = vsub.f32 %v1489, %v1357
    %v1491 = vmul.f32 %v1490, 1.442695
    %v1492 = vpow.pop %v1491
    %v1493 = vadd.f32 %v1476, %v1492
    %v1494 = vmul.f32 %v1492, %v1488
    %v1495 = vadd.f32 %v1478, %v1494
    %1496 = vrot.lane.b32.xlu0 %v1274, 119
    %v1497 = vpop.permute.xlu0 %1496
    %1498 = vrot.lane.b32.xlu0 %v1274, 7
    %v1499 = vpop.permute.xlu0 %1498
    %v1500 = vsel %vm428, %v1497, %v1499
    %1501 = vrot.lane.b32.xlu0 %v1310, 119
    %v1502 = vpop.permute.xlu0 %1501
    %1503 = vrot.lane.b32.xlu0 %v1310, 7
    %v1504 = vpop.permute.xlu0 %1503
    %v1505 = vsel %vm428, %v1502, %v1504
    %v1506 = vmul.f32 %v1239, %v1500
    %v1507 = vsub.f32 %v1506, %v1357
    %v1508 = vmul.f32 %v1507, 1.442695
    %v1509 = vpow.pop %v1508
    %v1510 = vadd.f32 %v1493, %v1509
    %v1511 = vmul.f32 %v1509, %v1505
    %v1512 = vadd.f32 %v1495, %v1511
    %1513 = vrot.lane.b32.xlu0 %v1274, 118
    %v1514 = vpop.permute.xlu0 %1513
    %1515 = vrot.lane.b32.xlu0 %v1274, 6
    %v1516 = vpop.permute.xlu0 %1515
    %v1517 = vsel %vm446, %v1514, %v1516
    %1518 = vrot.lane.b32.xlu0 %v1310, 118
    %v1519 = vpop.permute.xlu0 %1518
    %1520 = vrot.lane.b32.xlu0 %v1310, 6
    %v1521 = vpop.permute.xlu0 %1520
    %v1522 = vsel %vm446, %v1519, %v1521
    %v1523 = vmul.f32 %v1239, %v1517
    %v1524 = vsub.f32 %v1523, %v1357
    %v1525 = vmul.f32 %v1524, 1.442695
    %v1526 = vpow.pop %v1525
    %v1527 = vadd.f32 %v1510, %v1526
    %v1528 = vmul.f32 %v1526, %v1522
    %v1529 = vadd.f32 %v1512, %v1528
    %1530 = vrot.lane.b32.xlu0 %v1274, 117
    %v1531 = vpop.permute.xlu0 %1530
    %1532 = vrot.lane.b32.xlu0 %v1274, 5
    %v1533 = vpop.permute.xlu0 %1532
    %v1534 = vsel %vm464, %v1531, %v1533
    %1535 = vrot.lane.b32.xlu0 %v1310, 117
    %v1536 = vpop.permute.xlu0 %1535
    %1537 = vrot.lane.b32.xlu0 %v1310, 5
    %v1538 = vpop.permute.xlu0 %1537
    %v1539 = vsel %vm464, %v1536, %v1538
    %v1540 = vmul.f32 %v1239, %v1534
    %v1541 = vsub.f32 %v1540, %v1357
    %v1542 = vmul.f32 %v1541, 1.442695
    %v1543 = vpow.pop %v1542
    %v1544 = vadd.f32 %v1527, %v1543
    %v1545 = vmul.f32 %v1543, %v1539
    %v1546 = vadd.f32 %v1529, %v1545
    %1547 = vrot.lane.b32.xlu0 %v1274, 116
    %v1548 = vpop.permute.xlu0 %1547
    %1549 = vrot.lane.b32.xlu0 %v1274, 4
    %v1550 = vpop.permute.xlu0 %1549
    %v1551 = vsel %vm482, %v1548, %v1550
    %1552 = vrot.lane.b32.xlu0 %v1310, 116
    %v1553 = vpop.permute.xlu0 %1552
    %1554 = vrot.lane.b32.xlu0 %v1310, 4
    %v1555 = vpop.permute.xlu0 %1554
    %v1556 = vsel %vm482, %v1553, %v1555
    %v1557 = vmul.f32 %v1239, %v1551
    %v1558 = vsub.f32 %v1557, %v1357
    %v1559 = vmul.f32 %v1558, 1.442695
    %v1560 = vpow.pop %v1559
    %v1561 = vadd.f32 %v1544, %v1560
    %v1562 = vmul.f32 %v1560, %v1556
    %v1563 = vadd.f32 %v1546, %v1562
    %1564 = vrot.lane.b32.xlu0 %v1274, 115
    %v1565 = vpop.permute.xlu0 %1564
    %1566 = vrot.lane.b32.xlu0 %v1274, 3
    %v1567 = vpop.permute.xlu0 %1566
    %v1568 = vsel %vm500, %v1565, %v1567
    %1569 = vrot.lane.b32.xlu0 %v1310, 115
    %v1570 = vpop.permute.xlu0 %1569
    %1571 = vrot.lane.b32.xlu0 %v1310, 3
    %v1572 = vpop.permute.xlu0 %1571
    %v1573 = vsel %vm500, %v1570, %v1572
    %v1574 = vmul.f32 %v1239, %v1568
    %v1575 = vsub.f32 %v1574, %v1357
    %v1576 = vmul.f32 %v1575, 1.442695
    %v1577 = vpow.pop %v1576
    %v1578 = vadd.f32 %v1561, %v1577
    %v1579 = vmul.f32 %v1577, %v1573
    %v1580 = vadd.f32 %v1563, %v1579
    %1581 = vrot.lane.b32.xlu0 %v1274, 114
    %v1582 = vpop.permute.xlu0 %1581
    %1583 = vrot.lane.b32.xlu0 %v1274, 2
    %v1584 = vpop.permute.xlu0 %1583
    %v1585 = vsel %vm518, %v1582, %v1584
    %1586 = vrot.lane.b32.xlu0 %v1310, 114
    %v1587 = vpop.permute.xlu0 %1586
    %1588 = vrot.lane.b32.xlu0 %v1310, 2
    %v1589 = vpop.permute.xlu0 %1588
    %v1590 = vsel %vm518, %v1587, %v1589
    %v1591 = vmul.f32 %v1239, %v1585
    %v1592 = vsub.f32 %v1591, %v1357
    %v1593 = vmul.f32 %v1592, 1.442695
    %v1594 = vpow.pop %v1593
    %v1595 = vadd.f32 %v1578, %v1594
    %v1596 = vmul.f32 %v1594, %v1590
    %v1597 = vadd.f32 %v1580, %v1596
    %1598 = vrot.lane.b32.xlu0 %v1274, 113
    %v1599 = vpop.permute.xlu0 %1598
    %1600 = vrot.lane.b32.xlu0 %v1274, 1
    %v1601 = vpop.permute.xlu0 %1600
    %v1602 = vsel %vm536, %v1599, %v1601
    %1603 = vrot.lane.b32.xlu0 %v1310, 113
    %v1604 = vpop.permute.xlu0 %1603
    %1605 = vrot.lane.b32.xlu0 %v1310, 1
    %v1606 = vpop.permute.xlu0 %1605
    %v1607 = vsel %vm536, %v1604, %v1606
    %v1608 = vmul.f32 %v1239, %v1602
    %v1609 = vsub.f32 %v1608, %v1357
    %v1610 = vmul.f32 %v1609, 1.442695
    %v1611 = vpow.pop %v1610
    %v1612 = vadd.f32 %v1595, %v1611
    %v1613 = vmul.f32 %v1611, %v1607
    %v1614 = vadd.f32 %v1597, %v1613
    %v1615 = vrcp.pop %v1612
    %v1616 = vmul.f32 %v1612, %v1615
    %v1617 = vsub.f32 2.0, %v1616
    %v1618 = vmul.f32 %v1615, %v1617
    %v1619 = vmul.f32 %v1614, %v1618
    %v1620 = vld [vmem:[#allocation5 + $0x888] sm:$0xff]
    %v1621 = vld [vmem:[#allocation5 + $0x890] sm:$0xff]
    %v1622 = vld [vmem:[#allocation5 + $0x898] sm:$0xff]
    %v1623 = vld [vmem:[#allocation5 + $0x8a0] sm:$0xff]
    %v1624 = vld [vmem:[#allocation5 + $0x8a8] sm:$0xff]
    %v1625 = vld [vmem:[#allocation5 + $0x8b0] sm:$0xff]
    %v1626 = vld [vmem:[#allocation5 + $0x8b8] sm:$0xff]
    %v1627 = vld [vmem:[#allocation5 + $0x8c0] sm:$0xff]
    %v1628 = vld [vmem:[#allocation5 + $0x8c8] sm:$0xff]
    %v1629 = vld [vmem:[#allocation5 + $0x8d0] sm:$0xff]
    %v1630 = vld [vmem:[#allocation5 + $0x8d8] sm:$0xff]
    %v1631 = vld [vmem:[#allocation5 + $0x8e0] sm:$0xff]
    %v1632 = vld [vmem:[#allocation5 + $0x8e8] sm:$0xff]
    %v1633 = vld [vmem:[#allocation5 + $0x8f0] sm:$0xff]
    %v1634 = vld [vmem:[#allocation5 + $0x8f8] sm:$0xff]
    %v1635 = vld [vmem:[#allocation5 + $0x900] sm:$0xff]
    %v1636 = vld [vmem:[#allocation5 + $0xb8a] sm:$0x1]
    %v1637 = vperm.slane %v1636, 0
    %1638 = vmatpush.msra.mxu0 %v1635
    %1639 = vmatpush.msra.mxu0 %v1634
    %1640 = vmatpush.msra.mxu0 %v1633
    %1641 = vmatpush.msra.mxu0 %v1632
    %1642 = vmatpush.msra.mxu0 %v1631
    %1643 = vmatpush.msra.mxu0 %v1630
    %1644 = vmatpush.msra.mxu0 %v1629
    %1645 = vmatpush.msra.mxu0 %v1628
    %1646 = vmatpush.msra.mxu0 %v1627
    %1647 = vmatpush.msra.mxu0 %v1626
    %1648 = vmatpush.msra.mxu0 %v1625
    %1649 = vmatpush.msra.mxu0 %v1624
    %1650 = vmatpush.msra.mxu0 %v1623
    %1651 = vmatpush.msra.mxu0 %v1622
    %1652 = vmatpush.msra.mxu0 %v1621
    %1653 = vmatpush.msra.mxu0 %v1620
    %1654 = vmatmul.f32.gmra.mxu0 %v1619
    %v1655 = vpop.f32.mrf.mxu0
    %v1656 = vadd.f32 %v1637, %v1655
    %1657 = vdwg.mxu0
    %v1658 = vtanh.pop %v1656
    %v1659 = vld [vmem:[#allocation5 + $0x908] sm:$0xff]
    %v1660 = vld [vmem:[#allocation5 + $0x910] sm:$0xff]
    %v1661 = vld [vmem:[#allocation5 + $0x918] sm:$0xff]
    %v1662 = vld [vmem:[#allocation5 + $0x920] sm:$0xff]
    %v1663 = vld [vmem:[#allocation5 + $0x928] sm:$0xff]
    %v1664 = vld [vmem:[#allocation5 + $0x930] sm:$0xff]
    %v1665 = vld [vmem:[#allocation5 + $0x938] sm:$0xff]
    %v1666 = vld [vmem:[#allocation5 + $0x940] sm:$0xff]
    %v1667 = vld [vmem:[#allocation5 + $0x948] sm:$0xff]
    %v1668 = vld [vmem:[#allocation5 + $0x950] sm:$0xff]
    %v1669 = vld [vmem:[#allocation5 + $0x958] sm:$0xff]
    %v1670 = vld [vmem:[#allocation5 + $0x960] sm:$0xff]
    %v1671 = vld [vmem:[#allocation5 + $0x968] sm:$0xff]
    %v1672 = vld [vmem:[#allocation5 + $0x970] sm:$0xff]
    %v1673 = vld [vmem:[#allocation5 + $0x978] sm:$0xff]
    %v1674 = vld [vmem:[#allocation5 + $0x980] sm:$0xff]
    %1675 = vmatpush.msra.mxu0 %v1674
    %1676 = vmatpush.msra.mxu0 %v1673
    %1677 = vmatpush.msra.mxu0 %v1672
    %1678 = vmatpush.msra.mxu0 %v1671
    %1679 = vmatpush.msra.mxu0 %v1670
    %1680 = vmatpush.msra.mxu0 %v1669
    %1681 = vmatpush.msra.mxu0 %v1668
    %1682 = vmatpush.msra.mxu0 %v1667
    %1683 = vmatpush.msra.mxu0 %v1666
    %1684 = vmatpush.msra.mxu0 %v1665
    %1685 = vmatpush.msra.mxu0 %v1664
    %1686 = vmatpush.msra.mxu0 %v1663
    %1687 = vmatpush.msra.mxu0 %v1662
    %1688 = vmatpush.msra.mxu0 %v1661
    %1689 = vmatpush.msra.mxu0 %v1660
    %1690 = vmatpush.msra.mxu0 %v1659
    %1691 = vmatmul.f32.gmra.mxu0 %v1658
    %v1692 = vpop.f32.mrf.mxu0
    %v1693 = vadd.f32 0.0, %v1692
    %1694 = vdwg.mxu0
    %v1695 = vmul.f32 %v1693, 0.25
    %v1696 = vld [vmem:[#allocation5 + $0x988] sm:$0xff]
    %v1697 = vld [vmem:[#allocation5 + $0x990] sm:$0xff]
    %v1698 = vld [vmem:[#allocation5 + $0x998] sm:$0xff]
    %v1699 = vld [vmem:[#allocation5 + $0x9a0] sm:$0xff]
    %v1700 = vld [vmem:[#allocation5 + $0x9a8] sm:$0xff]
    %v1701 = vld [vmem:[#allocation5 + $0x9b0] sm:$0xff]
    %v1702 = vld [vmem:[#allocation5 + $0x9b8] sm:$0xff]
    %v1703 = vld [vmem:[#allocation5 + $0x9c0] sm:$0xff]
    %v1704 = vld [vmem:[#allocation5 + $0x9c8] sm:$0xff]
    %v1705 = vld [vmem:[#allocation5 + $0x9d0] sm:$0xff]
    %v1706 = vld [vmem:[#allocation5 + $0x9d8] sm:$0xff]
    %v1707 = vld [vmem:[#allocation5 + $0x9e0] sm:$0xff]
    %v1708 = vld [vmem:[#allocation5 + $0x9e8] sm:$0xff]
    %v1709 = vld [vmem:[#allocation5 + $0x9f0] sm:$0xff]
    %v1710 = vld [vmem:[#allocation5 + $0x9f8] sm:$0xff]
    %v1711 = vld [vmem:[#allocation5 + $0xa00] sm:$0xff]
    %1712 = vmatpush.msra.mxu0 %v1711
    %1713 = vmatpush.msra.mxu0 %v1710
    %1714 = vmatpush.msra.mxu0 %v1709
    %1715 = vmatpush.msra.mxu0 %v1708
    %1716 = vmatpush.msra.mxu0 %v1707
    %1717 = vmatpush.msra.mxu0 %v1706
    %1718 = vmatpush.msra.mxu0 %v1705
    %1719 = vmatpush.msra.mxu0 %v1704
    %1720 = vmatpush.msra.mxu0 %v1703
    %1721 = vmatpush.msra.mxu0 %v1702
    %1722 = vmatpush.msra.mxu0 %v1701
    %1723 = vmatpush.msra.mxu0 %v1700
    %1724 = vmatpush.msra.mxu0 %v1699
    %1725 = vmatpush.msra.mxu0 %v1698
    %1726 = vmatpush.msra.mxu0 %v1697
    %1727 = vmatpush.msra.mxu0 %v1696
    %1728 = vmatmul.f32.gmra.mxu0 %v1658
    %v1729 = vpop.f32.mrf.mxu0
    %v1730 = vadd.f32 0.0, %v1729
    %1731 = vdwg.mxu0
    %v1732 = vld [vmem:[#allocation5 + $0xa08] sm:$0xff]
    %v1733 = vld [vmem:[#allocation5 + $0xa10] sm:$0xff]
    %v1734 = vld [vmem:[#allocation5 + $0xa18] sm:$0xff]
    %v1735 = vld [vmem:[#allocation5 + $0xa20] sm:$0xff]
    %v1736 = vld [vmem:[#allocation5 + $0xa28] sm:$0xff]
    %v1737 = vld [vmem:[#allocation5 + $0xa30] sm:$0xff]
    %v1738 = vld [vmem:[#allocation5 + $0xa38] sm:$0xff]
    %v1739 = vld [vmem:[#allocation5 + $0xa40] sm:$0xff]
    %v1740 = vld [vmem:[#allocation5 + $0xa48] sm:$0xff]
    %v1741 = vld [vmem:[#allocation5 + $0xa50] sm:$0xff]
    %v1742 = vld [vmem:[#allocation5 + $0xa58] sm:$0xff]
    %v1743 = vld [vmem:[#allocation5 + $0xa60] sm:$0xff]
    %v1744 = vld [vmem:[#allocation5 + $0xa68] sm:$0xff]
    %v1745 = vld [vmem:[#allocation5 + $0xa70] sm:$0xff]
    %v1746 = vld [vmem:[#allocation5 + $0xa78] sm:$0xff]
    %v1747 = vld [vmem:[#allocation5 + $0xa80] sm:$0xff]
    %1748 = vmatpush.msra.mxu0 %v1747
    %1749 = vmatpush.msra.mxu0 %v1746
    %1750 = vmatpush.msra.mxu0 %v1745
    %1751 = vmatpush.msra.mxu0 %v1744
    %1752 = vmatpush.msra.mxu0 %v1743
    %1753 = vmatpush.msra.mxu0 %v1742
    %1754 = vmatpush.msra.mxu0 %v1741
    %1755 = vmatpush.msra.mxu0 %v1740
    %1756 = vmatpush.msra.mxu0 %v1739
    %1757 = vmatpush.msra.mxu0 %v1738
    %1758 = vmatpush.msra.mxu0 %v1737
    %1759 = vmatpush.msra.mxu0 %v1736
    %1760 = vmatpush.msra.mxu0 %v1735
    %1761 = vmatpush.msra.mxu0 %v1734
    %1762 = vmatpush.msra.mxu0 %v1733
    %1763 = vmatpush.msra.mxu0 %v1732
    %1764 = vmatmul.f32.gmra.mxu0 %v1658
    %v1765 = vpop.f32.mrf.mxu0
    %v1766 = vadd.f32 0.0, %v1765
    %1767 = vdwg.mxu0
    %1768 = vrot.lane.b32.xlu0 %v1730, 127
    %v1769 = vpop.permute.xlu0 %1768
    %1770 = vrot.lane.b32.xlu0 %v1730, 15
    %v1771 = vpop.permute.xlu0 %1770
    %v1772 = vsel %vm236, %v1769, %v1771
    %v1773 = vmax.f32 %v1730, %v1772
    %v1774 = vmin.f32 %v1730, %v1772
    %1775 = vrot.lane.b32.xlu0 %v1773, 126
    %v1776 = vpop.permute.xlu0 %1775
    %1777 = vrot.lane.b32.xlu0 %v1773, 14
    %v1778 = vpop.permute.xlu0 %1777
    %v1779 = vsel %vm244, %v1776, %v1778
    %v1780 = vmax.f32 %v1773, %v1779
    %1781 = vrot.lane.b32.xlu0 %v1774, 126
    %v1782 = vpop.permute.xlu0 %1781
    %1783 = vrot.lane.b32.xlu0 %v1774, 14
    %v1784 = vpop.permute.xlu0 %1783
    %v1785 = vsel %vm244, %v1782, %v1784
    %v1786 = vmin.f32 %v1774, %v1785
    %1787 = vrot.lane.b32.xlu0 %v1780, 124
    %v1788 = vpop.permute.xlu0 %1787
    %1789 = vrot.lane.b32.xlu0 %v1780, 12
    %v1790 = vpop.permute.xlu0 %1789
    %v1791 = vsel %vm257, %v1788, %v1790
    %v1792 = vmax.f32 %v1780, %v1791
    %1793 = vrot.lane.b32.xlu0 %v1786, 124
    %v1794 = vpop.permute.xlu0 %1793
    %1795 = vrot.lane.b32.xlu0 %v1786, 12
    %v1796 = vpop.permute.xlu0 %1795
    %v1797 = vsel %vm257, %v1794, %v1796
    %v1798 = vmin.f32 %v1786, %v1797
    %1799 = vrot.lane.b32.xlu0 %v1792, 120
    %v1800 = vpop.permute.xlu0 %1799
    %1801 = vrot.lane.b32.xlu0 %v1792, 8
    %v1802 = vpop.permute.xlu0 %1801
    %v1803 = vsel %vm270, %v1800, %v1802
    %v1804 = vmax.f32 %v1792, %v1803
    %1805 = vrot.lane.b32.xlu0 %v1798, 120
    %v1806 = vpop.permute.xlu0 %1805
    %1807 = vrot.lane.b32.xlu0 %v1798, 8
    %v1808 = vpop.permute.xlu0 %1807
    %v1809 = vsel %vm270, %v1806, %v1808
    %v1810 = vmin.f32 %v1798, %v1809
    %v1811 = vmul.f32 %v1695, %v1804
    %v1812 = vmul.f32 %v1695, %v1810
    %v1813 = vmax.f32 %v1811, %v1812
    %v1814 = vmul.f32 %v1695, %v1730
    %v1815 = vsub.f32 %v1814, %v1813
    %v1816 = vmul.f32 %v1815, 1.442695
    %v1817 = vpow.pop %v1816
    %v1818 = vadd.f32 %v1817, 0.0
    %v1819 = vmul.f32 %v1817, %v1766
    %v1820 = vadd.f32 %v1819, 0.0
    %1821 = vrot.lane.b32.xlu0 %v1766, 127
    %v1822 = vpop.permute.xlu0 %1821
    %1823 = vrot.lane.b32.xlu0 %v1766, 15
    %v1824 = vpop.permute.xlu0 %1823
    %v1825 = vsel %vm236, %v1822, %v1824
    %v1826 = vmul.f32 %v1695, %v1772
    %v1827 = vsub.f32 %v1826, %v1813
    %v1828 = vmul.f32 %v1827, 1.442695
    %v1829 = vpow.pop %v1828
    %v1830 = vadd.f32 %v1818, %v1829
    %v1831 = vmul.f32 %v1829, %v1825
    %v1832 = vadd.f32 %v1820, %v1831
    %1833 = vrot.lane.b32.xlu0 %v1730, 126
    %v1834 = vpop.permute.xlu0 %1833
    %1835 = vrot.lane.b32.xlu0 %v1730, 14
    %v1836 = vpop.permute.xlu0 %1835
    %v1837 = vsel %vm244, %v1834, %v1836
    %1838 = vrot.lane.b32.xlu0 %v1766, 126
    %v1839 = vpop.permute.xlu0 %1838
    %1840 = vrot.lane.b32.xlu0 %v1766, 14
    %v1841 = vpop.permute.xlu0 %1840
    %v1842 = vsel %vm244, %v1839, %v1841
    %v1843 = vmul.f32 %v1695, %v1837
    %v1844 = vsub.f32 %v1843, %v1813
    %v1845 = vmul.f32 %v1844, 1.442695
    %v1846 = vpow.pop %v1845
    %v1847 = vadd.f32 %v1830, %v1846
    %v1848 = vmul.f32 %v1846, %v1842
    %v1849 = vadd.f32 %v1832, %v1848
    %1850 = vrot.lane.b32.xlu0 %v1730, 125
    %v1851 = vpop.permute.xlu0 %1850
    %1852 = vrot.lane.b32.xlu0 %v1730, 13
    %v1853 = vpop.permute.xlu0 %1852
    %v1854 = vsel %vm322, %v1851, %v1853
    %1855 = vrot.lane.b32.xlu0 %v1766, 125
    %v1856 = vpop.permute.xlu0 %1855
    %1857 = vrot.lane.b32.xlu0 %v1766, 13
    %v1858 = vpop.permute.xlu0 %1857
    %v1859 = vsel %vm322, %v1856, %v1858
    %v1860 = vmul.f32 %v1695, %v1854
    %v1861 = vsub.f32 %v1860, %v1813
    %v1862 = vmul.f32 %v1861, 1.442695
    %v1863 = vpow.pop %v1862
    %v1864 = vadd.f32 %v1847, %v1863
    %v1865 = vmul.f32 %v1863, %v1859
    %v1866 = vadd.f32 %v1849, %v1865
    %1867 = vrot.lane.b32.xlu0 %v1730, 124
    %v1868 = vpop.permute.xlu0 %1867
    %1869 = vrot.lane.b32.xlu0 %v1730, 12
    %v1870 = vpop.permute.xlu0 %1869
    %v1871 = vsel %vm257, %v1868, %v1870
    %1872 = vrot.lane.b32.xlu0 %v1766, 124
    %v1873 = vpop.permute.xlu0 %1872
    %1874 = vrot.lane.b32.xlu0 %v1766, 12
    %v1875 = vpop.permute.xlu0 %1874
    %v1876 = vsel %vm257, %v1873, %v1875
    %v1877 = vmul.f32 %v1695, %v1871
    %v1878 = vsub.f32 %v1877, %v1813
    %v1879 = vmul.f32 %v1878, 1.442695
    %v1880 = vpow.pop %v1879
    %v1881 = vadd.f32 %v1864, %v1880
    %v1882 = vmul.f32 %v1880, %v1876
    %v1883 = vadd.f32 %v1866, %v1882
    %1884 = vrot.lane.b32.xlu0 %v1730, 123
    %v1885 = vpop.permute.xlu0 %1884
    %1886 = vrot.lane.b32.xlu0 %v1730, 11
    %v1887 = vpop.permute.xlu0 %1886
    %v1888 = vsel %vm357, %v1885, %v1887
    %1889 = vrot.lane.b32.xlu0 %v1766, 123
    %v1890 = vpop.permute.xlu0 %1889
    %1891 = vrot.lane.b32.xlu0 %v1766, 11
    %v1892 = vpop.permute.xlu0 %1891
    %v1893 = vsel %vm357, %v1890, %v1892
    %v1894 = vmul.f32 %v1695, %v1888
    %v1895 = vsub.f32 %v1894, %v1813
    %v1896 = vmul.f32 %v1895, 1.442695
    %v1897 = vpow.pop %v1896
    %v1898 = vadd.f32 %v1881, %v1897
    %v1899 = vmul.f32 %v1897, %v1893
    %v1900 = vadd.f32 %v1883, %v1899
    %1901 = vrot.lane.b32.xlu0 %v1730, 122
    %v1902 = vpop.permute.xlu0 %1901
    %1903 = vrot.lane.b32.xlu0 %v1730, 10
    %v1904 = vpop.permute.xlu0 %1903
    %v1905 = vsel %vm375, %v1902, %v1904
    %1906 = vrot.lane.b32.xlu0 %v1766, 122
    %v1907 = vpop.permute.xlu0 %1906
    %1908 = vrot.lane.b32.xlu0 %v1766, 10
    %v1909 = vpop.permute.xlu0 %1908
    %v1910 = vsel %vm375, %v1907, %v1909
    %v1911 = vmul.f32 %v1695, %v1905
    %v1912 = vsub.f32 %v1911, %v1813
    %v1913 = vmul.f32 %v1912, 1.442695
    %v1914 = vpow.pop %v1913
    %v1915 = vadd.f32 %v1898, %v1914
    %v1916 = vmul.f32 %v1914, %v1910
    %v1917 = vadd.f32 %v1900, %v1916
    %1918 = vrot.lane.b32.xlu0 %v1730, 121
    %v1919 = vpop.permute.xlu0 %1918
    %1920 = vrot.lane.b32.xlu0 %v1730, 9
    %v1921 = vpop.permute.xlu0 %1920
    %v1922 = vsel %vm393, %v1919, %v1921
    %1923 = vrot.lane.b32.xlu0 %v1766, 121
    %v1924 = vpop.permute.xlu0 %1923
    %1925 = vrot.lane.b32.xlu0 %v1766, 9
    %v1926 = vpop.permute.xlu0 %1925
    %v1927 = vsel %vm393, %v1924, %v1926
    %v1928 = vmul.f32 %v1695, %v1922
    %v1929 = vsub.f32 %v1928, %v1813
    %v1930 = vmul.f32 %v1929, 1.442695
    %v1931 = vpow.pop %v1930
    %v1932 = vadd.f32 %v1915, %v1931
    %v1933 = vmul.f32 %v1931, %v1927
    %v1934 = vadd.f32 %v1917, %v1933
    %1935 = vrot.lane.b32.xlu0 %v1730, 120
    %v1936 = vpop.permute.xlu0 %1935
    %1937 = vrot.lane.b32.xlu0 %v1730, 8
    %v1938 = vpop.permute.xlu0 %1937
    %v1939 = vsel %vm270, %v1936, %v1938
    %1940 = vrot.lane.b32.xlu0 %v1766, 120
    %v1941 = vpop.permute.xlu0 %1940
    %1942 = vrot.lane.b32.xlu0 %v1766, 8
    %v1943 = vpop.permute.xlu0 %1942
    %v1944 = vsel %vm270, %v1941, %v1943
    %v1945 = vmul.f32 %v1695, %v1939
    %v1946 = vsub.f32 %v1945, %v1813
    %v1947 = vmul.f32 %v1946, 1.442695
    %v1948 = vpow.pop %v1947
    %v1949 = vadd.f32 %v1932, %v1948
    %v1950 = vmul.f32 %v1948, %v1944
    %v1951 = vadd.f32 %v1934, %v1950
    %1952 = vrot.lane.b32.xlu0 %v1730, 119
    %v1953 = vpop.permute.xlu0 %1952
    %1954 = vrot.lane.b32.xlu0 %v1730, 7
    %v1955 = vpop.permute.xlu0 %1954
    %v1956 = vsel %vm428, %v1953, %v1955
    %1957 = vrot.lane.b32.xlu0 %v1766, 119
    %v1958 = vpop.permute.xlu0 %1957
    %1959 = vrot.lane.b32.xlu0 %v1766, 7
    %v1960 = vpop.permute.xlu0 %1959
    %v1961 = vsel %vm428, %v1958, %v1960
    %v1962 = vmul.f32 %v1695, %v1956
    %v1963 = vsub.f32 %v1962, %v1813
    %v1964 = vmul.f32 %v1963, 1.442695
    %v1965 = vpow.pop %v1964
    %v1966 = vadd.f32 %v1949, %v1965
    %v1967 = vmul.f32 %v1965, %v1961
    %v1968 = vadd.f32 %v1951, %v1967
    %1969 = vrot.lane.b32.xlu0 %v1730, 118
    %v1970 = vpop.permute.xlu0 %1969
    %1971 = vrot.lane.b32.xlu0 %v1730, 6
    %v1972 = vpop.permute.xlu0 %1971
    %v1973 = vsel %vm446, %v1970, %v1972
    %1974 = vrot.lane.b32.xlu0 %v1766, 118
    %v1975 = vpop.permute.xlu0 %1974
    %1976 = vrot.lane.b32.xlu0 %v1766, 6
    %v1977 = vpop.permute.xlu0 %1976
    %v1978 = vsel %vm446, %v1975, %v1977
    %v1979 = vmul.f32 %v1695, %v1973
    %v1980 = vsub.f32 %v1979, %v1813
    %v1981 = vmul.f32 %v1980, 1.442695
    %v1982 = vpow.pop %v1981
    %v1983 = vadd.f32 %v1966, %v1982
    %v1984 = vmul.f32 %v1982, %v1978
    %v1985 = vadd.f32 %v1968, %v1984
    %1986 = vrot.lane.b32.xlu0 %v1730, 117
    %v1987 = vpop.permute.xlu0 %1986
    %1988 = vrot.lane.b32.xlu0 %v1730, 5
    %v1989 = vpop.permute.xlu0 %1988
    %v1990 = vsel %vm464, %v1987, %v1989
    %1991 = vrot.lane.b32.xlu0 %v1766, 117
    %v1992 = vpop.permute.xlu0 %1991
    %1993 = vrot.lane.b32.xlu0 %v1766, 5
    %v1994 = vpop.permute.xlu0 %1993
    %v1995 = vsel %vm464, %v1992, %v1994
    %v1996 = vmul.f32 %v1695, %v1990
    %v1997 = vsub.f32 %v1996, %v1813
    %v1998 = vmul.f32 %v1997, 1.442695
    %v1999 = vpow.pop %v1998
    %v2000 = vadd.f32 %v1983, %v1999
    %v2001 = vmul.f32 %v1999, %v1995
    %v2002 = vadd.f32 %v1985, %v2001
    %2003 = vrot.lane.b32.xlu0 %v1730, 116
    %v2004 = vpop.permute.xlu0 %2003
    %2005 = vrot.lane.b32.xlu0 %v1730, 4
    %v2006 = vpop.permute.xlu0 %2005
    %v2007 = vsel %vm482, %v2004, %v2006
    %2008 = vrot.lane.b32.xlu0 %v1766, 116
    %v2009 = vpop.permute.xlu0 %2008
    %2010 = vrot.lane.b32.xlu0 %v1766, 4
    %v2011 = vpop.permute.xlu0 %2010
    %v2012 = vsel %vm482, %v2009, %v2011
    %v2013 = vmul.f32 %v1695, %v2007
    %v2014 = vsub.f32 %v2013, %v1813
    %v2015 = vmul.f32 %v2014, 1.442695
    %v2016 = vpow.pop %v2015
    %v2017 = vadd.f32 %v2000, %v2016
    %v2018 = vmul.f32 %v2016, %v2012
    %v2019 = vadd.f32 %v2002, %v2018
    %2020 = vrot.lane.b32.xlu0 %v1730, 115
    %v2021 = vpop.permute.xlu0 %2020
    %2022 = vrot.lane.b32.xlu0 %v1730, 3
    %v2023 = vpop.permute.xlu0 %2022
    %v2024 = vsel %vm500, %v2021, %v2023
    %2025 = vrot.lane.b32.xlu0 %v1766, 115
    %v2026 = vpop.permute.xlu0 %2025
    %2027 = vrot.lane.b32.xlu0 %v1766, 3
    %v2028 = vpop.permute.xlu0 %2027
    %v2029 = vsel %vm500, %v2026, %v2028
    %v2030 = vmul.f32 %v1695, %v2024
    %v2031 = vsub.f32 %v2030, %v1813
    %v2032 = vmul.f32 %v2031, 1.442695
    %v2033 = vpow.pop %v2032
    %v2034 = vadd.f32 %v2017, %v2033
    %v2035 = vmul.f32 %v2033, %v2029
    %v2036 = vadd.f32 %v2019, %v2035
    %2037 = vrot.lane.b32.xlu0 %v1730, 114
    %v2038 = vpop.permute.xlu0 %2037
    %2039 = vrot.lane.b32.xlu0 %v1730, 2
    %v2040 = vpop.permute.xlu0 %2039
    %v2041 = vsel %vm518, %v2038, %v2040
    %2042 = vrot.lane.b32.xlu0 %v1766, 114
    %v2043 = vpop.permute.xlu0 %2042
    %2044 = vrot.lane.b32.xlu0 %v1766, 2
    %v2045 = vpop.permute.xlu0 %2044
    %v2046 = vsel %vm518, %v2043, %v2045
    %v2047 = vmul.f32 %v1695, %v2041
    %v2048 = vsub.f32 %v2047, %v1813
    %v2049 = vmul.f32 %v2048, 1.442695
    %v2050 = vpow.pop %v2049
    %v2051 = vadd.f32 %v2034, %v2050
    %v2052 = vmul.f32 %v2050, %v2046
    %v2053 = vadd.f32 %v2036, %v2052
    %2054 = vrot.lane.b32.xlu0 %v1730, 113
    %v2055 = vpop.permute.xlu0 %2054
    %2056 = vrot.lane.b32.xlu0 %v1730, 1
    %v2057 = vpop.permute.xlu0 %2056
    %v2058 = vsel %vm536, %v2055, %v2057
    %2059 = vrot.lane.b32.xlu0 %v1766, 113
    %v2060 = vpop.permute.xlu0 %2059
    %2061 = vrot.lane.b32.xlu0 %v1766, 1
    %v2062 = vpop.permute.xlu0 %2061
    %v2063 = vsel %vm536, %v2060, %v2062
    %v2064 = vmul.f32 %v1695, %v2058
    %v2065 = vsub.f32 %v2064, %v1813
    %v2066 = vmul.f32 %v2065, 1.442695
    %v2067 = vpow.pop %v2066
    %v2068 = vadd.f32 %v2051, %v2067
    %v2069 = vmul.f32 %v2067, %v2063
    %v2070 = vadd.f32 %v2053, %v2069
    %v2071 = vrcp.pop %v2068
    %v2072 = vmul.f32 %v2068, %v2071
    %v2073 = vsub.f32 2.0, %v2072
    %v2074 = vmul.f32 %v2071, %v2073
    %v2075 = vmul.f32 %v2070, %v2074
    %v2076 = vld [vmem:[#allocation5 + $0xa88] sm:$0xff]
    %v2077 = vld [vmem:[#allocation5 + $0xa90] sm:$0xff]
    %v2078 = vld [vmem:[#allocation5 + $0xa98] sm:$0xff]
    %v2079 = vld [vmem:[#allocation5 + $0xaa0] sm:$0xff]
    %v2080 = vld [vmem:[#allocation5 + $0xaa8] sm:$0xff]
    %v2081 = vld [vmem:[#allocation5 + $0xab0] sm:$0xff]
    %v2082 = vld [vmem:[#allocation5 + $0xab8] sm:$0xff]
    %v2083 = vld [vmem:[#allocation5 + $0xac0] sm:$0xff]
    %v2084 = vld [vmem:[#allocation5 + $0xac8] sm:$0xff]
    %v2085 = vld [vmem:[#allocation5 + $0xad0] sm:$0xff]
    %v2086 = vld [vmem:[#allocation5 + $0xad8] sm:$0xff]
    %v2087 = vld [vmem:[#allocation5 + $0xae0] sm:$0xff]
    %v2088 = vld [vmem:[#allocation5 + $0xae8] sm:$0xff]
    %v2089 = vld [vmem:[#allocation5 + $0xaf0] sm:$0xff]
    %v2090 = vld [vmem:[#allocation5 + $0xaf8] sm:$0xff]
    %v2091 = vld [vmem:[#allocation5 + $0xb00] sm:$0xff]
    %v2092 = vld [vmem:[#allocation5 + $0xb8b] sm:$0x1]
    %v2093 = vperm.slane %v2092, 0
    %2094 = vmatpush.msra.mxu0 %v2091
    %2095 = vmatpush.msra.mxu0 %v2090
    %2096 = vmatpush.msra.mxu0 %v2089
    %2097 = vmatpush.msra.mxu0 %v2088
    %2098 = vmatpush.msra.mxu0 %v2087
    %2099 = vmatpush.msra.mxu0 %v2086
    %2100 = vmatpush.msra.mxu0 %v2085
    %2101 = vmatpush.msra.mxu0 %v2084
    %2102 = vmatpush.msra.mxu0 %v2083
    %2103 = vmatpush.msra.mxu0 %v2082
    %2104 = vmatpush.msra.mxu0 %v2081
    %2105 = vmatpush.msra.mxu0 %v2080
    %2106 = vmatpush.msra.mxu0 %v2079
    %2107 = vmatpush.msra.mxu0 %v2078
    %2108 = vmatpush.msra.mxu0 %v2077
    %2109 = vmatpush.msra.mxu0 %v2076
    %2110 = vmatmul.f32.gmra.mxu0 %v2075
    %v2111 = vpop.f32.mrf.mxu0
    %v2112 = vadd.f32 %v2093, %v2111
    %2113 = vdwg.mxu0
    %v2114 = vtanh.pop %v2112
    %v2115 = vld [vmem:[#allocation5 + $0xb08] sm:$0xff]
    %v2116 = vld [vmem:[#allocation5 + $0xb10] sm:$0xff]
    %v2117 = vld [vmem:[#allocation5 + $0xb18] sm:$0xff]
    %v2118 = vld [vmem:[#allocation5 + $0xb20] sm:$0xff]
    %v2119 = vld [vmem:[#allocation5 + $0xb28] sm:$0xff]
    %v2120 = vld [vmem:[#allocation5 + $0xb30] sm:$0xff]
    %v2121 = vld [vmem:[#allocation5 + $0xb38] sm:$0xff]
    %v2122 = vld [vmem:[#allocation5 + $0xb40] sm:$0xff]
    %v2123 = vld [vmem:[#allocation5 + $0xb48] sm:$0xff]
    %v2124 = vld [vmem:[#allocation5 + $0xb50] sm:$0xff]
    %v2125 = vld [vmem:[#allocation5 + $0xb58] sm:$0xff]
    %v2126 = vld [vmem:[#allocation5 + $0xb60] sm:$0xff]
    %v2127 = vld [vmem:[#allocation5 + $0xb68] sm:$0xff]
    %v2128 = vld [vmem:[#allocation5 + $0xb70] sm:$0xff]
    %v2129 = vld [vmem:[#allocation5 + $0xb78] sm:$0xff]
    %v2130 = vld [vmem:[#allocation5 + $0xb80] sm:$0xff]
    %v2131 = vld [vmem:[#allocation5 + $0xb8c] sm:$0x1]
    %v2132 = vperm.slane %v2131, 0
    %2133 = vmatpush.msra.mxu0 %v2130
    %2134 = vmatpush.msra.mxu0 %v2129
    %2135 = vmatpush.msra.mxu0 %v2128
    %2136 = vmatpush.msra.mxu0 %v2127
    %2137 = vmatpush.msra.mxu0 %v2126
    %2138 = vmatpush.msra.mxu0 %v2125
    %2139 = vmatpush.msra.mxu0 %v2124
    %2140 = vmatpush.msra.mxu0 %v2123
    %2141 = vmatpush.msra.mxu0 %v2122
    %2142 = vmatpush.msra.mxu0 %v2121
    %2143 = vmatpush.msra.mxu0 %v2120
    %2144 = vmatpush.msra.mxu0 %v2119
    %2145 = vmatpush.msra.mxu0 %v2118
    %2146 = vmatpush.msra.mxu0 %v2117
    %2147 = vmatpush.msra.mxu0 %v2116
    %2148 = vmatpush.msra.mxu0 %v2115
    %2149 = vmatmul.f32.gmra.mxu0 %v2114
    %v2150 = vpop.f32.mrf.mxu0
    %v2151 = vadd.f32 %v2132, %v2150
    %2152 = vdwg.mxu0
    %v2153 = vadd.f32 %v1201, %v2151
    %2154 = vst [vmem:[#allocation7] sm:$0xff] %v2153
    // Predicated region
    $region18: #{tpu_custom_call.1} parent=1 // pred_check
      _
    $region19: #{tpu_custom_call.1} parent=1 // pred_check_branch
      %2156 = sbr.rel (0) target = $region21
    $region20: #{tpu_custom_call.1} parent=1 // pred_region
      %2158 = vsyncadd [#allocation4], 0
      %s2160 = sshll.u32 [#allocation7], 4
      %s2161 = int_to_ptr.vmem [resolvable:$true] %s2160
      %s2162 = sshll.u32 %s2, 4
      %s2163 = int_to_ptr.hbm [resolvable:$true] %s2162
      %2165 = dma.vmem_to_hbm [thread:$0]  %s2161, 128, %s2163, [#allocation4]
    $region21: #{tpu_custom_call.1} parent=1 // pred_fallthru
      _
    // Predicated region
    $region22: #{tpu_custom_call.1} parent=1 // pred_check
      _
    $region23: #{tpu_custom_call.1} parent=1 // pred_check_branch
      %2167 = sbr.rel (0) target = $region25
    $region24: #{tpu_custom_call.1} parent=1 // pred_region
      %2169 = dma.done [#allocation4], 128
    $region25: #{tpu_custom_call.1} parent=1 // pred_fallthru
      _
    %2170 = vsyncpa [#allocation3], 1
    %2171 = vsyncpa [#allocation6], 1
    %2172 = vsyncpa [#allocation4], 1

</llo_original>
